<compile_context>
chip_gen: v7x
topology: tpu7x:2x2x1
jax: 0.10.0
libtpu: 0.0.40
codegen_flags: <defaults>
</compile_context>

<pallas_src>
import functools

import jax
import jax.numpy as jnp
import numpy as np
from jax.experimental import pallas as pl
from jax.experimental.pallas import tpu as pltpu


def realnvp_kernel(x_ref, w1_ref, b1_ref, w2_ref, b2_ref,
                   w3s_ref, b3s_ref, w3t_ref, b3t_ref, *rest,
                   n_blocks, n_layers, half):
    """RealNVP forward on one [TB, C] batch tile; weights stay VMEM-resident.

    Stacked params (NL = n_blocks * n_layers coupling layers total):
      w1,w2   : [NL, half, half] bf16    b1,b2   : [NL, 1, half] f32
      w3s,w3t : [NL, half, half] bf16    b3s,b3t : [NL, 1, half] f32
      (only if n_blocks > 1) p00,p01,p10,p11 : [n_blocks-1, half, half] f32
    """
    if n_blocks > 1:
        p00_ref, p01_ref, p10_ref, p11_ref, o_ref = rest
    else:
        (o_ref,) = rest

    x = x_ref[...].astype(jnp.float32)
    x0 = x[:, :half]            # sliced once per tile, not per layer
    x1 = x[:, half:]

    layer = 0
    for blk in range(n_blocks):
        if blk > 0:
            k = blk - 1
            # Permutation x -> x[:, p], applied to the resident halves:
            #   new_x0 = x0 @ P00 + x1 @ P10 ; new_x1 = x0 @ P01 + x1 @ P11
            # (0/1 matrices in f32 -> exact reorder via the MXU, no concat.)
            n0 = (jnp.dot(x0, p00_ref[k], preferred_element_type=jnp.float32) +
                  jnp.dot(x1, p10_ref[k], preferred_element_type=jnp.float32))
            n1 = (jnp.dot(x0, p01_ref[k], preferred_element_type=jnp.float32) +
                  jnp.dot(x1, p11_ref[k], preferred_element_type=jnp.float32))
            x0, x1 = n0, n1
        for _ in range(n_layers):
            h = jnp.dot(x0.astype(jnp.bfloat16), w1_ref[layer],
                        preferred_element_type=jnp.float32) + b1_ref[layer]
            h = jnp.maximum(h, 0.0)                       # ReLU
            h = jnp.dot(h.astype(jnp.bfloat16), w2_ref[layer],
                        preferred_element_type=jnp.float32) + b2_ref[layer]
            h = jnp.maximum(h, 0.0)                       # ReLU
            hb = h.astype(jnp.bfloat16)
            s = jnp.dot(hb, w3s_ref[layer],
                        preferred_element_type=jnp.float32) + b3s_ref[layer]
            t = jnp.dot(hb, w3t_ref[layer],
                        preferred_element_type=jnp.float32) + b3t_ref[layer]
            s = 0.1 * jnp.tanh(s)
            transformed = x1 * jnp.exp(s) + t
            x0, x1 = transformed, x0      # role swap == concat([transformed, x0])
            layer += 1

    o_ref[:, :half] = x0.astype(o_ref.dtype)
    o_ref[:, half:] = x1.astype(o_ref.dtype)


def realnvp_forward(x, params, *, n_blocks, n_layers, block_batch=None):
    B, C = x.shape
    half = C // 2
    (w1, b1, w2, b2, w3s, b3s, w3t, b3t, perm_pieces) = params

    if block_batch is None:
        block_batch = B if B <= 512 else 512
    assert B % block_batch == 0, "batch must be divisible by block_batch"
    assert block_batch == B or block_batch % 8 == 0

    kernel = functools.partial(realnvp_kernel,
                               n_blocks=n_blocks, n_layers=n_layers, half=half)

    def const_spec(a):
        # Full-array block, constant index map -> DMA'd once, stays resident.
        return pl.BlockSpec(a.shape, lambda i, _nd=a.ndim: (0,) * _nd)

    weight_args = [w1, b1, w2, b2, w3s, b3s, w3t, b3t]
    if n_blocks > 1:
        weight_args += list(perm_pieces)

    x_spec = pl.BlockSpec((block_batch, C), lambda i: (i, 0))

    return pl.pallas_call(
        kernel,
        out_shape=jax.ShapeDtypeStruct((B, C), x.dtype),
        grid=(B // block_batch,),
        in_specs=[x_spec] + [const_spec(a) for a in weight_args],
        out_specs=pl.BlockSpec((block_batch, C), lambda i: (i, 0)),
        compiler_params=pltpu.CompilerParams(
            dimension_semantics=("parallel",)),
    )(x, *weight_args)


def init_params(key, C, n_blocks, n_layers):
    """Deterministic synthetic init (PyTorch-Linear-style uniform bounds).

    Weights are cast to bf16 (MXU-native); biases stay f32.  The output Linear
    of each coupling MLP is split into s/t heads host-side.
    """
    half = C // 2
    NL = n_blocks * n_layers
    keys = jax.random.split(key, 9)

    def unif(k, shape, fan_in):
        bound = 1.0 / np.sqrt(fan_in)
        return jax.random.uniform(k, shape, jnp.float32, -bound, bound)

    w1 = unif(keys[0], (NL, half, half), half).astype(jnp.bfloat16)
    b1 = unif(keys[1], (NL, 1, half), half)
    w2 = unif(keys[2], (NL, half, half), half).astype(jnp.bfloat16)
    b2 = unif(keys[3], (NL, 1, half), half)
    w3s = unif(keys[4], (NL, half, half), half).astype(jnp.bfloat16)
    b3s = unif(keys[5], (NL, 1, half), half)
    w3t = unif(keys[6], (NL, half, half), half).astype(jnp.bfloat16)
    b3t = unif(keys[7], (NL, 1, half), half)

    # Permutations: p[j] is the source channel of output channel j (x[:, p]).
    perm_idx = []
    pk = keys[8]
    for _ in range(max(n_blocks - 1, 0)):
        pk, sub = jax.random.split(pk)
        perm_idx.append(jax.random.permutation(sub, C))

    if n_blocks > 1:
        p00, p01, p10, p11 = [], [], [], []
        for p in perm_idx:
            p_np = np.asarray(p)
            # M[i, j] = 1 iff i == p[j], so (x @ M)[:, j] == x[:, p[j]].
            M = np.zeros((C, C), np.float32)
            M[p_np, np.arange(C)] = 1.0
            p00.append(M[:half, :half]); p01.append(M[:half, half:])
            p10.append(M[half:, :half]); p11.append(M[half:, half:])
        perm_pieces = tuple(jnp.asarray(np.stack(a))
                            for a in (p00, p01, p10, p11))
    else:
        perm_pieces = None

    params = (w1, b1, w2, b2, w3s, b3s, w3t, b3t, perm_pieces)
    return params, perm_idx


def realnvp_ref(x, params, perm_idx, *, n_blocks, n_layers):
    """Pure-JAX reference reproducing the PyTorch forward semantics (same bf16
    matmul inputs / f32 accumulation as the kernel; permutation via x[:, p])."""
    (w1, b1, w2, b2, w3s, b3s, w3t, b3t, _) = params
    half = x.shape[-1] // 2
    layer = 0
    for blk in range(n_blocks):
        if blk > 0:
            x = x[:, perm_idx[blk - 1]]
        for _ in range(n_layers):
            x0, x1 = x[:, :half], x[:, half:]
            h = jnp.maximum(
                jnp.dot(x0.astype(jnp.bfloat16), w1[layer],
                        preferred_element_type=jnp.float32) + b1[layer], 0.0)
            h = jnp.maximum(
                jnp.dot(h.astype(jnp.bfloat16), w2[layer],
                        preferred_element_type=jnp.float32) + b2[layer], 0.0)
            hb = h.astype(jnp.bfloat16)
            s = jnp.dot(hb, w3s[layer],
                        preferred_element_type=jnp.float32) + b3s[layer]
            t = jnp.dot(hb, w3t[layer],
                        preferred_element_type=jnp.float32) + b3t[layer]
            s = 0.1 * jnp.tanh(s)
            x = jnp.concatenate([x1 * jnp.exp(s) + t, x0], axis=-1)
            layer += 1
    return x


if __name__ == "__main__":
    # Lane-friendly small config: RealNVP(in_channels=256, n_blocks=2,
    # n_layers=2), batch=128 tiled into two 64-row grid steps (half=128 fills
    # the full MXU lane width; stores are unmasked lane-dense).
    BATCH, C = 128, 256
    N_BLOCKS, N_LAYERS = 2, 2

    key = jax.random.PRNGKey(0)
    kx, kp = jax.random.split(key)
    x = jax.random.normal(kx, (BATCH, C), dtype=jnp.float32)
    params, perm_idx = init_params(kp, C, N_BLOCKS, N_LAYERS)

    out = realnvp_forward(x, params, n_blocks=N_BLOCKS, n_layers=N_LAYERS,
                          block_batch=64)
    out = jax.block_until_ready(out)

    ref = realnvp_ref(x, params, perm_idx, n_blocks=N_BLOCKS, n_layers=N_LAYERS)
    np.testing.assert_allclose(np.asarray(out), np.asarray(ref),
                               rtol=2e-3, atol=2e-3)
    print("KERNEL_OK")
</pallas_src>

<mosaic_0001>
module attributes {stable_mosaic.version = 11 : i64} {
  func.func @realnvp_kernel(%arg0: i32, %arg1: memref<64x256xf32, #tpu.memory_space<vmem>>, %arg2: memref<4x128x128xbf16, #tpu.memory_space<vmem>>, %arg3: memref<4x1x128xf32, #tpu.memory_space<vmem>>, %arg4: memref<4x128x128xbf16, #tpu.memory_space<vmem>>, %arg5: memref<4x1x128xf32, #tpu.memory_space<vmem>>, %arg6: memref<4x128x128xbf16, #tpu.memory_space<vmem>>, %arg7: memref<4x1x128xf32, #tpu.memory_space<vmem>>, %arg8: memref<4x128x128xbf16, #tpu.memory_space<vmem>>, %arg9: memref<4x1x128xf32, #tpu.memory_space<vmem>>, %arg10: memref<1x128x128xf32, #tpu.memory_space<vmem>>, %arg11: memref<1x128x128xf32, #tpu.memory_space<vmem>>, %arg12: memref<1x128x128xf32, #tpu.memory_space<vmem>>, %arg13: memref<1x128x128xf32, #tpu.memory_space<vmem>>, %arg14: memref<64x256xf32, #tpu.memory_space<vmem>>) attributes {dimension_semantics = [#tpu.dimension_semantics<parallel>], iteration_bounds = array<i64: 2>, scalar_prefetch = 0 : i64, scratch_operands = 0 : i64, tpu.core_type = #tpu.core_type<tc>, window_params = [{transform_indices = @transform_0, window_bounds = array<i64: 64, 256>}, {pipeline_mode = #tpu.pipeline_mode<synchronous>, transform_indices = @transform_1, window_bounds = array<i64: 4, 128, 128>}, {pipeline_mode = #tpu.pipeline_mode<synchronous>, transform_indices = @transform_2, window_bounds = array<i64: 4, 1, 128>}, {pipeline_mode = #tpu.pipeline_mode<synchronous>, transform_indices = @transform_3, window_bounds = array<i64: 4, 128, 128>}, {pipeline_mode = #tpu.pipeline_mode<synchronous>, transform_indices = @transform_4, window_bounds = array<i64: 4, 1, 128>}, {pipeline_mode = #tpu.pipeline_mode<synchronous>, transform_indices = @transform_5, window_bounds = array<i64: 4, 128, 128>}, {pipeline_mode = #tpu.pipeline_mode<synchronous>, transform_indices = @transform_6, window_bounds = array<i64: 4, 1, 128>}, {pipeline_mode = #tpu.pipeline_mode<synchronous>, transform_indices = @transform_7, window_bounds = array<i64: 4, 128, 128>}, {pipeline_mode = #tpu.pipeline_mode<synchronous>, transform_indices = @transform_8, window_bounds = array<i64: 4, 1, 128>}, {pipeline_mode = #tpu.pipeline_mode<synchronous>, transform_indices = @transform_9, window_bounds = array<i64: 1, 128, 128>}, {pipeline_mode = #tpu.pipeline_mode<synchronous>, transform_indices = @transform_10, window_bounds = array<i64: 1, 128, 128>}, {pipeline_mode = #tpu.pipeline_mode<synchronous>, transform_indices = @transform_11, window_bounds = array<i64: 1, 128, 128>}, {pipeline_mode = #tpu.pipeline_mode<synchronous>, transform_indices = @transform_12, window_bounds = array<i64: 1, 128, 128>}, {transform_indices = @transform_13, window_bounds = array<i64: 64, 256>}]} {
    %c0 = arith.constant 0 : index
    %c0_0 = arith.constant 0 : index
    %0 = vector.load %arg1[%c0, %c0_0] : memref<64x256xf32, #tpu.memory_space<vmem>>, vector<64x256xf32>
    %1 = vector.extract_strided_slice %0 {offsets = [0, 0], sizes = [64, 128], strides = [1, 1]} : vector<64x256xf32> to vector<64x128xf32>
    %2 = vector.extract_strided_slice %0 {offsets = [0, 128], sizes = [64, 128], strides = [1, 1]} : vector<64x256xf32> to vector<64x128xf32>
    %3 = arith.truncf %1 : vector<64x128xf32> to vector<64x128xbf16>
    %c0_1 = arith.constant 0 : index
    %c0_2 = arith.constant 0 : index
    %c0_3 = arith.constant 0 : index
    %4 = vector.load %arg2[%c0_1, %c0_2, %c0_3] : memref<4x128x128xbf16, #tpu.memory_space<vmem>>, vector<1x128x128xbf16>
    %5 = vector.shape_cast %4 : vector<1x128x128xbf16> to vector<128x128xbf16>
    %cst = arith.constant dense<0.000000e+00> : vector<64x128xf32>
    %6 = tpu.matmul %3, %5, %cst {dimension_numbers = #tpu.dot_dimension_numbers<[1], [0], [0], [1], [0, 0, 1, 1], [], []>} : vector<64x128xbf16>, vector<128x128xbf16>, vector<64x128xf32> -> vector<64x128xf32>
    %c0_4 = arith.constant 0 : index
    %c0_5 = arith.constant 0 : index
    %c0_6 = arith.constant 0 : index
    %7 = vector.load %arg3[%c0_4, %c0_5, %c0_6] : memref<4x1x128xf32, #tpu.memory_space<vmem>>, vector<1x1x128xf32>
    %8 = vector.shape_cast %7 : vector<1x1x128xf32> to vector<1x128xf32>
    %9 = vector.broadcast %8 : vector<1x128xf32> to vector<64x128xf32>
    %10 = arith.addf %6, %9 : vector<64x128xf32>
    %cst_7 = arith.constant 0.000000e+00 : f32
    %11 = vector.broadcast %cst_7 : f32 to vector<64x128xf32>
    %12 = arith.maximumf %10, %11 : vector<64x128xf32>
    %13 = arith.truncf %12 : vector<64x128xf32> to vector<64x128xbf16>
    %c0_8 = arith.constant 0 : index
    %c0_9 = arith.constant 0 : index
    %c0_10 = arith.constant 0 : index
    %14 = vector.load %arg4[%c0_8, %c0_9, %c0_10] : memref<4x128x128xbf16, #tpu.memory_space<vmem>>, vector<1x128x128xbf16>
    %15 = vector.shape_cast %14 : vector<1x128x128xbf16> to vector<128x128xbf16>
    %cst_11 = arith.constant dense<0.000000e+00> : vector<64x128xf32>
    %16 = tpu.matmul %13, %15, %cst_11 {dimension_numbers = #tpu.dot_dimension_numbers<[1], [0], [0], [1], [0, 0, 1, 1], [], []>} : vector<64x128xbf16>, vector<128x128xbf16>, vector<64x128xf32> -> vector<64x128xf32>
    %c0_12 = arith.constant 0 : index
    %c0_13 = arith.constant 0 : index
    %c0_14 = arith.constant 0 : index
    %17 = vector.load %arg5[%c0_12, %c0_13, %c0_14] : memref<4x1x128xf32, #tpu.memory_space<vmem>>, vector<1x1x128xf32>
    %18 = vector.shape_cast %17 : vector<1x1x128xf32> to vector<1x128xf32>
    %19 = vector.broadcast %18 : vector<1x128xf32> to vector<64x128xf32>
    %20 = arith.addf %16, %19 : vector<64x128xf32>
    %cst_15 = arith.constant 0.000000e+00 : f32
    %21 = vector.broadcast %cst_15 : f32 to vector<64x128xf32>
    %22 = arith.maximumf %20, %21 : vector<64x128xf32>
    %23 = arith.truncf %22 : vector<64x128xf32> to vector<64x128xbf16>
    %c0_16 = arith.constant 0 : index
    %c0_17 = arith.constant 0 : index
    %c0_18 = arith.constant 0 : index
    %24 = vector.load %arg6[%c0_16, %c0_17, %c0_18] : memref<4x128x128xbf16, #tpu.memory_space<vmem>>, vector<1x128x128xbf16>
    %25 = vector.shape_cast %24 : vector<1x128x128xbf16> to vector<128x128xbf16>
    %cst_19 = arith.constant dense<0.000000e+00> : vector<64x128xf32>
    %26 = tpu.matmul %23, %25, %cst_19 {dimension_numbers = #tpu.dot_dimension_numbers<[1], [0], [0], [1], [0, 0, 1, 1], [], []>} : vector<64x128xbf16>, vector<128x128xbf16>, vector<64x128xf32> -> vector<64x128xf32>
    %c0_20 = arith.constant 0 : index
    %c0_21 = arith.constant 0 : index
    %c0_22 = arith.constant 0 : index
    %27 = vector.load %arg7[%c0_20, %c0_21, %c0_22] : memref<4x1x128xf32, #tpu.memory_space<vmem>>, vector<1x1x128xf32>
    %28 = vector.shape_cast %27 : vector<1x1x128xf32> to vector<1x128xf32>
    %29 = vector.broadcast %28 : vector<1x128xf32> to vector<64x128xf32>
    %30 = arith.addf %26, %29 : vector<64x128xf32>
    %c0_23 = arith.constant 0 : index
    %c0_24 = arith.constant 0 : index
    %c0_25 = arith.constant 0 : index
    %31 = vector.load %arg8[%c0_23, %c0_24, %c0_25] : memref<4x128x128xbf16, #tpu.memory_space<vmem>>, vector<1x128x128xbf16>
    %32 = vector.shape_cast %31 : vector<1x128x128xbf16> to vector<128x128xbf16>
    %cst_26 = arith.constant dense<0.000000e+00> : vector<64x128xf32>
    %33 = tpu.matmul %23, %32, %cst_26 {dimension_numbers = #tpu.dot_dimension_numbers<[1], [0], [0], [1], [0, 0, 1, 1], [], []>} : vector<64x128xbf16>, vector<128x128xbf16>, vector<64x128xf32> -> vector<64x128xf32>
    %c0_27 = arith.constant 0 : index
    %c0_28 = arith.constant 0 : index
    %c0_29 = arith.constant 0 : index
    %34 = vector.load %arg9[%c0_27, %c0_28, %c0_29] : memref<4x1x128xf32, #tpu.memory_space<vmem>>, vector<1x1x128xf32>
    %35 = vector.shape_cast %34 : vector<1x1x128xf32> to vector<1x128xf32>
    %36 = vector.broadcast %35 : vector<1x128xf32> to vector<64x128xf32>
    %37 = arith.addf %33, %36 : vector<64x128xf32>
    %38 = math.tanh %30 : vector<64x128xf32>
    %cst_30 = arith.constant 1.000000e-01 : f32
    %39 = vector.broadcast %cst_30 : f32 to vector<64x128xf32>
    %40 = arith.mulf %39, %38 : vector<64x128xf32>
    %41 = math.exp %40 : vector<64x128xf32>
    %42 = arith.mulf %2, %41 : vector<64x128xf32>
    %43 = arith.addf %42, %37 : vector<64x128xf32>
    %44 = arith.truncf %43 : vector<64x128xf32> to vector<64x128xbf16>
    %c1 = arith.constant 1 : index
    %c0_31 = arith.constant 0 : index
    %c0_32 = arith.constant 0 : index
    %45 = vector.load %arg2[%c1, %c0_31, %c0_32] : memref<4x128x128xbf16, #tpu.memory_space<vmem>>, vector<1x128x128xbf16>
    %46 = vector.shape_cast %45 : vector<1x128x128xbf16> to vector<128x128xbf16>
    %cst_33 = arith.constant dense<0.000000e+00> : vector<64x128xf32>
    %47 = tpu.matmul %44, %46, %cst_33 {dimension_numbers = #tpu.dot_dimension_numbers<[1], [0], [0], [1], [0, 0, 1, 1], [], []>} : vector<64x128xbf16>, vector<128x128xbf16>, vector<64x128xf32> -> vector<64x128xf32>
    %c1_34 = arith.constant 1 : index
    %c0_35 = arith.constant 0 : index
    %c0_36 = arith.constant 0 : index
    %48 = vector.load %arg3[%c1_34, %c0_35, %c0_36] : memref<4x1x128xf32, #tpu.memory_space<vmem>>, vector<1x1x128xf32>
    %49 = vector.shape_cast %48 : vector<1x1x128xf32> to vector<1x128xf32>
    %50 = vector.broadcast %49 : vector<1x128xf32> to vector<64x128xf32>
    %51 = arith.addf %47, %50 : vector<64x128xf32>
    %cst_37 = arith.constant 0.000000e+00 : f32
    %52 = vector.broadcast %cst_37 : f32 to vector<64x128xf32>
    %53 = arith.maximumf %51, %52 : vector<64x128xf32>
    %54 = arith.truncf %53 : vector<64x128xf32> to vector<64x128xbf16>
    %c1_38 = arith.constant 1 : index
    %c0_39 = arith.constant 0 : index
    %c0_40 = arith.constant 0 : index
    %55 = vector.load %arg4[%c1_38, %c0_39, %c0_40] : memref<4x128x128xbf16, #tpu.memory_space<vmem>>, vector<1x128x128xbf16>
    %56 = vector.shape_cast %55 : vector<1x128x128xbf16> to vector<128x128xbf16>
    %cst_41 = arith.constant dense<0.000000e+00> : vector<64x128xf32>
    %57 = tpu.matmul %54, %56, %cst_41 {dimension_numbers = #tpu.dot_dimension_numbers<[1], [0], [0], [1], [0, 0, 1, 1], [], []>} : vector<64x128xbf16>, vector<128x128xbf16>, vector<64x128xf32> -> vector<64x128xf32>
    %c1_42 = arith.constant 1 : index
    %c0_43 = arith.constant 0 : index
    %c0_44 = arith.constant 0 : index
    %58 = vector.load %arg5[%c1_42, %c0_43, %c0_44] : memref<4x1x128xf32, #tpu.memory_space<vmem>>, vector<1x1x128xf32>
    %59 = vector.shape_cast %58 : vector<1x1x128xf32> to vector<1x128xf32>
    %60 = vector.broadcast %59 : vector<1x128xf32> to vector<64x128xf32>
    %61 = arith.addf %57, %60 : vector<64x128xf32>
    %cst_45 = arith.constant 0.000000e+00 : f32
    %62 = vector.broadcast %cst_45 : f32 to vector<64x128xf32>
    %63 = arith.maximumf %61, %62 : vector<64x128xf32>
    %64 = arith.truncf %63 : vector<64x128xf32> to vector<64x128xbf16>
    %c1_46 = arith.constant 1 : index
    %c0_47 = arith.constant 0 : index
    %c0_48 = arith.constant 0 : index
    %65 = vector.load %arg6[%c1_46, %c0_47, %c0_48] : memref<4x128x128xbf16, #tpu.memory_space<vmem>>, vector<1x128x128xbf16>
    %66 = vector.shape_cast %65 : vector<1x128x128xbf16> to vector<128x128xbf16>
    %cst_49 = arith.constant dense<0.000000e+00> : vector<64x128xf32>
    %67 = tpu.matmul %64, %66, %cst_49 {dimension_numbers = #tpu.dot_dimension_numbers<[1], [0], [0], [1], [0, 0, 1, 1], [], []>} : vector<64x128xbf16>, vector<128x128xbf16>, vector<64x128xf32> -> vector<64x128xf32>
    %c1_50 = arith.constant 1 : index
    %c0_51 = arith.constant 0 : index
    %c0_52 = arith.constant 0 : index
    %68 = vector.load %arg7[%c1_50, %c0_51, %c0_52] : memref<4x1x128xf32, #tpu.memory_space<vmem>>, vector<1x1x128xf32>
    %69 = vector.shape_cast %68 : vector<1x1x128xf32> to vector<1x128xf32>
    %70 = vector.broadcast %69 : vector<1x128xf32> to vector<64x128xf32>
    %71 = arith.addf %67, %70 : vector<64x128xf32>
    %c1_53 = arith.constant 1 : index
    %c0_54 = arith.constant 0 : index
    %c0_55 = arith.constant 0 : index
    %72 = vector.load %arg8[%c1_53, %c0_54, %c0_55] : memref<4x128x128xbf16, #tpu.memory_space<vmem>>, vector<1x128x128xbf16>
    %73 = vector.shape_cast %72 : vector<1x128x128xbf16> to vector<128x128xbf16>
    %cst_56 = arith.constant dense<0.000000e+00> : vector<64x128xf32>
    %74 = tpu.matmul %64, %73, %cst_56 {dimension_numbers = #tpu.dot_dimension_numbers<[1], [0], [0], [1], [0, 0, 1, 1], [], []>} : vector<64x128xbf16>, vector<128x128xbf16>, vector<64x128xf32> -> vector<64x128xf32>
    %c1_57 = arith.constant 1 : index
    %c0_58 = arith.constant 0 : index
    %c0_59 = arith.constant 0 : index
    %75 = vector.load %arg9[%c1_57, %c0_58, %c0_59] : memref<4x1x128xf32, #tpu.memory_space<vmem>>, vector<1x1x128xf32>
    %76 = vector.shape_cast %75 : vector<1x1x128xf32> to vector<1x128xf32>
    %77 = vector.broadcast %76 : vector<1x128xf32> to vector<64x128xf32>
    %78 = arith.addf %74, %77 : vector<64x128xf32>
    %79 = math.tanh %71 : vector<64x128xf32>
    %cst_60 = arith.constant 1.000000e-01 : f32
    %80 = vector.broadcast %cst_60 : f32 to vector<64x128xf32>
    %81 = arith.mulf %80, %79 : vector<64x128xf32>
    %82 = math.exp %81 : vector<64x128xf32>
    %83 = arith.mulf %1, %82 : vector<64x128xf32>
    %84 = arith.addf %83, %78 : vector<64x128xf32>
    %c0_61 = arith.constant 0 : index
    %c0_62 = arith.constant 0 : index
    %c0_63 = arith.constant 0 : index
    %85 = vector.load %arg10[%c0_61, %c0_62, %c0_63] : memref<1x128x128xf32, #tpu.memory_space<vmem>>, vector<1x128x128xf32>
    %86 = vector.shape_cast %85 : vector<1x128x128xf32> to vector<128x128xf32>
    %cst_64 = arith.constant dense<0.000000e+00> : vector<64x128xf32>
    %87 = tpu.matmul %84, %86, %cst_64 {dimension_numbers = #tpu.dot_dimension_numbers<[1], [0], [0], [1], [0, 0, 1, 1], [], []>} : vector<64x128xf32>, vector<128x128xf32>, vector<64x128xf32> -> vector<64x128xf32>
    %c0_65 = arith.constant 0 : index
    %c0_66 = arith.constant 0 : index
    %c0_67 = arith.constant 0 : index
    %88 = vector.load %arg12[%c0_65, %c0_66, %c0_67] : memref<1x128x128xf32, #tpu.memory_space<vmem>>, vector<1x128x128xf32>
    %89 = vector.shape_cast %88 : vector<1x128x128xf32> to vector<128x128xf32>
    %cst_68 = arith.constant dense<0.000000e+00> : vector<64x128xf32>
    %90 = tpu.matmul %43, %89, %cst_68 {dimension_numbers = #tpu.dot_dimension_numbers<[1], [0], [0], [1], [0, 0, 1, 1], [], []>} : vector<64x128xf32>, vector<128x128xf32>, vector<64x128xf32> -> vector<64x128xf32>
    %91 = arith.addf %87, %90 : vector<64x128xf32>
    %c0_69 = arith.constant 0 : index
    %c0_70 = arith.constant 0 : index
    %c0_71 = arith.constant 0 : index
    %92 = vector.load %arg11[%c0_69, %c0_70, %c0_71] : memref<1x128x128xf32, #tpu.memory_space<vmem>>, vector<1x128x128xf32>
    %93 = vector.shape_cast %92 : vector<1x128x128xf32> to vector<128x128xf32>
    %cst_72 = arith.constant dense<0.000000e+00> : vector<64x128xf32>
    %94 = tpu.matmul %84, %93, %cst_72 {dimension_numbers = #tpu.dot_dimension_numbers<[1], [0], [0], [1], [0, 0, 1, 1], [], []>} : vector<64x128xf32>, vector<128x128xf32>, vector<64x128xf32> -> vector<64x128xf32>
    %c0_73 = arith.constant 0 : index
    %c0_74 = arith.constant 0 : index
    %c0_75 = arith.constant 0 : index
    %95 = vector.load %arg13[%c0_73, %c0_74, %c0_75] : memref<1x128x128xf32, #tpu.memory_space<vmem>>, vector<1x128x128xf32>
    %96 = vector.shape_cast %95 : vector<1x128x128xf32> to vector<128x128xf32>
    %cst_76 = arith.constant dense<0.000000e+00> : vector<64x128xf32>
    %97 = tpu.matmul %43, %96, %cst_76 {dimension_numbers = #tpu.dot_dimension_numbers<[1], [0], [0], [1], [0, 0, 1, 1], [], []>} : vector<64x128xf32>, vector<128x128xf32>, vector<64x128xf32> -> vector<64x128xf32>
    %98 = arith.addf %94, %97 : vector<64x128xf32>
    %99 = arith.truncf %91 : vector<64x128xf32> to vector<64x128xbf16>
    %c2 = arith.constant 2 : index
    %c0_77 = arith.constant 0 : index
    %c0_78 = arith.constant 0 : index
    %100 = vector.load %arg2[%c2, %c0_77, %c0_78] : memref<4x128x128xbf16, #tpu.memory_space<vmem>>, vector<1x128x128xbf16>
    %101 = vector.shape_cast %100 : vector<1x128x128xbf16> to vector<128x128xbf16>
    %cst_79 = arith.constant dense<0.000000e+00> : vector<64x128xf32>
    %102 = tpu.matmul %99, %101, %cst_79 {dimension_numbers = #tpu.dot_dimension_numbers<[1], [0], [0], [1], [0, 0, 1, 1], [], []>} : vector<64x128xbf16>, vector<128x128xbf16>, vector<64x128xf32> -> vector<64x128xf32>
    %c2_80 = arith.constant 2 : index
    %c0_81 = arith.constant 0 : index
    %c0_82 = arith.constant 0 : index
    %103 = vector.load %arg3[%c2_80, %c0_81, %c0_82] : memref<4x1x128xf32, #tpu.memory_space<vmem>>, vector<1x1x128xf32>
    %104 = vector.shape_cast %103 : vector<1x1x128xf32> to vector<1x128xf32>
    %105 = vector.broadcast %104 : vector<1x128xf32> to vector<64x128xf32>
    %106 = arith.addf %102, %105 : vector<64x128xf32>
    %cst_83 = arith.constant 0.000000e+00 : f32
    %107 = vector.broadcast %cst_83 : f32 to vector<64x128xf32>
    %108 = arith.maximumf %106, %107 : vector<64x128xf32>
    %109 = arith.truncf %108 : vector<64x128xf32> to vector<64x128xbf16>
    %c2_84 = arith.constant 2 : index
    %c0_85 = arith.constant 0 : index
    %c0_86 = arith.constant 0 : index
    %110 = vector.load %arg4[%c2_84, %c0_85, %c0_86] : memref<4x128x128xbf16, #tpu.memory_space<vmem>>, vector<1x128x128xbf16>
    %111 = vector.shape_cast %110 : vector<1x128x128xbf16> to vector<128x128xbf16>
    %cst_87 = arith.constant dense<0.000000e+00> : vector<64x128xf32>
    %112 = tpu.matmul %109, %111, %cst_87 {dimension_numbers = #tpu.dot_dimension_numbers<[1], [0], [0], [1], [0, 0, 1, 1], [], []>} : vector<64x128xbf16>, vector<128x128xbf16>, vector<64x128xf32> -> vector<64x128xf32>
    %c2_88 = arith.constant 2 : index
    %c0_89 = arith.constant 0 : index
    %c0_90 = arith.constant 0 : index
    %113 = vector.load %arg5[%c2_88, %c0_89, %c0_90] : memref<4x1x128xf32, #tpu.memory_space<vmem>>, vector<1x1x128xf32>
    %114 = vector.shape_cast %113 : vector<1x1x128xf32> to vector<1x128xf32>
    %115 = vector.broadcast %114 : vector<1x128xf32> to vector<64x128xf32>
    %116 = arith.addf %112, %115 : vector<64x128xf32>
    %cst_91 = arith.constant 0.000000e+00 : f32
    %117 = vector.broadcast %cst_91 : f32 to vector<64x128xf32>
    %118 = arith.maximumf %116, %117 : vector<64x128xf32>
    %119 = arith.truncf %118 : vector<64x128xf32> to vector<64x128xbf16>
    %c2_92 = arith.constant 2 : index
    %c0_93 = arith.constant 0 : index
    %c0_94 = arith.constant 0 : index
    %120 = vector.load %arg6[%c2_92, %c0_93, %c0_94] : memref<4x128x128xbf16, #tpu.memory_space<vmem>>, vector<1x128x128xbf16>
    %121 = vector.shape_cast %120 : vector<1x128x128xbf16> to vector<128x128xbf16>
    %cst_95 = arith.constant dense<0.000000e+00> : vector<64x128xf32>
    %122 = tpu.matmul %119, %121, %cst_95 {dimension_numbers = #tpu.dot_dimension_numbers<[1], [0], [0], [1], [0, 0, 1, 1], [], []>} : vector<64x128xbf16>, vector<128x128xbf16>, vector<64x128xf32> -> vector<64x128xf32>
    %c2_96 = arith.constant 2 : index
    %c0_97 = arith.constant 0 : index
    %c0_98 = arith.constant 0 : index
    %123 = vector.load %arg7[%c2_96, %c0_97, %c0_98] : memref<4x1x128xf32, #tpu.memory_space<vmem>>, vector<1x1x128xf32>
    %124 = vector.shape_cast %123 : vector<1x1x128xf32> to vector<1x128xf32>
    %125 = vector.broadcast %124 : vector<1x128xf32> to vector<64x128xf32>
    %126 = arith.addf %122, %125 : vector<64x128xf32>
    %c2_99 = arith.constant 2 : index
    %c0_100 = arith.constant 0 : index
    %c0_101 = arith.constant 0 : index
    %127 = vector.load %arg8[%c2_99, %c0_100, %c0_101] : memref<4x128x128xbf16, #tpu.memory_space<vmem>>, vector<1x128x128xbf16>
    %128 = vector.shape_cast %127 : vector<1x128x128xbf16> to vector<128x128xbf16>
    %cst_102 = arith.constant dense<0.000000e+00> : vector<64x128xf32>
    %129 = tpu.matmul %119, %128, %cst_102 {dimension_numbers = #tpu.dot_dimension_numbers<[1], [0], [0], [1], [0, 0, 1, 1], [], []>} : vector<64x128xbf16>, vector<128x128xbf16>, vector<64x128xf32> -> vector<64x128xf32>
    %c2_103 = arith.constant 2 : index
    %c0_104 = arith.constant 0 : index
    %c0_105 = arith.constant 0 : index
    %130 = vector.load %arg9[%c2_103, %c0_104, %c0_105] : memref<4x1x128xf32, #tpu.memory_space<vmem>>, vector<1x1x128xf32>
    %131 = vector.shape_cast %130 : vector<1x1x128xf32> to vector<1x128xf32>
    %132 = vector.broadcast %131 : vector<1x128xf32> to vector<64x128xf32>
    %133 = arith.addf %129, %132 : vector<64x128xf32>
    %134 = math.tanh %126 : vector<64x128xf32>
    %cst_106 = arith.constant 1.000000e-01 : f32
    %135 = vector.broadcast %cst_106 : f32 to vector<64x128xf32>
    %136 = arith.mulf %135, %134 : vector<64x128xf32>
    %137 = math.exp %136 : vector<64x128xf32>
    %138 = arith.mulf %98, %137 : vector<64x128xf32>
    %139 = arith.addf %138, %133 : vector<64x128xf32>
    %140 = arith.truncf %139 : vector<64x128xf32> to vector<64x128xbf16>
    %c3 = arith.constant 3 : index
    %c0_107 = arith.constant 0 : index
    %c0_108 = arith.constant 0 : index
    %141 = vector.load %arg2[%c3, %c0_107, %c0_108] : memref<4x128x128xbf16, #tpu.memory_space<vmem>>, vector<1x128x128xbf16>
    %142 = vector.shape_cast %141 : vector<1x128x128xbf16> to vector<128x128xbf16>
    %cst_109 = arith.constant dense<0.000000e+00> : vector<64x128xf32>
    %143 = tpu.matmul %140, %142, %cst_109 {dimension_numbers = #tpu.dot_dimension_numbers<[1], [0], [0], [1], [0, 0, 1, 1], [], []>} : vector<64x128xbf16>, vector<128x128xbf16>, vector<64x128xf32> -> vector<64x128xf32>
    %c3_110 = arith.constant 3 : index
    %c0_111 = arith.constant 0 : index
    %c0_112 = arith.constant 0 : index
    %144 = vector.load %arg3[%c3_110, %c0_111, %c0_112] : memref<4x1x128xf32, #tpu.memory_space<vmem>>, vector<1x1x128xf32>
    %145 = vector.shape_cast %144 : vector<1x1x128xf32> to vector<1x128xf32>
    %146 = vector.broadcast %145 : vector<1x128xf32> to vector<64x128xf32>
    %147 = arith.addf %143, %146 : vector<64x128xf32>
    %cst_113 = arith.constant 0.000000e+00 : f32
    %148 = vector.broadcast %cst_113 : f32 to vector<64x128xf32>
    %149 = arith.maximumf %147, %148 : vector<64x128xf32>
    %150 = arith.truncf %149 : vector<64x128xf32> to vector<64x128xbf16>
    %c3_114 = arith.constant 3 : index
    %c0_115 = arith.constant 0 : index
    %c0_116 = arith.constant 0 : index
    %151 = vector.load %arg4[%c3_114, %c0_115, %c0_116] : memref<4x128x128xbf16, #tpu.memory_space<vmem>>, vector<1x128x128xbf16>
    %152 = vector.shape_cast %151 : vector<1x128x128xbf16> to vector<128x128xbf16>
    %cst_117 = arith.constant dense<0.000000e+00> : vector<64x128xf32>
    %153 = tpu.matmul %150, %152, %cst_117 {dimension_numbers = #tpu.dot_dimension_numbers<[1], [0], [0], [1], [0, 0, 1, 1], [], []>} : vector<64x128xbf16>, vector<128x128xbf16>, vector<64x128xf32> -> vector<64x128xf32>
    %c3_118 = arith.constant 3 : index
    %c0_119 = arith.constant 0 : index
    %c0_120 = arith.constant 0 : index
    %154 = vector.load %arg5[%c3_118, %c0_119, %c0_120] : memref<4x1x128xf32, #tpu.memory_space<vmem>>, vector<1x1x128xf32>
    %155 = vector.shape_cast %154 : vector<1x1x128xf32> to vector<1x128xf32>
    %156 = vector.broadcast %155 : vector<1x128xf32> to vector<64x128xf32>
    %157 = arith.addf %153, %156 : vector<64x128xf32>
    %cst_121 = arith.constant 0.000000e+00 : f32
    %158 = vector.broadcast %cst_121 : f32 to vector<64x128xf32>
    %159 = arith.maximumf %157, %158 : vector<64x128xf32>
    %160 = arith.truncf %159 : vector<64x128xf32> to vector<64x128xbf16>
    %c3_122 = arith.constant 3 : index
    %c0_123 = arith.constant 0 : index
    %c0_124 = arith.constant 0 : index
    %161 = vector.load %arg6[%c3_122, %c0_123, %c0_124] : memref<4x128x128xbf16, #tpu.memory_space<vmem>>, vector<1x128x128xbf16>
    %162 = vector.shape_cast %161 : vector<1x128x128xbf16> to vector<128x128xbf16>
    %cst_125 = arith.constant dense<0.000000e+00> : vector<64x128xf32>
    %163 = tpu.matmul %160, %162, %cst_125 {dimension_numbers = #tpu.dot_dimension_numbers<[1], [0], [0], [1], [0, 0, 1, 1], [], []>} : vector<64x128xbf16>, vector<128x128xbf16>, vector<64x128xf32> -> vector<64x128xf32>
    %c3_126 = arith.constant 3 : index
    %c0_127 = arith.constant 0 : index
    %c0_128 = arith.constant 0 : index
    %164 = vector.load %arg7[%c3_126, %c0_127, %c0_128] : memref<4x1x128xf32, #tpu.memory_space<vmem>>, vector<1x1x128xf32>
    %165 = vector.shape_cast %164 : vector<1x1x128xf32> to vector<1x128xf32>
    %166 = vector.broadcast %165 : vector<1x128xf32> to vector<64x128xf32>
    %167 = arith.addf %163, %166 : vector<64x128xf32>
    %c3_129 = arith.constant 3 : index
    %c0_130 = arith.constant 0 : index
    %c0_131 = arith.constant 0 : index
    %168 = vector.load %arg8[%c3_129, %c0_130, %c0_131] : memref<4x128x128xbf16, #tpu.memory_space<vmem>>, vector<1x128x128xbf16>
    %169 = vector.shape_cast %168 : vector<1x128x128xbf16> to vector<128x128xbf16>
    %cst_132 = arith.constant dense<0.000000e+00> : vector<64x128xf32>
    %170 = tpu.matmul %160, %169, %cst_132 {dimension_numbers = #tpu.dot_dimension_numbers<[1], [0], [0], [1], [0, 0, 1, 1], [], []>} : vector<64x128xbf16>, vector<128x128xbf16>, vector<64x128xf32> -> vector<64x128xf32>
    %c3_133 = arith.constant 3 : index
    %c0_134 = arith.constant 0 : index
    %c0_135 = arith.constant 0 : index
    %171 = vector.load %arg9[%c3_133, %c0_134, %c0_135] : memref<4x1x128xf32, #tpu.memory_space<vmem>>, vector<1x1x128xf32>
    %172 = vector.shape_cast %171 : vector<1x1x128xf32> to vector<1x128xf32>
    %173 = vector.broadcast %172 : vector<1x128xf32> to vector<64x128xf32>
    %174 = arith.addf %170, %173 : vector<64x128xf32>
    %175 = math.tanh %167 : vector<64x128xf32>
    %cst_136 = arith.constant 1.000000e-01 : f32
    %176 = vector.broadcast %cst_136 : f32 to vector<64x128xf32>
    %177 = arith.mulf %176, %175 : vector<64x128xf32>
    %178 = math.exp %177 : vector<64x128xf32>
    %179 = arith.mulf %91, %178 : vector<64x128xf32>
    %180 = arith.addf %179, %174 : vector<64x128xf32>
    %c0_137 = arith.constant 0 : index
    %c0_138 = arith.constant 0 : index
    %181 = vector.load %arg14[%c0_137, %c0_138] : memref<64x256xf32, #tpu.memory_space<vmem>>, vector<64x128xf32>
    tpu.vector_store %arg14[%c0_137, %c0_138], %180 {strides = array<i32>} : memref<64x256xf32, #tpu.memory_space<vmem>>, vector<64x128xf32>,
    %c0_139 = arith.constant 0 : index
    %c128 = arith.constant 128 : index
    %182 = vector.load %arg14[%c0_139, %c128] : memref<64x256xf32, #tpu.memory_space<vmem>>, vector<64x128xf32>
    tpu.vector_store %arg14[%c0_139, %c128], %139 {strides = array<i32>} : memref<64x256xf32, #tpu.memory_space<vmem>>, vector<64x128xf32>,
    return
  }
  func.func @transform_0(%arg0: i32) -> (i32, i32) {
    %c0_i32 = arith.constant 0 : i32
    %c0_i32_0 = arith.constant 0 : i32
    return %arg0, %c0_i32 : i32, i32
  }
  func.func @transform_1(%arg0: i32) -> (i32, i32, i32) {
    %c0_i32 = arith.constant 0 : i32
    %c0_i32_0 = arith.constant 0 : i32
    %c0_i32_1 = arith.constant 0 : i32
    %c0_i32_2 = arith.constant 0 : i32
    return %c0_i32, %c0_i32_0, %c0_i32_1 : i32, i32, i32
  }
  func.func @transform_2(%arg0: i32) -> (i32, i32, i32) {
    %c0_i32 = arith.constant 0 : i32
    %c0_i32_0 = arith.constant 0 : i32
    %c0_i32_1 = arith.constant 0 : i32
    %c0_i32_2 = arith.constant 0 : i32
    return %c0_i32, %c0_i32_0, %c0_i32_1 : i32, i32, i32
  }
  func.func @transform_3(%arg0: i32) -> (i32, i32, i32) {
    %c0_i32 = arith.constant 0 : i32
    %c0_i32_0 = arith.constant 0 : i32
    %c0_i32_1 = arith.constant 0 : i32
    %c0_i32_2 = arith.constant 0 : i32
    return %c0_i32, %c0_i32_0, %c0_i32_1 : i32, i32, i32
  }
  func.func @transform_4(%arg0: i32) -> (i32, i32, i32) {
    %c0_i32 = arith.constant 0 : i32
    %c0_i32_0 = arith.constant 0 : i32
    %c0_i32_1 = arith.constant 0 : i32
    %c0_i32_2 = arith.constant 0 : i32
    return %c0_i32, %c0_i32_0, %c0_i32_1 : i32, i32, i32
  }
  func.func @transform_5(%arg0: i32) -> (i32, i32, i32) {
    %c0_i32 = arith.constant 0 : i32
    %c0_i32_0 = arith.constant 0 : i32
    %c0_i32_1 = arith.constant 0 : i32
    %c0_i32_2 = arith.constant 0 : i32
    return %c0_i32, %c0_i32_0, %c0_i32_1 : i32, i32, i32
  }
  func.func @transform_6(%arg0: i32) -> (i32, i32, i32) {
    %c0_i32 = arith.constant 0 : i32
    %c0_i32_0 = arith.constant 0 : i32
    %c0_i32_1 = arith.constant 0 : i32
    %c0_i32_2 = arith.constant 0 : i32
    return %c0_i32, %c0_i32_0, %c0_i32_1 : i32, i32, i32
  }
  func.func @transform_7(%arg0: i32) -> (i32, i32, i32) {
    %c0_i32 = arith.constant 0 : i32
    %c0_i32_0 = arith.constant 0 : i32
    %c0_i32_1 = arith.constant 0 : i32
    %c0_i32_2 = arith.constant 0 : i32
    return %c0_i32, %c0_i32_0, %c0_i32_1 : i32, i32, i32
  }
  func.func @transform_8(%arg0: i32) -> (i32, i32, i32) {
    %c0_i32 = arith.constant 0 : i32
    %c0_i32_0 = arith.constant 0 : i32
    %c0_i32_1 = arith.constant 0 : i32
    %c0_i32_2 = arith.constant 0 : i32
    return %c0_i32, %c0_i32_0, %c0_i32_1 : i32, i32, i32
  }
  func.func @transform_9(%arg0: i32) -> (i32, i32, i32) {
    %c0_i32 = arith.constant 0 : i32
    %c0_i32_0 = arith.constant 0 : i32
    %c0_i32_1 = arith.constant 0 : i32
    %c0_i32_2 = arith.constant 0 : i32
    return %c0_i32, %c0_i32_0, %c0_i32_1 : i32, i32, i32
  }
  func.func @transform_10(%arg0: i32) -> (i32, i32, i32) {
    %c0_i32 = arith.constant 0 : i32
    %c0_i32_0 = arith.constant 0 : i32
    %c0_i32_1 = arith.constant 0 : i32
    %c0_i32_2 = arith.constant 0 : i32
    return %c0_i32, %c0_i32_0, %c0_i32_1 : i32, i32, i32
  }
  func.func @transform_11(%arg0: i32) -> (i32, i32, i32) {
    %c0_i32 = arith.constant 0 : i32
    %c0_i32_0 = arith.constant 0 : i32
    %c0_i32_1 = arith.constant 0 : i32
    %c0_i32_2 = arith.constant 0 : i32
    return %c0_i32, %c0_i32_0, %c0_i32_1 : i32, i32, i32
  }
  func.func @transform_12(%arg0: i32) -> (i32, i32, i32) {
    %c0_i32 = arith.constant 0 : i32
    %c0_i32_0 = arith.constant 0 : i32
    %c0_i32_1 = arith.constant 0 : i32
    %c0_i32_2 = arith.constant 0 : i32
    return %c0_i32, %c0_i32_0, %c0_i32_1 : i32, i32, i32
  }
  func.func @transform_13(%arg0: i32) -> (i32, i32) {
    %c0_i32 = arith.constant 0 : i32
    %c0_i32_0 = arith.constant 0 : i32
    return %arg0, %c0_i32 : i32, i32
  }
}

</mosaic_0001>

<llo_original>
// kernel: tpu_custom_call.1
$region0: #{tpu_custom_call.1}
  #allocation0 [shape = 'u32[]', space=smem, size = 0x4, offset = 0x4, fixed_abs, tag = 'smem constant byte address 0x4 - core index']
  #allocation1 [shape = 'u32[144,128]{1,0:T(1,128)}', space=vmem, size = 0x12000, scoped, tag = 'internal scratch']
  %s0 = inlined_call_operand.hbm [shape: f32[128,256], index: 0, kind: input, shape index: {}]
  %s1 = inlined_call_operand.hbm [shape: bf16[4,128,128], index: 1, kind: input, shape index: {}]
  %s2 = inlined_call_operand.vmem [shape: f32[4,1,128], index: 2, kind: input, shape index: {}]
  %s3 = inlined_call_operand.hbm [shape: bf16[4,128,128], index: 3, kind: input, shape index: {}]
  %s4 = inlined_call_operand.vmem [shape: f32[4,1,128], index: 4, kind: input, shape index: {}]
  %s5 = inlined_call_operand.hbm [shape: bf16[4,128,128], index: 5, kind: input, shape index: {}]
  %s6 = inlined_call_operand.vmem [shape: f32[4,1,128], index: 6, kind: input, shape index: {}]
  %s7 = inlined_call_operand.hbm [shape: bf16[4,128,128], index: 7, kind: input, shape index: {}]
  %s8 = inlined_call_operand.vmem [shape: f32[4,1,128], index: 8, kind: input, shape index: {}]
  %s9 = inlined_call_operand.hbm [shape: f32[1,128,128], index: 9, kind: input, shape index: {}]
  %s10 = inlined_call_operand.hbm [shape: f32[1,128,128], index: 10, kind: input, shape index: {}]
  %s11 = inlined_call_operand.hbm [shape: f32[1,128,128], index: 11, kind: input, shape index: {}]
  %s12 = inlined_call_operand.hbm [shape: f32[1,128,128], index: 12, kind: input, shape index: {}]
  %s13 = inlined_call_operand.hbm [shape: f32[128,256], index: 13, kind: output, shape index: {}]
  %s14 = sld [smem:[#allocation0]]
  $region121: #{tpu_custom_call.1} parent=0
    _
  %s16 = ssub.s32 1, %s14
  %s17 = scalar_select 0, %s16, %s14
  $region1: #{tpu_custom_call.1} parent=0
    #allocation2 [shape = 'u8[131072]{0}', space=vmem, size = 0x20000, scoped, tag = 'input window, operand 0']
    #allocation3 [shape = 's32[2]{0}', space=sflag, size = 0x8, scoped, tag = 'scoped memory for tpu_custom_call.1']
    #allocation4 [shape = 's32[2]{0}', space=sflag, size = 0x8, scoped, tag = 'scoped memory for tpu_custom_call.1']
    #allocation5 [shape = 'u8[131072]{0}', space=vmem, size = 0x20000, scoped, tag = 'input window, operand 1, single buffered']
    #allocation6 [shape = 's32[1]{0}', space=sflag, size = 0x4, scoped, tag = 'scoped memory for tpu_custom_call.1']
    #allocation7 [shape = 'u8[131072]{0}', space=vmem, size = 0x20000, scoped, tag = 'input window, operand 3, single buffered']
    #allocation8 [shape = 'u8[131072]{0}', space=vmem, size = 0x20000, scoped, tag = 'input window, operand 5, single buffered']
    #allocation9 [shape = 's32[1]{0}', space=sflag, size = 0x4, scoped, tag = 'scoped memory for tpu_custom_call.1']
    #allocation10 [shape = 'u8[131072]{0}', space=vmem, size = 0x20000, scoped, tag = 'input window, operand 7, single buffered']
    #allocation11 [shape = 'u8[65536]{0}', space=vmem, size = 0x10000, scoped, tag = 'input window, operand 9, single buffered']
    #allocation12 [shape = 's32[1]{0}', space=sflag, size = 0x4, scoped, tag = 'scoped memory for tpu_custom_call.1']
    #allocation13 [shape = 'u8[65536]{0}', space=vmem, size = 0x10000, scoped, tag = 'input window, operand 10, single buffered']
    #allocation14 [shape = 'u8[65536]{0}', space=vmem, size = 0x10000, scoped, tag = 'input window, operand 11, single buffered']
    #allocation15 [shape = 's32[1]{0}', space=sflag, size = 0x4, scoped, tag = 'scoped memory for tpu_custom_call.1']
    #allocation16 [shape = 'u8[65536]{0}', space=vmem, size = 0x10000, scoped, tag = 'input window, operand 12, single buffered']
    #allocation17 [shape = 'u8[131072]{0}', space=vmem, size = 0x20000, scoped, tag = 'output window, operand 0']
    %18 = vsyncpa [#allocation3], 0
    %s19 = scalar_lea.sflag [#allocation3], 1
    %20 = vsyncpa %s19, 0
    %21 = vsyncpa [#allocation6], 0
    %22 = vsyncpa [#allocation9], 0
    %23 = vsyncpa [#allocation12], 0
    %24 = vsyncpa [#allocation15], 0
    %25 = vsyncpa [#allocation4], 0
    %s26 = scalar_lea.sflag [#allocation4], 1
    %27 = vsyncpa %s26, 0
    loop: start=0, step=1, limit=4
    $region2: #{tpu_custom_call.1} parent=1 // loop_pre_header
      _
    $region3: #{tpu_custom_call.1} parent=1 // loop_header
      %s29 = sphi 0, %s33
      %p30 = scmp.ge.s32.totalorder %s29, 4
      %s39 = sphi 0, %s41
      %s42 = sphi 0, %s39
      %s43 = sphi 0, %s42
      %s59 = sphi 0, %s43
      %s63 = sphi 0, %s63
      %s65 = sphi 0, %s63
      %s66 = sphi 0, %s65
      %s80 = sphi 0, %s66
      %s84 = sphi 0, %s84
      %s86 = sphi 0, %s84
      %s87 = sphi 0, %s86
      %s101 = sphi 0, %s87
      %s105 = sphi 0, %s105
      %s107 = sphi 0, %s105
      %s108 = sphi 0, %s107
      %s122 = sphi 0, %s108
      %s126 = sphi 0, %s126
      %s128 = sphi 0, %s126
      %s129 = sphi 0, %s128
      %s143 = sphi 0, %s129
      %s147 = sphi 0, %s147
      %s149 = sphi 0, %s147
      %s150 = sphi 0, %s149
      %s164 = sphi 0, %s150
      %s168 = sphi 0, %s168
      %s170 = sphi 0, %s168
      %s171 = sphi 0, %s170
      %s185 = sphi 0, %s171
      %s189 = sphi 0, %s189
      %s191 = sphi 0, %s189
      %s192 = sphi 0, %s191
      %s206 = sphi 0, %s192
      %s210 = sphi 0, %s210
      %s212 = sphi 0, %s210
      %s213 = sphi 0, %s212
      %s227 = sphi 0, %s213
      %s231 = sphi 0, %s231
      %s233 = sphi 0, %s231
      %s234 = sphi 0, %s233
      %s248 = sphi 0, %s234
      %s252 = sphi 0, %s252
      %s254 = sphi 0, %s252
      %s255 = sphi 0, %s254
      %s269 = sphi 0, %s255
      %s273 = sphi 0, %s273
      %s275 = sphi 0, %s273
      %s276 = sphi 0, %s275
      %s290 = sphi 0, %s276
      %s294 = sphi 0, %s294
      %s296 = sphi 0, %s294
      %s297 = sphi 0, %s296
      %s311 = sphi 0, %s297
      %s317 = sphi 0, %s319
      %s320 = sphi 0, %s317
      %s321 = sphi 0, %s320
      %s337 = sphi 0, %s321
    $region4: #{tpu_custom_call.1} parent=1 // loop_header_branch
      %32 = sbr.rel (%p30) target = $region8
    $region5: #{tpu_custom_call.1} parent=1 // loop_body
      %s34 = ssub.s32 %s29, 1
      %s35 = ssub.s32 %s29, 2
      %s36 = sadd.s32 %s29, 1
      %s37 = ssub.s32 %s29, %s36
      %p38 = scmp.eq.s32.totalorder %s37, 0
      %s40 = sadd.s32 %s39, 1
      %s41 = scalar_select %p38, %s39, %s40
      %p44 = pneg %p38
      %p45 = scmp.eq.s32.totalorder %s29, 1
      %p46 = por %p44, %p45
      %p47 = scmp.ne.s32.totalorder %s39, %s42
      %p48 = scmp.eq.s32.totalorder %s29, 0
      %p49 = por %p47, %p48
      %p50 = scmp.ne.s32.totalorder %s39, %s42
      %p51 = scmp.eq.s32.totalorder %s34, 1
      %p52 = por %p50, %p51
      %p53 = scmp.ne.s32.totalorder %s42, %s43
      %p54 = scmp.eq.s32.totalorder %s34, 0
      %p55 = por %p53, %p54
      %p56 = scmp.ne.s32.totalorder %s42, %s43
      %p57 = scmp.eq.s32.totalorder %s35, 1
      %p58 = por %p56, %p57
      %p60 = scmp.ne.s32.totalorder %s43, %s59
      %p61 = scmp.eq.s32.totalorder %s35, 0
      %p62 = por %p60, %p61
      %s64 = sadd.s32 %s63, 1
      %p67 = scmp.eq.s32.totalorder %s29, 1
      %p68 = scmp.ne.s32.totalorder %s63, %s65
      %p69 = scmp.eq.s32.totalorder %s29, 0
      %p70 = por %p68, %p69
      %p71 = scmp.ne.s32.totalorder %s63, %s65
      %p72 = scmp.eq.s32.totalorder %s34, 1
      %p73 = por %p71, %p72
      %p74 = scmp.ne.s32.totalorder %s65, %s66
      %p75 = scmp.eq.s32.totalorder %s34, 0
      %p76 = por %p74, %p75
      %p77 = scmp.ne.s32.totalorder %s65, %s66
      %p78 = scmp.eq.s32.totalorder %s35, 1
      %p79 = por %p77, %p78
      %p81 = scmp.ne.s32.totalorder %s66, %s80
      %p82 = scmp.eq.s32.totalorder %s35, 0
      %p83 = por %p81, %p82
      %s85 = sadd.s32 %s84, 1
      %p88 = scmp.eq.s32.totalorder %s29, 1
      %p89 = scmp.ne.s32.totalorder %s84, %s86
      %p90 = scmp.eq.s32.totalorder %s29, 0
      %p91 = por %p89, %p90
      %p92 = scmp.ne.s32.totalorder %s84, %s86
      %p93 = scmp.eq.s32.totalorder %s34, 1
      %p94 = por %p92, %p93
      %p95 = scmp.ne.s32.totalorder %s86, %s87
      %p96 = scmp.eq.s32.totalorder %s34, 0
      %p97 = por %p95, %p96
      %p98 = scmp.ne.s32.totalorder %s86, %s87
      %p99 = scmp.eq.s32.totalorder %s35, 1
      %p100 = por %p98, %p99
      %p102 = scmp.ne.s32.totalorder %s87, %s101
      %p103 = scmp.eq.s32.totalorder %s35, 0
      %p104 = por %p102, %p103
      %s106 = sadd.s32 %s105, 1
      %p109 = scmp.eq.s32.totalorder %s29, 1
      %p110 = scmp.ne.s32.totalorder %s105, %s107
      %p111 = scmp.eq.s32.totalorder %s29, 0
      %p112 = por %p110, %p111
      %p113 = scmp.ne.s32.totalorder %s105, %s107
      %p114 = scmp.eq.s32.totalorder %s34, 1
      %p115 = por %p113, %p114
      %p116 = scmp.ne.s32.totalorder %s107, %s108
      %p117 = scmp.eq.s32.totalorder %s34, 0
      %p118 = por %p116, %p117
      %p119 = scmp.ne.s32.totalorder %s107, %s108
      %p120 = scmp.eq.s32.totalorder %s35, 1
      %p121 = por %p119, %p120
      %p123 = scmp.ne.s32.totalorder %s108, %s122
      %p124 = scmp.eq.s32.totalorder %s35, 0
      %p125 = por %p123, %p124
      %s127 = sadd.s32 %s126, 1
      %p130 = scmp.eq.s32.totalorder %s29, 1
      %p131 = scmp.ne.s32.totalorder %s126, %s128
      %p132 = scmp.eq.s32.totalorder %s29, 0
      %p133 = por %p131, %p132
      %p134 = scmp.ne.s32.totalorder %s126, %s128
      %p135 = scmp.eq.s32.totalorder %s34, 1
      %p136 = por %p134, %p135
      %p137 = scmp.ne.s32.totalorder %s128, %s129
      %p138 = scmp.eq.s32.totalorder %s34, 0
      %p139 = por %p137, %p138
      %p140 = scmp.ne.s32.totalorder %s128, %s129
      %p141 = scmp.eq.s32.totalorder %s35, 1
      %p142 = por %p140, %p141
      %p144 = scmp.ne.s32.totalorder %s129, %s143
      %p145 = scmp.eq.s32.totalorder %s35, 0
      %p146 = por %p144, %p145
      %s148 = sadd.s32 %s147, 1
      %p151 = scmp.eq.s32.totalorder %s29, 1
      %p152 = scmp.ne.s32.totalorder %s147, %s149
      %p153 = scmp.eq.s32.totalorder %s29, 0
      %p154 = por %p152, %p153
      %p155 = scmp.ne.s32.totalorder %s147, %s149
      %p156 = scmp.eq.s32.totalorder %s34, 1
      %p157 = por %p155, %p156
      %p158 = scmp.ne.s32.totalorder %s149, %s150
      %p159 = scmp.eq.s32.totalorder %s34, 0
      %p160 = por %p158, %p159
      %p161 = scmp.ne.s32.totalorder %s149, %s150
      %p162 = scmp.eq.s32.totalorder %s35, 1
      %p163 = por %p161, %p162
      %p165 = scmp.ne.s32.totalorder %s150, %s164
      %p166 = scmp.eq.s32.totalorder %s35, 0
      %p167 = por %p165, %p166
      %s169 = sadd.s32 %s168, 1
      %p172 = scmp.eq.s32.totalorder %s29, 1
      %p173 = scmp.ne.s32.totalorder %s168, %s170
      %p174 = scmp.eq.s32.totalorder %s29, 0
      %p175 = por %p173, %p174
      %p176 = scmp.ne.s32.totalorder %s168, %s170
      %p177 = scmp.eq.s32.totalorder %s34, 1
      %p178 = por %p176, %p177
      %p179 = scmp.ne.s32.totalorder %s170, %s171
      %p180 = scmp.eq.s32.totalorder %s34, 0
      %p181 = por %p179, %p180
      %p182 = scmp.ne.s32.totalorder %s170, %s171
      %p183 = scmp.eq.s32.totalorder %s35, 1
      %p184 = por %p182, %p183
      %p186 = scmp.ne.s32.totalorder %s171, %s185
      %p187 = scmp.eq.s32.totalorder %s35, 0
      %p188 = por %p186, %p187
      %s190 = sadd.s32 %s189, 1
      %p193 = scmp.eq.s32.totalorder %s29, 1
      %p194 = scmp.ne.s32.totalorder %s189, %s191
      %p195 = scmp.eq.s32.totalorder %s29, 0
      %p196 = por %p194, %p195
      %p197 = scmp.ne.s32.totalorder %s189, %s191
      %p198 = scmp.eq.s32.totalorder %s34, 1
      %p199 = por %p197, %p198
      %p200 = scmp.ne.s32.totalorder %s191, %s192
      %p201 = scmp.eq.s32.totalorder %s34, 0
      %p202 = por %p200, %p201
      %p203 = scmp.ne.s32.totalorder %s191, %s192
      %p204 = scmp.eq.s32.totalorder %s35, 1
      %p205 = por %p203, %p204
      %p207 = scmp.ne.s32.totalorder %s192, %s206
      %p208 = scmp.eq.s32.totalorder %s35, 0
      %p209 = por %p207, %p208
      %s211 = sadd.s32 %s210, 1
      %p214 = scmp.eq.s32.totalorder %s29, 1
      %p215 = scmp.ne.s32.totalorder %s210, %s212
      %p216 = scmp.eq.s32.totalorder %s29, 0
      %p217 = por %p215, %p216
      %p218 = scmp.ne.s32.totalorder %s210, %s212
      %p219 = scmp.eq.s32.totalorder %s34, 1
      %p220 = por %p218, %p219
      %p221 = scmp.ne.s32.totalorder %s212, %s213
      %p222 = scmp.eq.s32.totalorder %s34, 0
      %p223 = por %p221, %p222
      %p224 = scmp.ne.s32.totalorder %s212, %s213
      %p225 = scmp.eq.s32.totalorder %s35, 1
      %p226 = por %p224, %p225
      %p228 = scmp.ne.s32.totalorder %s213, %s227
      %p229 = scmp.eq.s32.totalorder %s35, 0
      %p230 = por %p228, %p229
      %s232 = sadd.s32 %s231, 1
      %p235 = scmp.eq.s32.totalorder %s29, 1
      %p236 = scmp.ne.s32.totalorder %s231, %s233
      %p237 = scmp.eq.s32.totalorder %s29, 0
      %p238 = por %p236, %p237
      %p239 = scmp.ne.s32.totalorder %s231, %s233
      %p240 = scmp.eq.s32.totalorder %s34, 1
      %p241 = por %p239, %p240
      %p242 = scmp.ne.s32.totalorder %s233, %s234
      %p243 = scmp.eq.s32.totalorder %s34, 0
      %p244 = por %p242, %p243
      %p245 = scmp.ne.s32.totalorder %s233, %s234
      %p246 = scmp.eq.s32.totalorder %s35, 1
      %p247 = por %p245, %p246
      %p249 = scmp.ne.s32.totalorder %s234, %s248
      %p250 = scmp.eq.s32.totalorder %s35, 0
      %p251 = por %p249, %p250
      %s253 = sadd.s32 %s252, 1
      %p256 = scmp.eq.s32.totalorder %s29, 1
      %p257 = scmp.ne.s32.totalorder %s252, %s254
      %p258 = scmp.eq.s32.totalorder %s29, 0
      %p259 = por %p257, %p258
      %p260 = scmp.ne.s32.totalorder %s252, %s254
      %p261 = scmp.eq.s32.totalorder %s34, 1
      %p262 = por %p260, %p261
      %p263 = scmp.ne.s32.totalorder %s254, %s255
      %p264 = scmp.eq.s32.totalorder %s34, 0
      %p265 = por %p263, %p264
      %p266 = scmp.ne.s32.totalorder %s254, %s255
      %p267 = scmp.eq.s32.totalorder %s35, 1
      %p268 = por %p266, %p267
      %p270 = scmp.ne.s32.totalorder %s255, %s269
      %p271 = scmp.eq.s32.totalorder %s35, 0
      %p272 = por %p270, %p271
      %s274 = sadd.s32 %s273, 1
      %p277 = scmp.eq.s32.totalorder %s29, 1
      %p278 = scmp.ne.s32.totalorder %s273, %s275
      %p279 = scmp.eq.s32.totalorder %s29, 0
      %p280 = por %p278, %p279
      %p281 = scmp.ne.s32.totalorder %s273, %s275
      %p282 = scmp.eq.s32.totalorder %s34, 1
      %p283 = por %p281, %p282
      %p284 = scmp.ne.s32.totalorder %s275, %s276
      %p285 = scmp.eq.s32.totalorder %s34, 0
      %p286 = por %p284, %p285
      %p287 = scmp.ne.s32.totalorder %s275, %s276
      %p288 = scmp.eq.s32.totalorder %s35, 1
      %p289 = por %p287, %p288
      %p291 = scmp.ne.s32.totalorder %s276, %s290
      %p292 = scmp.eq.s32.totalorder %s35, 0
      %p293 = por %p291, %p292
      %s295 = sadd.s32 %s294, 1
      %p298 = scmp.eq.s32.totalorder %s29, 1
      %p299 = scmp.ne.s32.totalorder %s294, %s296
      %p300 = scmp.eq.s32.totalorder %s29, 0
      %p301 = por %p299, %p300
      %p302 = scmp.ne.s32.totalorder %s294, %s296
      %p303 = scmp.eq.s32.totalorder %s34, 1
      %p304 = por %p302, %p303
      %p305 = scmp.ne.s32.totalorder %s296, %s297
      %p306 = scmp.eq.s32.totalorder %s34, 0
      %p307 = por %p305, %p306
      %p308 = scmp.ne.s32.totalorder %s296, %s297
      %p309 = scmp.eq.s32.totalorder %s35, 1
      %p310 = por %p308, %p309
      %p312 = scmp.ne.s32.totalorder %s297, %s311
      %p313 = scmp.eq.s32.totalorder %s35, 0
      %p314 = por %p312, %p313
      %s315 = ssub.s32 %s29, %s36
      %p316 = scmp.eq.s32.totalorder %s315, 0
      %s318 = sadd.s32 %s317, 1
      %s319 = scalar_select %p316, %s317, %s318
      %p322 = pneg %p316
      %p323 = scmp.eq.s32.totalorder %s29, 1
      %p324 = por %p322, %p323
      %p325 = scmp.ne.s32.totalorder %s317, %s320
      %p326 = scmp.eq.s32.totalorder %s29, 0
      %p327 = por %p325, %p326
      %p328 = scmp.ne.s32.totalorder %s317, %s320
      %p329 = scmp.eq.s32.totalorder %s34, 1
      %p330 = por %p328, %p329
      %p331 = scmp.ne.s32.totalorder %s320, %s321
      %p332 = scmp.eq.s32.totalorder %s34, 0
      %p333 = por %p331, %p332
      %p334 = scmp.ne.s32.totalorder %s320, %s321
      %p335 = scmp.eq.s32.totalorder %s35, 1
      %p336 = por %p334, %p335
      %p338 = scmp.ne.s32.totalorder %s321, %s337
      %p339 = scmp.eq.s32.totalorder %s35, 0
      %p340 = por %p338, %p339
      %p341 = scmp.le.s32.totalorder 1, %s29
      %p342 = scmp.lt.s32.totalorder %s29, 3
      %p343 = pnand %p341, %p342
      %p344 = pneg %p343
      // Predicated region
      $region9: #{tpu_custom_call.1} parent=5 // pred_check
        _
      $region10: #{tpu_custom_call.1} parent=5 // pred_check_branch
        %346 = sbr.rel (%p343) target = $region12
      $region11: #{tpu_custom_call.1} parent=5 // pred_region
        %s347 = ssub.s32 %s29, 1
        // Predicated region
        $region13: #{tpu_custom_call.1} parent=11 // pred_check
          %p348 = pneg %p76
        $region14: #{tpu_custom_call.1} parent=11 // pred_check_branch
          %350 = sbr.rel (%p348) target = $region16
        $region15: #{tpu_custom_call.1} parent=11 // pred_region
          %s352 = ssub.s32 4096, 4096
          %353 = vsyncadd [#allocation6], %s352
          %s354 = sshll.u32 [#allocation5], 4
          %s355 = int_to_ptr.vmem [resolvable:$true] %s354
          %360 = dma.hbm_to_vmem [thread:$0]  %s1, 4096, %s355, [#allocation6], 64, 64, 4
        $region16: #{tpu_custom_call.1} parent=11 // pred_fallthru
          _
        // Predicated region
        $region17: #{tpu_custom_call.1} parent=11 // pred_check
          %p361 = pneg %p97
        $region18: #{tpu_custom_call.1} parent=11 // pred_check_branch
          %363 = sbr.rel (%p361) target = $region20
        $region19: #{tpu_custom_call.1} parent=11 // pred_region
          _
        $region20: #{tpu_custom_call.1} parent=11 // pred_fallthru
          _
        // Predicated region
        $region21: #{tpu_custom_call.1} parent=11 // pred_check
          %p364 = pneg %p118
        $region22: #{tpu_custom_call.1} parent=11 // pred_check_branch
          %366 = sbr.rel (%p364) target = $region24
        $region23: #{tpu_custom_call.1} parent=11 // pred_region
          %s368 = ssub.s32 4096, 4096
          %369 = vsyncadd [#allocation6], %s368
          %s370 = sshll.u32 [#allocation7], 4
          %s371 = int_to_ptr.vmem [resolvable:$true] %s370
          %376 = dma.hbm_to_vmem [thread:$0]  %s3, 4096, %s371, [#allocation6], 64, 64, 4
        $region24: #{tpu_custom_call.1} parent=11 // pred_fallthru
          _
        // Predicated region
        $region25: #{tpu_custom_call.1} parent=11 // pred_check
          %p377 = pneg %p139
        $region26: #{tpu_custom_call.1} parent=11 // pred_check_branch
          %379 = sbr.rel (%p377) target = $region28
        $region27: #{tpu_custom_call.1} parent=11 // pred_region
          _
        $region28: #{tpu_custom_call.1} parent=11 // pred_fallthru
          _
        // Predicated region
        $region29: #{tpu_custom_call.1} parent=11 // pred_check
          %p380 = pneg %p160
        $region30: #{tpu_custom_call.1} parent=11 // pred_check_branch
          %382 = sbr.rel (%p380) target = $region32
        $region31: #{tpu_custom_call.1} parent=11 // pred_region
          %s384 = ssub.s32 4096, 4096
          %385 = vsyncadd [#allocation9], %s384
          %s386 = sshll.u32 [#allocation8], 4
          %s387 = int_to_ptr.vmem [resolvable:$true] %s386
          %392 = dma.hbm_to_vmem [thread:$0]  %s5, 4096, %s387, [#allocation9], 64, 64, 4
        $region32: #{tpu_custom_call.1} parent=11 // pred_fallthru
          _
        // Predicated region
        $region33: #{tpu_custom_call.1} parent=11 // pred_check
          %p393 = pneg %p181
        $region34: #{tpu_custom_call.1} parent=11 // pred_check_branch
          %395 = sbr.rel (%p393) target = $region36
        $region35: #{tpu_custom_call.1} parent=11 // pred_region
          _
        $region36: #{tpu_custom_call.1} parent=11 // pred_fallthru
          _
        // Predicated region
        $region37: #{tpu_custom_call.1} parent=11 // pred_check
          %p396 = pneg %p202
        $region38: #{tpu_custom_call.1} parent=11 // pred_check_branch
          %398 = sbr.rel (%p396) target = $region40
        $region39: #{tpu_custom_call.1} parent=11 // pred_region
          %s400 = ssub.s32 4096, 4096
          %401 = vsyncadd [#allocation9], %s400
          %s402 = sshll.u32 [#allocation10], 4
          %s403 = int_to_ptr.vmem [resolvable:$true] %s402
          %408 = dma.hbm_to_vmem [thread:$0]  %s7, 4096, %s403, [#allocation9], 64, 64, 4
        $region40: #{tpu_custom_call.1} parent=11 // pred_fallthru
          _
        // Predicated region
        $region41: #{tpu_custom_call.1} parent=11 // pred_check
          %p409 = pneg %p223
        $region42: #{tpu_custom_call.1} parent=11 // pred_check_branch
          %411 = sbr.rel (%p409) target = $region44
        $region43: #{tpu_custom_call.1} parent=11 // pred_region
          _
        $region44: #{tpu_custom_call.1} parent=11 // pred_fallthru
          _
        // Predicated region
        $region45: #{tpu_custom_call.1} parent=11 // pred_check
          %p412 = pneg %p244
        $region46: #{tpu_custom_call.1} parent=11 // pred_check_branch
          %414 = sbr.rel (%p412) target = $region48
        $region47: #{tpu_custom_call.1} parent=11 // pred_region
          %s416 = ssub.s32 2048, 2048
          %417 = vsyncadd [#allocation12], %s416
          %s418 = sshll.u32 [#allocation11], 4
          %s419 = int_to_ptr.vmem [resolvable:$true] %s418
          %424 = dma.hbm_to_vmem [thread:$0]  %s9, 2048, %s419, [#allocation12], 128, 128, 8
        $region48: #{tpu_custom_call.1} parent=11 // pred_fallthru
          _
        // Predicated region
        $region49: #{tpu_custom_call.1} parent=11 // pred_check
          %p425 = pneg %p265
        $region50: #{tpu_custom_call.1} parent=11 // pred_check_branch
          %427 = sbr.rel (%p425) target = $region52
        $region51: #{tpu_custom_call.1} parent=11 // pred_region
          %s429 = ssub.s32 2048, 2048
          %430 = vsyncadd [#allocation12], %s429
          %s431 = sshll.u32 [#allocation13], 4
          %s432 = int_to_ptr.vmem [resolvable:$true] %s431
          %437 = dma.hbm_to_vmem [thread:$0]  %s10, 2048, %s432, [#allocation12], 128, 128, 8
        $region52: #{tpu_custom_call.1} parent=11 // pred_fallthru
          _
        // Predicated region
        $region53: #{tpu_custom_call.1} parent=11 // pred_check
          %p438 = pneg %p286
        $region54: #{tpu_custom_call.1} parent=11 // pred_check_branch
          %440 = sbr.rel (%p438) target = $region56
        $region55: #{tpu_custom_call.1} parent=11 // pred_region
          %s442 = ssub.s32 2048, 2048
          %443 = vsyncadd [#allocation15], %s442
          %s444 = sshll.u32 [#allocation14], 4
          %s445 = int_to_ptr.vmem [resolvable:$true] %s444
          %450 = dma.hbm_to_vmem [thread:$0]  %s11, 2048, %s445, [#allocation15], 128, 128, 8
        $region56: #{tpu_custom_call.1} parent=11 // pred_fallthru
          _
        // Predicated region
        $region57: #{tpu_custom_call.1} parent=11 // pred_check
          %p451 = pneg %p307
        $region58: #{tpu_custom_call.1} parent=11 // pred_check_branch
          %453 = sbr.rel (%p451) target = $region60
        $region59: #{tpu_custom_call.1} parent=11 // pred_region
          %s455 = ssub.s32 2048, 2048
          %456 = vsyncadd [#allocation15], %s455
          %s457 = sshll.u32 [#allocation16], 4
          %s458 = int_to_ptr.vmem [resolvable:$true] %s457
          %463 = dma.hbm_to_vmem [thread:$0]  %s12, 2048, %s458, [#allocation15], 128, 128, 8
        $region60: #{tpu_custom_call.1} parent=11 // pred_fallthru
          _
      $region12: #{tpu_custom_call.1} parent=5 // pred_fallthru
        _
      %p464 = scmp.lt.s32.totalorder %s29, 2
      // Predicated region
      $region61: #{tpu_custom_call.1} parent=5 // pred_check
        %p465 = pneg %p464
      $region62: #{tpu_custom_call.1} parent=5 // pred_check_branch
        %467 = sbr.rel (%p465) target = $region64
      $region63: #{tpu_custom_call.1} parent=5 // pred_region
        // Predicated region
        $region65: #{tpu_custom_call.1} parent=63 // pred_check
          %p468 = pneg %p49
        $region66: #{tpu_custom_call.1} parent=63 // pred_check_branch
          %470 = sbr.rel (%p468) target = $region68
        $region67: #{tpu_custom_call.1} parent=63 // pred_region
          %s471 = sand.u32 %s39, 1
          %s472 = scalar_lea.sflag [#allocation3], %s471
          %s473 = sand.u32 %s39, 1
          %s474 = smul.addr %s473, 128
          %s475 = scalar_lea.vmem [#allocation2], %s474
          %s476 = smul.u32 8, %s29
          %s478 = ssub.s32 2048, 2048
          %479 = vsyncadd %s472, %s478
          %s480 = smul.addr %s476, 2
          %s481 = smul.addr %s480, 128
          %s482 = scalar_lea.hbm %s0, %s481
          %s483 = sshll.u32 %s475, 4
          %s484 = int_to_ptr.vmem [resolvable:$true] %s483
          %489 = dma.hbm_to_vmem [thread:$0]  %s482, 2048, %s484, %s472, 256, 256, 16
        $region68: #{tpu_custom_call.1} parent=63 // pred_fallthru
          _
      $region64: #{tpu_custom_call.1} parent=5 // pred_fallthru
        _
      %p490 = scmp.le.s32.totalorder 1, %s29
      %p491 = scmp.lt.s32.totalorder %s29, 3
      %p492 = pnand %p490, %p491
      %p493 = pneg %p492
      // Predicated region
      $region69: #{tpu_custom_call.1} parent=5 // pred_check
        _
      $region70: #{tpu_custom_call.1} parent=5 // pred_check_branch
        %495 = sbr.rel (%p492) target = $region72
      $region71: #{tpu_custom_call.1} parent=5 // pred_region
        %s496 = ssub.s32 %s29, 1
        %s497 = sand.u32 %s42, 1
        %s498 = scalar_lea.sflag [#allocation3], %s497
        %s499 = sand.u32 %s42, 1
        %s500 = smul.addr %s499, 128
        %s501 = scalar_lea.vmem [#allocation2], %s500
        // Predicated region
        $region73: #{tpu_custom_call.1} parent=71 // pred_check
          %p502 = pneg %p55
        $region74: #{tpu_custom_call.1} parent=71 // pred_check_branch
          %504 = sbr.rel (%p502) target = $region76
        $region75: #{tpu_custom_call.1} parent=71 // pred_region
          %505 = dma.done %s498, 2048
        $region76: #{tpu_custom_call.1} parent=71 // pred_fallthru
          _
        // Predicated region
        $region77: #{tpu_custom_call.1} parent=71 // pred_check
          %p506 = pneg %p76
        $region78: #{tpu_custom_call.1} parent=71 // pred_check_branch
          %508 = sbr.rel (%p506) target = $region80
        $region79: #{tpu_custom_call.1} parent=71 // pred_region
          %509 = dma.done [#allocation6], 4096
        $region80: #{tpu_custom_call.1} parent=71 // pred_fallthru
          _
        // Predicated region
        $region81: #{tpu_custom_call.1} parent=71 // pred_check
          %p510 = pneg %p118
        $region82: #{tpu_custom_call.1} parent=71 // pred_check_branch
          %512 = sbr.rel (%p510) target = $region84
        $region83: #{tpu_custom_call.1} parent=71 // pred_region
          %513 = dma.done [#allocation6], 4096
        $region84: #{tpu_custom_call.1} parent=71 // pred_fallthru
          _
        // Predicated region
        $region85: #{tpu_custom_call.1} parent=71 // pred_check
          %p514 = pneg %p160
        $region86: #{tpu_custom_call.1} parent=71 // pred_check_branch
          %516 = sbr.rel (%p514) target = $region88
        $region87: #{tpu_custom_call.1} parent=71 // pred_region
          %517 = dma.done [#allocation9], 4096
        $region88: #{tpu_custom_call.1} parent=71 // pred_fallthru
          _
        // Predicated region
        $region89: #{tpu_custom_call.1} parent=71 // pred_check
          %p518 = pneg %p202
        $region90: #{tpu_custom_call.1} parent=71 // pred_check_branch
          %520 = sbr.rel (%p518) target = $region92
        $region91: #{tpu_custom_call.1} parent=71 // pred_region
          %521 = dma.done [#allocation9], 4096
        $region92: #{tpu_custom_call.1} parent=71 // pred_fallthru
          _
        // Predicated region
        $region93: #{tpu_custom_call.1} parent=71 // pred_check
          %p522 = pneg %p244
        $region94: #{tpu_custom_call.1} parent=71 // pred_check_branch
          %524 = sbr.rel (%p522) target = $region96
        $region95: #{tpu_custom_call.1} parent=71 // pred_region
          %525 = dma.done [#allocation12], 2048
        $region96: #{tpu_custom_call.1} parent=71 // pred_fallthru
          _
        // Predicated region
        $region97: #{tpu_custom_call.1} parent=71 // pred_check
          %p526 = pneg %p265
        $region98: #{tpu_custom_call.1} parent=71 // pred_check_branch
          %528 = sbr.rel (%p526) target = $region100
        $region99: #{tpu_custom_call.1} parent=71 // pred_region
          %529 = dma.done [#allocation12], 2048
        $region100: #{tpu_custom_call.1} parent=71 // pred_fallthru
          _
        // Predicated region
        $region101: #{tpu_custom_call.1} parent=71 // pred_check
          %p530 = pneg %p286
        $region102: #{tpu_custom_call.1} parent=71 // pred_check_branch
          %532 = sbr.rel (%p530) target = $region104
        $region103: #{tpu_custom_call.1} parent=71 // pred_region
          %533 = dma.done [#allocation15], 2048
        $region104: #{tpu_custom_call.1} parent=71 // pred_fallthru
          _
        // Predicated region
        $region105: #{tpu_custom_call.1} parent=71 // pred_check
          %p534 = pneg %p307
        $region106: #{tpu_custom_call.1} parent=71 // pred_check_branch
          %536 = sbr.rel (%p534) target = $region108
        $region107: #{tpu_custom_call.1} parent=71 // pred_region
          %537 = dma.done [#allocation15], 2048
        $region108: #{tpu_custom_call.1} parent=71 // pred_fallthru
          _
        %s538 = sand.u32 %s42, 1
        %s539 = scalar_lea.sflag [#allocation3], %s538
        %s540 = sand.u32 %s42, 1
        %s541 = smul.addr %s540, 128
        %s542 = scalar_lea.vmem [#allocation2], %s541
        %p543 = pneg %p55
        %p544 = pneg %p52
        %p545 = pneg %p76
        %p546 = pneg %p73
        %p547 = pneg %p97
        %p548 = pneg %p94
        %p549 = pneg %p118
        %p550 = pneg %p115
        %p551 = pneg %p139
        %p552 = pneg %p136
        %p553 = pneg %p160
        %p554 = pneg %p157
        %p555 = pneg %p181
        %p556 = pneg %p178
        %p557 = pneg %p202
        %p558 = pneg %p199
        %p559 = pneg %p223
        %p560 = pneg %p220
        %p561 = pneg %p244
        %p562 = pneg %p241
        %p563 = pneg %p265
        %p564 = pneg %p262
        %p565 = pneg %p286
        %p566 = pneg %p283
        %p567 = pneg %p307
        %p568 = pneg %p304
        %p569 = pneg %p333
        %p570 = pneg %p330
        %s571 = sand.u32 %s320, 1
        %s572 = scalar_lea.sflag [#allocation4], %s571
        %s573 = sand.u32 %s320, 1
        %s574 = smul.addr %s573, 128
        %s575 = scalar_lea.vmem [#allocation17], %s574
        %s576 = smul.u32 8, %s34
        %s577 = smul.u32 8, %s34
        %v579 = vld [vmem:[%s501] sm:$0xff]
        %v580 = vld [vmem:[%s501 + $0x8] sm:$0xff]
        %v581 = vld [vmem:[%s501 + $0x10] sm:$0xff]
        %v582 = vld [vmem:[%s501 + $0x18] sm:$0xff]
        %v583 = vld [vmem:[%s501 + $0x20] sm:$0xff]
        %v584 = vld [vmem:[%s501 + $0x28] sm:$0xff]
        %v585 = vld [vmem:[%s501 + $0x30] sm:$0xff]
        %v586 = vld [vmem:[%s501 + $0x38] sm:$0xff]
        %v587 = vld [vmem:[%s501 + $0x40] sm:$0xff]
        %v588 = vld [vmem:[%s501 + $0x48] sm:$0xff]
        %v589 = vld [vmem:[%s501 + $0x50] sm:$0xff]
        %v590 = vld [vmem:[%s501 + $0x58] sm:$0xff]
        %v591 = vld [vmem:[%s501 + $0x60] sm:$0xff]
        %v592 = vld [vmem:[%s501 + $0x68] sm:$0xff]
        %v593 = vld [vmem:[%s501 + $0x70] sm:$0xff]
        %v594 = vld [vmem:[%s501 + $0x78] sm:$0xff]
        %v595 = vpack.c.bf16 %v581, %v579
        %v596 = vpack.c.bf16 %v585, %v583
        %v597 = vpack.c.bf16 %v589, %v587
        %v598 = vpack.c.bf16 %v593, %v591
        %v599 = vld [vmem:[#allocation5] sm:$0xf]
        %v600 = vld [vmem:[#allocation5 + $0x4] sm:$0xf]
        %v601 = vld [vmem:[#allocation5 + $0x8] sm:$0xf]
        %v602 = vld [vmem:[#allocation5 + $0xc] sm:$0xf]
        %v603 = vld [vmem:[#allocation5 + $0x10] sm:$0xf]
        %v604 = vld [vmem:[#allocation5 + $0x14] sm:$0xf]
        %v605 = vld [vmem:[#allocation5 + $0x18] sm:$0xf]
        %v606 = vld [vmem:[#allocation5 + $0x1c] sm:$0xf]
        %v607 = vld [vmem:[#allocation5 + $0x20] sm:$0xf]
        %v608 = vld [vmem:[#allocation5 + $0x24] sm:$0xf]
        %v609 = vld [vmem:[#allocation5 + $0x28] sm:$0xf]
        %v610 = vld [vmem:[#allocation5 + $0x2c] sm:$0xf]
        %v611 = vld [vmem:[#allocation5 + $0x30] sm:$0xf]
        %v612 = vld [vmem:[#allocation5 + $0x34] sm:$0xf]
        %v613 = vld [vmem:[#allocation5 + $0x38] sm:$0xf]
        %v614 = vld [vmem:[#allocation5 + $0x3c] sm:$0xf]
        %v615 = vld [vmem:[%s2] sm:$0x1]
        %v617 = vlaneseq
        %v618 = vshrl.u32 %v617, 7
        %v619 = vsub.s32 0, %v618
        %v620 = vrot.slane %v615, %v619
        %v638 = vunpack.c.l.b16 %v599
        %v639 = vunpack.c.l.b16 %v600
        %v640 = vunpack.c.l.b16 %v601
        %v641 = vunpack.c.l.b16 %v602
        %v642 = vunpack.c.l.b16 %v603
        %v643 = vunpack.c.l.b16 %v604
        %v644 = vunpack.c.l.b16 %v605
        %v645 = vunpack.c.l.b16 %v606
        %v646 = vunpack.c.l.b16 %v607
        %v647 = vunpack.c.l.b16 %v608
        %v648 = vunpack.c.l.b16 %v609
        %v649 = vunpack.c.l.b16 %v610
        %v650 = vunpack.c.l.b16 %v611
        %v651 = vunpack.c.l.b16 %v612
        %v652 = vunpack.c.l.b16 %v613
        %v653 = vunpack.c.l.b16 %v614
        %v654 = vpack.c.b16 %v639, %v638
        %v655 = vpack.c.b16 %v641, %v640
        %v656 = vpack.c.b16 %v643, %v642
        %v657 = vpack.c.b16 %v645, %v644
        %v658 = vpack.c.b16 %v647, %v646
        %v659 = vpack.c.b16 %v649, %v648
        %v660 = vpack.c.b16 %v651, %v650
        %v661 = vpack.c.b16 %v653, %v652
        %670 = vmatprep.subr.bf16.mxu0 0
        %671 = vmatpush1.bf16.msra.mxu0 %v654
        %672 = vmatprep.subr.bf16.mxu0 0
        %673 = vmatpush1.bf16.msra.mxu0 %v655
        %674 = vmatprep.subr.bf16.mxu0 0
        %675 = vmatpush1.bf16.msra.mxu0 %v656
        %676 = vmatprep.subr.bf16.mxu0 0
        %677 = vmatpush1.bf16.msra.mxu0 %v657
        %678 = vmatprep.subr.bf16.mxu0 0
        %679 = vmatpush1.bf16.msra.mxu0 %v658
        %680 = vmatprep.subr.bf16.mxu0 0
        %681 = vmatpush1.bf16.msra.mxu0 %v659
        %682 = vmatprep.subr.bf16.mxu0 0
        %683 = vmatpush1.bf16.msra.mxu0 %v660
        %684 = vmatprep.subr.bf16.mxu0 0
        %685 = vmatpush1.bf16.msra.mxu0 %v661
        %686 = vmatprep.subr.bf16.mxu0 0
        %687 = vmatpush1.bf16.msra.mxu0 0
        %688 = vmatprep.subr.bf16.mxu0 0
        %689 = vmatpush1.bf16.msra.mxu0 0
        %690 = vmatprep.subr.bf16.mxu0 0
        %691 = vmatpush1.bf16.msra.mxu0 0
        %692 = vmatprep.subr.bf16.mxu0 0
        %693 = vmatpush1.bf16.msra.mxu0 0
        %694 = vmatprep.subr.bf16.mxu0 0
        %695 = vmatpush1.bf16.msra.mxu0 0
        %696 = vmatprep.subr.bf16.mxu0 0
        %697 = vmatpush1.bf16.msra.mxu0 0
        %698 = vmatprep.subr.bf16.mxu0 0
        %699 = vmatpush1.bf16.msra.mxu0 0
        %700 = vmatprep.subr.bf16.mxu0 0
        %701 = vmatpush1.bf16.msra.mxu0 0
        %702 = vmatprep.mubr.bf16.mxu0 0
        %703 = vmatmul.mubr.bf16.gmra.mrb[0].mxu0 %v595
        %v704 = vpop.f32.mrb[0].mxu0
        %v705 = vadd.f32 %v620, %v704
        %v706 = vpop.f32.mrb[0].mxu0
        %v707 = vpop.f32.mrb[0].mxu0
        %v708 = vadd.f32 %v620, %v707
        %v709 = vpop.f32.mrb[0].mxu0
        %710 = vmatprep.mubr.bf16.mxu0 0
        %711 = vmatmul.mubr.bf16.gmra.mrb[0].mxu0 %v596
        %v712 = vpop.f32.mrb[0].mxu0
        %v713 = vadd.f32 %v620, %v712
        %v714 = vpop.f32.mrb[0].mxu0
        %v715 = vpop.f32.mrb[0].mxu0
        %v716 = vadd.f32 %v620, %v715
        %v717 = vpop.f32.mrb[0].mxu0
        %718 = vmatprep.mubr.bf16.mxu0 0
        %719 = vmatmul.mubr.bf16.gmra.mrb[0].mxu0 %v597
        %v720 = vpop.f32.mrb[0].mxu0
        %v721 = vadd.f32 %v620, %v720
        %v722 = vpop.f32.mrb[0].mxu0
        %v723 = vpop.f32.mrb[0].mxu0
        %v724 = vadd.f32 %v620, %v723
        %v725 = vpop.f32.mrb[0].mxu0
        %726 = vmatprep.mubr.bf16.mxu0 0
        %727 = vmatmul.mubr.bf16.gmra.mrb[0].mxu0 %v598
        %v728 = vpop.f32.mrb[0].mxu0
        %v729 = vadd.f32 %v620, %v728
        %v730 = vpop.f32.mrb[0].mxu0
        %v731 = vpop.f32.mrb[0].mxu0
        %v732 = vadd.f32 %v620, %v731
        %v733 = vpop.f32.mrb[0].mxu0
        %734 = vdwg.mxu0
        %v735 = vmax.f32 %v705, 0.0
        %v736 = vmax.f32 %v708, 0.0
        %v737 = vmax.f32 %v713, 0.0
        %v738 = vmax.f32 %v716, 0.0
        %v739 = vmax.f32 %v721, 0.0
        %v740 = vmax.f32 %v724, 0.0
        %v741 = vmax.f32 %v729, 0.0
        %v742 = vmax.f32 %v732, 0.0
        %v743 = vpack.c.bf16 %v736, %v735
        %v744 = vpack.c.bf16 %v738, %v737
        %v745 = vpack.c.bf16 %v740, %v739
        %v746 = vpack.c.bf16 %v742, %v741
        %v747 = vld [vmem:[#allocation7] sm:$0xf]
        %v748 = vld [vmem:[#allocation7 + $0x4] sm:$0xf]
        %v749 = vld [vmem:[#allocation7 + $0x8] sm:$0xf]
        %v750 = vld [vmem:[#allocation7 + $0xc] sm:$0xf]
        %v751 = vld [vmem:[#allocation7 + $0x10] sm:$0xf]
        %v752 = vld [vmem:[#allocation7 + $0x14] sm:$0xf]
        %v753 = vld [vmem:[#allocation7 + $0x18] sm:$0xf]
        %v754 = vld [vmem:[#allocation7 + $0x1c] sm:$0xf]
        %v755 = vld [vmem:[#allocation7 + $0x20] sm:$0xf]
        %v756 = vld [vmem:[#allocation7 + $0x24] sm:$0xf]
        %v757 = vld [vmem:[#allocation7 + $0x28] sm:$0xf]
        %v758 = vld [vmem:[#allocation7 + $0x2c] sm:$0xf]
        %v759 = vld [vmem:[#allocation7 + $0x30] sm:$0xf]
        %v760 = vld [vmem:[#allocation7 + $0x34] sm:$0xf]
        %v761 = vld [vmem:[#allocation7 + $0x38] sm:$0xf]
        %v762 = vld [vmem:[#allocation7 + $0x3c] sm:$0xf]
        %v763 = vld [vmem:[%s4] sm:$0x1]
        %v765 = vlaneseq
        %v766 = vshrl.u32 %v765, 7
        %v767 = vsub.s32 0, %v766
        %v768 = vrot.slane %v763, %v767
        %v786 = vunpack.c.l.b16 %v747
        %v787 = vunpack.c.l.b16 %v748
        %v788 = vunpack.c.l.b16 %v749
        %v789 = vunpack.c.l.b16 %v750
        %v790 = vunpack.c.l.b16 %v751
        %v791 = vunpack.c.l.b16 %v752
        %v792 = vunpack.c.l.b16 %v753
        %v793 = vunpack.c.l.b16 %v754
        %v794 = vunpack.c.l.b16 %v755
        %v795 = vunpack.c.l.b16 %v756
        %v796 = vunpack.c.l.b16 %v757
        %v797 = vunpack.c.l.b16 %v758
        %v798 = vunpack.c.l.b16 %v759
        %v799 = vunpack.c.l.b16 %v760
        %v800 = vunpack.c.l.b16 %v761
        %v801 = vunpack.c.l.b16 %v762
        %v802 = vpack.c.b16 %v787, %v786
        %v803 = vpack.c.b16 %v789, %v788
        %v804 = vpack.c.b16 %v791, %v790
        %v805 = vpack.c.b16 %v793, %v792
        %v806 = vpack.c.b16 %v795, %v794
        %v807 = vpack.c.b16 %v797, %v796
        %v808 = vpack.c.b16 %v799, %v798
        %v809 = vpack.c.b16 %v801, %v800
        %818 = vmatprep.subr.bf16.mxu0 0
        %819 = vmatpush1.bf16.msra.mxu0 %v802
        %820 = vmatprep.subr.bf16.mxu0 0
        %821 = vmatpush1.bf16.msra.mxu0 %v803
        %822 = vmatprep.subr.bf16.mxu0 0
        %823 = vmatpush1.bf16.msra.mxu0 %v804
        %824 = vmatprep.subr.bf16.mxu0 0
        %825 = vmatpush1.bf16.msra.mxu0 %v805
        %826 = vmatprep.subr.bf16.mxu0 0
        %827 = vmatpush1.bf16.msra.mxu0 %v806
        %828 = vmatprep.subr.bf16.mxu0 0
        %829 = vmatpush1.bf16.msra.mxu0 %v807
        %830 = vmatprep.subr.bf16.mxu0 0
        %831 = vmatpush1.bf16.msra.mxu0 %v808
        %832 = vmatprep.subr.bf16.mxu0 0
        %833 = vmatpush1.bf16.msra.mxu0 %v809
        %834 = vmatprep.subr.bf16.mxu0 0
        %835 = vmatpush1.bf16.msra.mxu0 0
        %836 = vmatprep.subr.bf16.mxu0 0
        %837 = vmatpush1.bf16.msra.mxu0 0
        %838 = vmatprep.subr.bf16.mxu0 0
        %839 = vmatpush1.bf16.msra.mxu0 0
        %840 = vmatprep.subr.bf16.mxu0 0
        %841 = vmatpush1.bf16.msra.mxu0 0
        %842 = vmatprep.subr.bf16.mxu0 0
        %843 = vmatpush1.bf16.msra.mxu0 0
        %844 = vmatprep.subr.bf16.mxu0 0
        %845 = vmatpush1.bf16.msra.mxu0 0
        %846 = vmatprep.subr.bf16.mxu0 0
        %847 = vmatpush1.bf16.msra.mxu0 0
        %848 = vmatprep.subr.bf16.mxu0 0
        %849 = vmatpush1.bf16.msra.mxu0 0
        %850 = vmatprep.mubr.bf16.mxu0 0
        %851 = vmatmul.mubr.bf16.gmra.mrb[0].mxu0 %v743
        %v852 = vpop.f32.mrb[0].mxu0
        %v853 = vadd.f32 %v768, %v852
        %v854 = vpop.f32.mrb[0].mxu0
        %v855 = vpop.f32.mrb[0].mxu0
        %v856 = vadd.f32 %v768, %v855
        %v857 = vpop.f32.mrb[0].mxu0
        %858 = vmatprep.mubr.bf16.mxu0 0
        %859 = vmatmul.mubr.bf16.gmra.mrb[0].mxu0 %v744
        %v860 = vpop.f32.mrb[0].mxu0
        %v861 = vadd.f32 %v768, %v860
        %v862 = vpop.f32.mrb[0].mxu0
        %v863 = vpop.f32.mrb[0].mxu0
        %v864 = vadd.f32 %v768, %v863
        %v865 = vpop.f32.mrb[0].mxu0
        %866 = vmatprep.mubr.bf16.mxu0 0
        %867 = vmatmul.mubr.bf16.gmra.mrb[0].mxu0 %v745
        %v868 = vpop.f32.mrb[0].mxu0
        %v869 = vadd.f32 %v768, %v868
        %v870 = vpop.f32.mrb[0].mxu0
        %v871 = vpop.f32.mrb[0].mxu0
        %v872 = vadd.f32 %v768, %v871
        %v873 = vpop.f32.mrb[0].mxu0
        %874 = vmatprep.mubr.bf16.mxu0 0
        %875 = vmatmul.mubr.bf16.gmra.mrb[0].mxu0 %v746
        %v876 = vpop.f32.mrb[0].mxu0
        %v877 = vadd.f32 %v768, %v876
        %v878 = vpop.f32.mrb[0].mxu0
        %v879 = vpop.f32.mrb[0].mxu0
        %v880 = vadd.f32 %v768, %v879
        %v881 = vpop.f32.mrb[0].mxu0
        %882 = vdwg.mxu0
        %v883 = vmax.f32 %v853, 0.0
        %v884 = vmax.f32 %v856, 0.0
        %v885 = vmax.f32 %v861, 0.0
        %v886 = vmax.f32 %v864, 0.0
        %v887 = vmax.f32 %v869, 0.0
        %v888 = vmax.f32 %v872, 0.0
        %v889 = vmax.f32 %v877, 0.0
        %v890 = vmax.f32 %v880, 0.0
        %v891 = vpack.c.bf16 %v884, %v883
        %v892 = vpack.c.bf16 %v886, %v885
        %v893 = vpack.c.bf16 %v888, %v887
        %v894 = vpack.c.bf16 %v890, %v889
        %v895 = vld [vmem:[#allocation8] sm:$0xf]
        %v896 = vld [vmem:[#allocation8 + $0x4] sm:$0xf]
        %v897 = vld [vmem:[#allocation8 + $0x8] sm:$0xf]
        %v898 = vld [vmem:[#allocation8 + $0xc] sm:$0xf]
        %v899 = vld [vmem:[#allocation8 + $0x10] sm:$0xf]
        %v900 = vld [vmem:[#allocation8 + $0x14] sm:$0xf]
        %v901 = vld [vmem:[#allocation8 + $0x18] sm:$0xf]
        %v902 = vld [vmem:[#allocation8 + $0x1c] sm:$0xf]
        %v903 = vld [vmem:[#allocation8 + $0x20] sm:$0xf]
        %v904 = vld [vmem:[#allocation8 + $0x24] sm:$0xf]
        %v905 = vld [vmem:[#allocation8 + $0x28] sm:$0xf]
        %v906 = vld [vmem:[#allocation8 + $0x2c] sm:$0xf]
        %v907 = vld [vmem:[#allocation8 + $0x30] sm:$0xf]
        %v908 = vld [vmem:[#allocation8 + $0x34] sm:$0xf]
        %v909 = vld [vmem:[#allocation8 + $0x38] sm:$0xf]
        %v910 = vld [vmem:[#allocation8 + $0x3c] sm:$0xf]
        %v911 = vld [vmem:[%s6] sm:$0x1]
        %v913 = vlaneseq
        %v914 = vshrl.u32 %v913, 7
        %v915 = vsub.s32 0, %v914
        %v916 = vrot.slane %v911, %v915
        %v934 = vunpack.c.l.b16 %v895
        %v935 = vunpack.c.l.b16 %v896
        %v936 = vunpack.c.l.b16 %v897
        %v937 = vunpack.c.l.b16 %v898
        %v938 = vunpack.c.l.b16 %v899
        %v939 = vunpack.c.l.b16 %v900
        %v940 = vunpack.c.l.b16 %v901
        %v941 = vunpack.c.l.b16 %v902
        %v942 = vunpack.c.l.b16 %v903
        %v943 = vunpack.c.l.b16 %v904
        %v944 = vunpack.c.l.b16 %v905
        %v945 = vunpack.c.l.b16 %v906
        %v946 = vunpack.c.l.b16 %v907
        %v947 = vunpack.c.l.b16 %v908
        %v948 = vunpack.c.l.b16 %v909
        %v949 = vunpack.c.l.b16 %v910
        %v950 = vpack.c.b16 %v935, %v934
        %v951 = vpack.c.b16 %v937, %v936
        %v952 = vpack.c.b16 %v939, %v938
        %v953 = vpack.c.b16 %v941, %v940
        %v954 = vpack.c.b16 %v943, %v942
        %v955 = vpack.c.b16 %v945, %v944
        %v956 = vpack.c.b16 %v947, %v946
        %v957 = vpack.c.b16 %v949, %v948
        %966 = vmatprep.subr.bf16.mxu0 0
        %967 = vmatpush1.bf16.msra.mxu0 %v950
        %968 = vmatprep.subr.bf16.mxu0 0
        %969 = vmatpush1.bf16.msra.mxu0 %v951
        %970 = vmatprep.subr.bf16.mxu0 0
        %971 = vmatpush1.bf16.msra.mxu0 %v952
        %972 = vmatprep.subr.bf16.mxu0 0
        %973 = vmatpush1.bf16.msra.mxu0 %v953
        %974 = vmatprep.subr.bf16.mxu0 0
        %975 = vmatpush1.bf16.msra.mxu0 %v954
        %976 = vmatprep.subr.bf16.mxu0 0
        %977 = vmatpush1.bf16.msra.mxu0 %v955
        %978 = vmatprep.subr.bf16.mxu0 0
        %979 = vmatpush1.bf16.msra.mxu0 %v956
        %980 = vmatprep.subr.bf16.mxu0 0
        %981 = vmatpush1.bf16.msra.mxu0 %v957
        %982 = vmatprep.subr.bf16.mxu0 0
        %983 = vmatpush1.bf16.msra.mxu0 0
        %984 = vmatprep.subr.bf16.mxu0 0
        %985 = vmatpush1.bf16.msra.mxu0 0
        %986 = vmatprep.subr.bf16.mxu0 0
        %987 = vmatpush1.bf16.msra.mxu0 0
        %988 = vmatprep.subr.bf16.mxu0 0
        %989 = vmatpush1.bf16.msra.mxu0 0
        %990 = vmatprep.subr.bf16.mxu0 0
        %991 = vmatpush1.bf16.msra.mxu0 0
        %992 = vmatprep.subr.bf16.mxu0 0
        %993 = vmatpush1.bf16.msra.mxu0 0
        %994 = vmatprep.subr.bf16.mxu0 0
        %995 = vmatpush1.bf16.msra.mxu0 0
        %996 = vmatprep.subr.bf16.mxu0 0
        %997 = vmatpush1.bf16.msra.mxu0 0
        %998 = vmatprep.mubr.bf16.mxu0 0
        %999 = vmatmul.mubr.bf16.gmra.mrb[0].mxu0 %v891
        %v1000 = vpop.f32.mrb[0].mxu0
        %v1001 = vadd.f32 %v916, %v1000
        %v1002 = vpop.f32.mrb[0].mxu0
        %v1003 = vpop.f32.mrb[0].mxu0
        %v1004 = vadd.f32 %v916, %v1003
        %v1005 = vpop.f32.mrb[0].mxu0
        %1006 = vmatprep.mubr.bf16.mxu0 0
        %1007 = vmatmul.mubr.bf16.gmra.mrb[0].mxu0 %v892
        %v1008 = vpop.f32.mrb[0].mxu0
        %v1009 = vadd.f32 %v916, %v1008
        %v1010 = vpop.f32.mrb[0].mxu0
        %v1011 = vpop.f32.mrb[0].mxu0
        %v1012 = vadd.f32 %v916, %v1011
        %v1013 = vpop.f32.mrb[0].mxu0
        %1014 = vmatprep.mubr.bf16.mxu0 0
        %1015 = vmatmul.mubr.bf16.gmra.mrb[0].mxu0 %v893
        %v1016 = vpop.f32.mrb[0].mxu0
        %v1017 = vadd.f32 %v916, %v1016
        %v1018 = vpop.f32.mrb[0].mxu0
        %v1019 = vpop.f32.mrb[0].mxu0
        %v1020 = vadd.f32 %v916, %v1019
        %v1021 = vpop.f32.mrb[0].mxu0
        %1022 = vmatprep.mubr.bf16.mxu0 0
        %1023 = vmatmul.mubr.bf16.gmra.mrb[0].mxu0 %v894
        %v1024 = vpop.f32.mrb[0].mxu0
        %v1025 = vadd.f32 %v916, %v1024
        %v1026 = vpop.f32.mrb[0].mxu0
        %v1027 = vpop.f32.mrb[0].mxu0
        %v1028 = vadd.f32 %v916, %v1027
        %v1029 = vpop.f32.mrb[0].mxu0
        %1030 = vdwg.mxu0
        %v1031 = vld [vmem:[#allocation10] sm:$0xf]
        %v1032 = vld [vmem:[#allocation10 + $0x4] sm:$0xf]
        %v1033 = vld [vmem:[#allocation10 + $0x8] sm:$0xf]
        %v1034 = vld [vmem:[#allocation10 + $0xc] sm:$0xf]
        %v1035 = vld [vmem:[#allocation10 + $0x10] sm:$0xf]
        %v1036 = vld [vmem:[#allocation10 + $0x14] sm:$0xf]
        %v1037 = vld [vmem:[#allocation10 + $0x18] sm:$0xf]
        %v1038 = vld [vmem:[#allocation10 + $0x1c] sm:$0xf]
        %v1039 = vld [vmem:[#allocation10 + $0x20] sm:$0xf]
        %v1040 = vld [vmem:[#allocation10 + $0x24] sm:$0xf]
        %v1041 = vld [vmem:[#allocation10 + $0x28] sm:$0xf]
        %v1042 = vld [vmem:[#allocation10 + $0x2c] sm:$0xf]
        %v1043 = vld [vmem:[#allocation10 + $0x30] sm:$0xf]
        %v1044 = vld [vmem:[#allocation10 + $0x34] sm:$0xf]
        %v1045 = vld [vmem:[#allocation10 + $0x38] sm:$0xf]
        %v1046 = vld [vmem:[#allocation10 + $0x3c] sm:$0xf]
        %v1047 = vld [vmem:[%s8] sm:$0x1]
        %v1049 = vlaneseq
        %v1050 = vshrl.u32 %v1049, 7
        %v1051 = vsub.s32 0, %v1050
        %v1052 = vrot.slane %v1047, %v1051
        %v1070 = vunpack.c.l.b16 %v1031
        %v1071 = vunpack.c.l.b16 %v1032
        %v1072 = vunpack.c.l.b16 %v1033
        %v1073 = vunpack.c.l.b16 %v1034
        %v1074 = vunpack.c.l.b16 %v1035
        %v1075 = vunpack.c.l.b16 %v1036
        %v1076 = vunpack.c.l.b16 %v1037
        %v1077 = vunpack.c.l.b16 %v1038
        %v1078 = vunpack.c.l.b16 %v1039
        %v1079 = vunpack.c.l.b16 %v1040
        %v1080 = vunpack.c.l.b16 %v1041
        %v1081 = vunpack.c.l.b16 %v1042
        %v1082 = vunpack.c.l.b16 %v1043
        %v1083 = vunpack.c.l.b16 %v1044
        %v1084 = vunpack.c.l.b16 %v1045
        %v1085 = vunpack.c.l.b16 %v1046
        %v1086 = vpack.c.b16 %v1071, %v1070
        %v1087 = vpack.c.b16 %v1073, %v1072
        %v1088 = vpack.c.b16 %v1075, %v1074
        %v1089 = vpack.c.b16 %v1077, %v1076
        %v1090 = vpack.c.b16 %v1079, %v1078
        %v1091 = vpack.c.b16 %v1081, %v1080
        %v1092 = vpack.c.b16 %v1083, %v1082
        %v1093 = vpack.c.b16 %v1085, %v1084
        %1102 = vmatprep.subr.bf16.mxu0 0
        %1103 = vmatpush1.bf16.msra.mxu0 %v1086
        %1104 = vmatprep.subr.bf16.mxu0 0
        %1105 = vmatpush1.bf16.msra.mxu0 %v1087
        %1106 = vmatprep.subr.bf16.mxu0 0
        %1107 = vmatpush1.bf16.msra.mxu0 %v1088
        %1108 = vmatprep.subr.bf16.mxu0 0
        %1109 = vmatpush1.bf16.msra.mxu0 %v1089
        %1110 = vmatprep.subr.bf16.mxu0 0
        %1111 = vmatpush1.bf16.msra.mxu0 %v1090
        %1112 = vmatprep.subr.bf16.mxu0 0
        %1113 = vmatpush1.bf16.msra.mxu0 %v1091
        %1114 = vmatprep.subr.bf16.mxu0 0
        %1115 = vmatpush1.bf16.msra.mxu0 %v1092
        %1116 = vmatprep.subr.bf16.mxu0 0
        %1117 = vmatpush1.bf16.msra.mxu0 %v1093
        %1118 = vmatprep.subr.bf16.mxu0 0
        %1119 = vmatpush1.bf16.msra.mxu0 0
        %1120 = vmatprep.subr.bf16.mxu0 0
        %1121 = vmatpush1.bf16.msra.mxu0 0
        %1122 = vmatprep.subr.bf16.mxu0 0
        %1123 = vmatpush1.bf16.msra.mxu0 0
        %1124 = vmatprep.subr.bf16.mxu0 0
        %1125 = vmatpush1.bf16.msra.mxu0 0
        %1126 = vmatprep.subr.bf16.mxu0 0
        %1127 = vmatpush1.bf16.msra.mxu0 0
        %1128 = vmatprep.subr.bf16.mxu0 0
        %1129 = vmatpush1.bf16.msra.mxu0 0
        %1130 = vmatprep.subr.bf16.mxu0 0
        %1131 = vmatpush1.bf16.msra.mxu0 0
        %1132 = vmatprep.subr.bf16.mxu0 0
        %1133 = vmatpush1.bf16.msra.mxu0 0
        %1134 = vmatprep.mubr.bf16.mxu0 0
        %1135 = vmatmul.mubr.bf16.gmra.mrb[0].mxu0 %v891
        %v1136 = vpop.f32.mrb[0].mxu0
        %v1137 = vadd.f32 %v1052, %v1136
        %v1138 = vpop.f32.mrb[0].mxu0
        %v1139 = vpop.f32.mrb[0].mxu0
        %v1140 = vadd.f32 %v1052, %v1139
        %v1141 = vpop.f32.mrb[0].mxu0
        %1142 = vmatprep.mubr.bf16.mxu0 0
        %1143 = vmatmul.mubr.bf16.gmra.mrb[0].mxu0 %v892
        %v1144 = vpop.f32.mrb[0].mxu0
        %v1145 = vadd.f32 %v1052, %v1144
        %v1146 = vpop.f32.mrb[0].mxu0
        %v1147 = vpop.f32.mrb[0].mxu0
        %v1148 = vadd.f32 %v1052, %v1147
        %v1149 = vpop.f32.mrb[0].mxu0
        %1150 = vmatprep.mubr.bf16.mxu0 0
        %1151 = vmatmul.mubr.bf16.gmra.mrb[0].mxu0 %v893
        %v1152 = vpop.f32.mrb[0].mxu0
        %v1153 = vadd.f32 %v1052, %v1152
        %v1154 = vpop.f32.mrb[0].mxu0
        %v1155 = vpop.f32.mrb[0].mxu0
        %v1156 = vadd.f32 %v1052, %v1155
        %v1157 = vpop.f32.mrb[0].mxu0
        %1158 = vmatprep.mubr.bf16.mxu0 0
        %1159 = vmatmul.mubr.bf16.gmra.mrb[0].mxu0 %v894
        %v1160 = vpop.f32.mrb[0].mxu0
        %v1161 = vadd.f32 %v1052, %v1160
        %v1162 = vpop.f32.mrb[0].mxu0
        %v1163 = vpop.f32.mrb[0].mxu0
        %v1164 = vadd.f32 %v1052, %v1163
        %v1165 = vpop.f32.mrb[0].mxu0
        %1166 = vdwg.mxu0
        %v1167 = vtanh.pop %v1001
        %v1168 = vtanh.pop %v1004
        %v1169 = vtanh.pop %v1009
        %v1170 = vtanh.pop %v1012
        %v1171 = vtanh.pop %v1017
        %v1172 = vtanh.pop %v1020
        %v1173 = vtanh.pop %v1025
        %v1174 = vtanh.pop %v1028
        %v1175 = vmul.f32 %v1167, 0.1
        %v1176 = vmul.f32 %v1168, 0.1
        %v1177 = vmul.f32 %v1169, 0.1
        %v1178 = vmul.f32 %v1170, 0.1
        %v1179 = vmul.f32 %v1171, 0.1
        %v1180 = vmul.f32 %v1172, 0.1
        %v1181 = vmul.f32 %v1173, 0.1
        %v1182 = vmul.f32 %v1174, 0.1
        %v1183 = vmul.f32 %v1175, 1.442695
        %v1184 = vpow.pop %v1183
        %v1185 = vmul.f32 %v1176, 1.442695
        %v1186 = vpow.pop %v1185
        %v1187 = vmul.f32 %v1177, 1.442695
        %v1188 = vpow.pop %v1187
        %v1189 = vmul.f32 %v1178, 1.442695
        %v1190 = vpow.pop %v1189
        %v1191 = vmul.f32 %v1179, 1.442695
        %v1192 = vpow.pop %v1191
        %v1193 = vmul.f32 %v1180, 1.442695
        %v1194 = vpow.pop %v1193
        %v1195 = vmul.f32 %v1181, 1.442695
        %v1196 = vpow.pop %v1195
        %v1197 = vmul.f32 %v1182, 1.442695
        %v1198 = vpow.pop %v1197
        %v1199 = vmul.f32 %v580, %v1184
        %v1200 = vmul.f32 %v582, %v1186
        %v1201 = vmul.f32 %v584, %v1188
        %v1202 = vmul.f32 %v586, %v1190
        %v1203 = vmul.f32 %v588, %v1192
        %v1204 = vmul.f32 %v590, %v1194
        %v1205 = vmul.f32 %v592, %v1196
        %v1206 = vmul.f32 %v594, %v1198
        %v1207 = vadd.f32 %v1199, %v1137
        %v1208 = vadd.f32 %v1200, %v1140
        %v1209 = vadd.f32 %v1201, %v1145
        %v1210 = vadd.f32 %v1202, %v1148
        %v1211 = vadd.f32 %v1203, %v1153
        %v1212 = vadd.f32 %v1204, %v1156
        %v1213 = vadd.f32 %v1205, %v1161
        %v1214 = vadd.f32 %v1206, %v1164
        %v1215 = vpack.c.bf16 %v1208, %v1207
        %v1216 = vpack.c.bf16 %v1210, %v1209
        %v1217 = vpack.c.bf16 %v1212, %v1211
        %v1218 = vpack.c.bf16 %v1214, %v1213
        %s1219 = scalar_lea.vmem [#allocation5], 64
        %v1220 = vld [vmem:[%s1219] sm:$0xf]
        %v1221 = vld [vmem:[%s1219 + $0x4] sm:$0xf]
        %v1222 = vld [vmem:[%s1219 + $0x8] sm:$0xf]
        %v1223 = vld [vmem:[%s1219 + $0xc] sm:$0xf]
        %v1224 = vld [vmem:[%s1219 + $0x10] sm:$0xf]
        %v1225 = vld [vmem:[%s1219 + $0x14] sm:$0xf]
        %v1226 = vld [vmem:[%s1219 + $0x18] sm:$0xf]
        %v1227 = vld [vmem:[%s1219 + $0x1c] sm:$0xf]
        %v1228 = vld [vmem:[%s1219 + $0x20] sm:$0xf]
        %v1229 = vld [vmem:[%s1219 + $0x24] sm:$0xf]
        %v1230 = vld [vmem:[%s1219 + $0x28] sm:$0xf]
        %v1231 = vld [vmem:[%s1219 + $0x2c] sm:$0xf]
        %v1232 = vld [vmem:[%s1219 + $0x30] sm:$0xf]
        %v1233 = vld [vmem:[%s1219 + $0x34] sm:$0xf]
        %v1234 = vld [vmem:[%s1219 + $0x38] sm:$0xf]
        %v1235 = vld [vmem:[%s1219 + $0x3c] sm:$0xf]
        %s1236 = scalar_lea.vmem %s2, 1
        %v1237 = vld [vmem:[%s1236] sm:$0x1]
        %v1239 = vlaneseq
        %v1240 = vshrl.u32 %v1239, 7
        %v1241 = vsub.s32 0, %v1240
        %v1242 = vrot.slane %v1237, %v1241
        %v1260 = vunpack.c.l.b16 %v1220
        %v1261 = vunpack.c.l.b16 %v1221
        %v1262 = vunpack.c.l.b16 %v1222
        %v1263 = vunpack.c.l.b16 %v1223
        %v1264 = vunpack.c.l.b16 %v1224
        %v1265 = vunpack.c.l.b16 %v1225
        %v1266 = vunpack.c.l.b16 %v1226
        %v1267 = vunpack.c.l.b16 %v1227
        %v1268 = vunpack.c.l.b16 %v1228
        %v1269 = vunpack.c.l.b16 %v1229
        %v1270 = vunpack.c.l.b16 %v1230
        %v1271 = vunpack.c.l.b16 %v1231
        %v1272 = vunpack.c.l.b16 %v1232
        %v1273 = vunpack.c.l.b16 %v1233
        %v1274 = vunpack.c.l.b16 %v1234
        %v1275 = vunpack.c.l.b16 %v1235
        %v1276 = vpack.c.b16 %v1261, %v1260
        %v1277 = vpack.c.b16 %v1263, %v1262
        %v1278 = vpack.c.b16 %v1265, %v1264
        %v1279 = vpack.c.b16 %v1267, %v1266
        %v1280 = vpack.c.b16 %v1269, %v1268
        %v1281 = vpack.c.b16 %v1271, %v1270
        %v1282 = vpack.c.b16 %v1273, %v1272
        %v1283 = vpack.c.b16 %v1275, %v1274
        %1292 = vmatprep.subr.bf16.mxu0 0
        %1293 = vmatpush1.bf16.msra.mxu0 %v1276
        %1294 = vmatprep.subr.bf16.mxu0 0
        %1295 = vmatpush1.bf16.msra.mxu0 %v1277
        %1296 = vmatprep.subr.bf16.mxu0 0
        %1297 = vmatpush1.bf16.msra.mxu0 %v1278
        %1298 = vmatprep.subr.bf16.mxu0 0
        %1299 = vmatpush1.bf16.msra.mxu0 %v1279
        %1300 = vmatprep.subr.bf16.mxu0 0
        %1301 = vmatpush1.bf16.msra.mxu0 %v1280
        %1302 = vmatprep.subr.bf16.mxu0 0
        %1303 = vmatpush1.bf16.msra.mxu0 %v1281
        %1304 = vmatprep.subr.bf16.mxu0 0
        %1305 = vmatpush1.bf16.msra.mxu0 %v1282
        %1306 = vmatprep.subr.bf16.mxu0 0
        %1307 = vmatpush1.bf16.msra.mxu0 %v1283
        %1308 = vmatprep.subr.bf16.mxu0 0
        %1309 = vmatpush1.bf16.msra.mxu0 0
        %1310 = vmatprep.subr.bf16.mxu0 0
        %1311 = vmatpush1.bf16.msra.mxu0 0
        %1312 = vmatprep.subr.bf16.mxu0 0
        %1313 = vmatpush1.bf16.msra.mxu0 0
        %1314 = vmatprep.subr.bf16.mxu0 0
        %1315 = vmatpush1.bf16.msra.mxu0 0
        %1316 = vmatprep.subr.bf16.mxu0 0
        %1317 = vmatpush1.bf16.msra.mxu0 0
        %1318 = vmatprep.subr.bf16.mxu0 0
        %1319 = vmatpush1.bf16.msra.mxu0 0
        %1320 = vmatprep.subr.bf16.mxu0 0
        %1321 = vmatpush1.bf16.msra.mxu0 0
        %1322 = vmatprep.subr.bf16.mxu0 0
        %1323 = vmatpush1.bf16.msra.mxu0 0
        %1324 = vmatprep.mubr.bf16.mxu0 0
        %1325 = vmatmul.mubr.bf16.gmra.mrb[0].mxu0 %v1215
        %v1326 = vpop.f32.mrb[0].mxu0
        %v1327 = vadd.f32 %v1242, %v1326
        %v1328 = vpop.f32.mrb[0].mxu0
        %v1329 = vpop.f32.mrb[0].mxu0
        %v1330 = vadd.f32 %v1242, %v1329
        %v1331 = vpop.f32.mrb[0].mxu0
        %1332 = vmatprep.mubr.bf16.mxu0 0
        %1333 = vmatmul.mubr.bf16.gmra.mrb[0].mxu0 %v1216
        %v1334 = vpop.f32.mrb[0].mxu0
        %v1335 = vadd.f32 %v1242, %v1334
        %v1336 = vpop.f32.mrb[0].mxu0
        %v1337 = vpop.f32.mrb[0].mxu0
        %v1338 = vadd.f32 %v1242, %v1337
        %v1339 = vpop.f32.mrb[0].mxu0
        %1340 = vmatprep.mubr.bf16.mxu0 0
        %1341 = vmatmul.mubr.bf16.gmra.mrb[0].mxu0 %v1217
        %v1342 = vpop.f32.mrb[0].mxu0
        %v1343 = vadd.f32 %v1242, %v1342
        %v1344 = vpop.f32.mrb[0].mxu0
        %v1345 = vpop.f32.mrb[0].mxu0
        %v1346 = vadd.f32 %v1242, %v1345
        %v1347 = vpop.f32.mrb[0].mxu0
        %1348 = vmatprep.mubr.bf16.mxu0 0
        %1349 = vmatmul.mubr.bf16.gmra.mrb[0].mxu0 %v1218
        %v1350 = vpop.f32.mrb[0].mxu0
        %v1351 = vadd.f32 %v1242, %v1350
        %v1352 = vpop.f32.mrb[0].mxu0
        %v1353 = vpop.f32.mrb[0].mxu0
        %v1354 = vadd.f32 %v1242, %v1353
        %v1355 = vpop.f32.mrb[0].mxu0
        %1356 = vdwg.mxu0
        %v1357 = vmax.f32 %v1327, 0.0
        %v1358 = vmax.f32 %v1330, 0.0
        %v1359 = vmax.f32 %v1335, 0.0
        %v1360 = vmax.f32 %v1338, 0.0
        %v1361 = vmax.f32 %v1343, 0.0
        %v1362 = vmax.f32 %v1346, 0.0
        %v1363 = vmax.f32 %v1351, 0.0
        %v1364 = vmax.f32 %v1354, 0.0
        %v1365 = vpack.c.bf16 %v1358, %v1357
        %v1366 = vpack.c.bf16 %v1360, %v1359
        %v1367 = vpack.c.bf16 %v1362, %v1361
        %v1368 = vpack.c.bf16 %v1364, %v1363
        %s1369 = scalar_lea.vmem [#allocation7], 64
        %v1370 = vld [vmem:[%s1369] sm:$0xf]
        %v1371 = vld [vmem:[%s1369 + $0x4] sm:$0xf]
        %v1372 = vld [vmem:[%s1369 + $0x8] sm:$0xf]
        %v1373 = vld [vmem:[%s1369 + $0xc] sm:$0xf]
        %v1374 = vld [vmem:[%s1369 + $0x10] sm:$0xf]
        %v1375 = vld [vmem:[%s1369 + $0x14] sm:$0xf]
        %v1376 = vld [vmem:[%s1369 + $0x18] sm:$0xf]
        %v1377 = vld [vmem:[%s1369 + $0x1c] sm:$0xf]
        %v1378 = vld [vmem:[%s1369 + $0x20] sm:$0xf]
        %v1379 = vld [vmem:[%s1369 + $0x24] sm:$0xf]
        %v1380 = vld [vmem:[%s1369 + $0x28] sm:$0xf]
        %v1381 = vld [vmem:[%s1369 + $0x2c] sm:$0xf]
        %v1382 = vld [vmem:[%s1369 + $0x30] sm:$0xf]
        %v1383 = vld [vmem:[%s1369 + $0x34] sm:$0xf]
        %v1384 = vld [vmem:[%s1369 + $0x38] sm:$0xf]
        %v1385 = vld [vmem:[%s1369 + $0x3c] sm:$0xf]
        %s1386 = scalar_lea.vmem %s4, 1
        %v1387 = vld [vmem:[%s1386] sm:$0x1]
        %v1389 = vlaneseq
        %v1390 = vshrl.u32 %v1389, 7
        %v1391 = vsub.s32 0, %v1390
        %v1392 = vrot.slane %v1387, %v1391
        %v1410 = vunpack.c.l.b16 %v1370
        %v1411 = vunpack.c.l.b16 %v1371
        %v1412 = vunpack.c.l.b16 %v1372
        %v1413 = vunpack.c.l.b16 %v1373
        %v1414 = vunpack.c.l.b16 %v1374
        %v1415 = vunpack.c.l.b16 %v1375
        %v1416 = vunpack.c.l.b16 %v1376
        %v1417 = vunpack.c.l.b16 %v1377
        %v1418 = vunpack.c.l.b16 %v1378
        %v1419 = vunpack.c.l.b16 %v1379
        %v1420 = vunpack.c.l.b16 %v1380
        %v1421 = vunpack.c.l.b16 %v1381
        %v1422 = vunpack.c.l.b16 %v1382
        %v1423 = vunpack.c.l.b16 %v1383
        %v1424 = vunpack.c.l.b16 %v1384
        %v1425 = vunpack.c.l.b16 %v1385
        %v1426 = vpack.c.b16 %v1411, %v1410
        %v1427 = vpack.c.b16 %v1413, %v1412
        %v1428 = vpack.c.b16 %v1415, %v1414
        %v1429 = vpack.c.b16 %v1417, %v1416
        %v1430 = vpack.c.b16 %v1419, %v1418
        %v1431 = vpack.c.b16 %v1421, %v1420
        %v1432 = vpack.c.b16 %v1423, %v1422
        %v1433 = vpack.c.b16 %v1425, %v1424
        %1442 = vmatprep.subr.bf16.mxu0 0
        %1443 = vmatpush1.bf16.msra.mxu0 %v1426
        %1444 = vmatprep.subr.bf16.mxu0 0
        %1445 = vmatpush1.bf16.msra.mxu0 %v1427
        %1446 = vmatprep.subr.bf16.mxu0 0
        %1447 = vmatpush1.bf16.msra.mxu0 %v1428
        %1448 = vmatprep.subr.bf16.mxu0 0
        %1449 = vmatpush1.bf16.msra.mxu0 %v1429
        %1450 = vmatprep.subr.bf16.mxu0 0
        %1451 = vmatpush1.bf16.msra.mxu0 %v1430
        %1452 = vmatprep.subr.bf16.mxu0 0
        %1453 = vmatpush1.bf16.msra.mxu0 %v1431
        %1454 = vmatprep.subr.bf16.mxu0 0
        %1455 = vmatpush1.bf16.msra.mxu0 %v1432
        %1456 = vmatprep.subr.bf16.mxu0 0
        %1457 = vmatpush1.bf16.msra.mxu0 %v1433
        %1458 = vmatprep.subr.bf16.mxu0 0
        %1459 = vmatpush1.bf16.msra.mxu0 0
        %1460 = vmatprep.subr.bf16.mxu0 0
        %1461 = vmatpush1.bf16.msra.mxu0 0
        %1462 = vmatprep.subr.bf16.mxu0 0
        %1463 = vmatpush1.bf16.msra.mxu0 0
        %1464 = vmatprep.subr.bf16.mxu0 0
        %1465 = vmatpush1.bf16.msra.mxu0 0
        %1466 = vmatprep.subr.bf16.mxu0 0
        %1467 = vmatpush1.bf16.msra.mxu0 0
        %1468 = vmatprep.subr.bf16.mxu0 0
        %1469 = vmatpush1.bf16.msra.mxu0 0
        %1470 = vmatprep.subr.bf16.mxu0 0
        %1471 = vmatpush1.bf16.msra.mxu0 0
        %1472 = vmatprep.subr.bf16.mxu0 0
        %1473 = vmatpush1.bf16.msra.mxu0 0
        %1474 = vmatprep.mubr.bf16.mxu0 0
        %1475 = vmatmul.mubr.bf16.gmra.mrb[0].mxu0 %v1365
        %v1476 = vpop.f32.mrb[0].mxu0
        %v1477 = vadd.f32 %v1392, %v1476
        %v1478 = vpop.f32.mrb[0].mxu0
        %v1479 = vpop.f32.mrb[0].mxu0
        %v1480 = vadd.f32 %v1392, %v1479
        %v1481 = vpop.f32.mrb[0].mxu0
        %1482 = vmatprep.mubr.bf16.mxu0 0
        %1483 = vmatmul.mubr.bf16.gmra.mrb[0].mxu0 %v1366
        %v1484 = vpop.f32.mrb[0].mxu0
        %v1485 = vadd.f32 %v1392, %v1484
        %v1486 = vpop.f32.mrb[0].mxu0
        %v1487 = vpop.f32.mrb[0].mxu0
        %v1488 = vadd.f32 %v1392, %v1487
        %v1489 = vpop.f32.mrb[0].mxu0
        %1490 = vmatprep.mubr.bf16.mxu0 0
        %1491 = vmatmul.mubr.bf16.gmra.mrb[0].mxu0 %v1367
        %v1492 = vpop.f32.mrb[0].mxu0
        %v1493 = vadd.f32 %v1392, %v1492
        %v1494 = vpop.f32.mrb[0].mxu0
        %v1495 = vpop.f32.mrb[0].mxu0
        %v1496 = vadd.f32 %v1392, %v1495
        %v1497 = vpop.f32.mrb[0].mxu0
        %1498 = vmatprep.mubr.bf16.mxu0 0
        %1499 = vmatmul.mubr.bf16.gmra.mrb[0].mxu0 %v1368
        %v1500 = vpop.f32.mrb[0].mxu0
        %v1501 = vadd.f32 %v1392, %v1500
        %v1502 = vpop.f32.mrb[0].mxu0
        %v1503 = vpop.f32.mrb[0].mxu0
        %v1504 = vadd.f32 %v1392, %v1503
        %v1505 = vpop.f32.mrb[0].mxu0
        %1506 = vdwg.mxu0
        %v1507 = vmax.f32 %v1477, 0.0
        %v1508 = vmax.f32 %v1480, 0.0
        %v1509 = vmax.f32 %v1485, 0.0
        %v1510 = vmax.f32 %v1488, 0.0
        %v1511 = vmax.f32 %v1493, 0.0
        %v1512 = vmax.f32 %v1496, 0.0
        %v1513 = vmax.f32 %v1501, 0.0
        %v1514 = vmax.f32 %v1504, 0.0
        %v1515 = vpack.c.bf16 %v1508, %v1507
        %v1516 = vpack.c.bf16 %v1510, %v1509
        %v1517 = vpack.c.bf16 %v1512, %v1511
        %v1518 = vpack.c.bf16 %v1514, %v1513
        %s1519 = scalar_lea.vmem [#allocation8], 64
        %v1520 = vld [vmem:[%s1519] sm:$0xf]
        %v1521 = vld [vmem:[%s1519 + $0x4] sm:$0xf]
        %v1522 = vld [vmem:[%s1519 + $0x8] sm:$0xf]
        %v1523 = vld [vmem:[%s1519 + $0xc] sm:$0xf]
        %v1524 = vld [vmem:[%s1519 + $0x10] sm:$0xf]
        %v1525 = vld [vmem:[%s1519 + $0x14] sm:$0xf]
        %v1526 = vld [vmem:[%s1519 + $0x18] sm:$0xf]
        %v1527 = vld [vmem:[%s1519 + $0x1c] sm:$0xf]
        %v1528 = vld [vmem:[%s1519 + $0x20] sm:$0xf]
        %v1529 = vld [vmem:[%s1519 + $0x24] sm:$0xf]
        %v1530 = vld [vmem:[%s1519 + $0x28] sm:$0xf]
        %v1531 = vld [vmem:[%s1519 + $0x2c] sm:$0xf]
        %v1532 = vld [vmem:[%s1519 + $0x30] sm:$0xf]
        %v1533 = vld [vmem:[%s1519 + $0x34] sm:$0xf]
        %v1534 = vld [vmem:[%s1519 + $0x38] sm:$0xf]
        %v1535 = vld [vmem:[%s1519 + $0x3c] sm:$0xf]
        %s1536 = scalar_lea.vmem %s6, 1
        %v1537 = vld [vmem:[%s1536] sm:$0x1]
        %v1539 = vlaneseq
        %v1540 = vshrl.u32 %v1539, 7
        %v1541 = vsub.s32 0, %v1540
        %v1542 = vrot.slane %v1537, %v1541
        %v1560 = vunpack.c.l.b16 %v1520
        %v1561 = vunpack.c.l.b16 %v1521
        %v1562 = vunpack.c.l.b16 %v1522
        %v1563 = vunpack.c.l.b16 %v1523
        %v1564 = vunpack.c.l.b16 %v1524
        %v1565 = vunpack.c.l.b16 %v1525
        %v1566 = vunpack.c.l.b16 %v1526
        %v1567 = vunpack.c.l.b16 %v1527
        %v1568 = vunpack.c.l.b16 %v1528
        %v1569 = vunpack.c.l.b16 %v1529
        %v1570 = vunpack.c.l.b16 %v1530
        %v1571 = vunpack.c.l.b16 %v1531
        %v1572 = vunpack.c.l.b16 %v1532
        %v1573 = vunpack.c.l.b16 %v1533
        %v1574 = vunpack.c.l.b16 %v1534
        %v1575 = vunpack.c.l.b16 %v1535
        %v1576 = vpack.c.b16 %v1561, %v1560
        %v1577 = vpack.c.b16 %v1563, %v1562
        %v1578 = vpack.c.b16 %v1565, %v1564
        %v1579 = vpack.c.b16 %v1567, %v1566
        %v1580 = vpack.c.b16 %v1569, %v1568
        %v1581 = vpack.c.b16 %v1571, %v1570
        %v1582 = vpack.c.b16 %v1573, %v1572
        %v1583 = vpack.c.b16 %v1575, %v1574
        %1592 = vmatprep.subr.bf16.mxu0 0
        %1593 = vmatpush1.bf16.msra.mxu0 %v1576
        %1594 = vmatprep.subr.bf16.mxu0 0
        %1595 = vmatpush1.bf16.msra.mxu0 %v1577
        %1596 = vmatprep.subr.bf16.mxu0 0
        %1597 = vmatpush1.bf16.msra.mxu0 %v1578
        %1598 = vmatprep.subr.bf16.mxu0 0
        %1599 = vmatpush1.bf16.msra.mxu0 %v1579
        %1600 = vmatprep.subr.bf16.mxu0 0
        %1601 = vmatpush1.bf16.msra.mxu0 %v1580
        %1602 = vmatprep.subr.bf16.mxu0 0
        %1603 = vmatpush1.bf16.msra.mxu0 %v1581
        %1604 = vmatprep.subr.bf16.mxu0 0
        %1605 = vmatpush1.bf16.msra.mxu0 %v1582
        %1606 = vmatprep.subr.bf16.mxu0 0
        %1607 = vmatpush1.bf16.msra.mxu0 %v1583
        %1608 = vmatprep.subr.bf16.mxu0 0
        %1609 = vmatpush1.bf16.msra.mxu0 0
        %1610 = vmatprep.subr.bf16.mxu0 0
        %1611 = vmatpush1.bf16.msra.mxu0 0
        %1612 = vmatprep.subr.bf16.mxu0 0
        %1613 = vmatpush1.bf16.msra.mxu0 0
        %1614 = vmatprep.subr.bf16.mxu0 0
        %1615 = vmatpush1.bf16.msra.mxu0 0
        %1616 = vmatprep.subr.bf16.mxu0 0
        %1617 = vmatpush1.bf16.msra.mxu0 0
        %1618 = vmatprep.subr.bf16.mxu0 0
        %1619 = vmatpush1.bf16.msra.mxu0 0
        %1620 = vmatprep.subr.bf16.mxu0 0
        %1621 = vmatpush1.bf16.msra.mxu0 0
        %1622 = vmatprep.subr.bf16.mxu0 0
        %1623 = vmatpush1.bf16.msra.mxu0 0
        %1624 = vmatprep.mubr.bf16.mxu0 0
        %1625 = vmatmul.mubr.bf16.gmra.mrb[0].mxu0 %v1515
        %v1626 = vpop.f32.mrb[0].mxu0
        %v1627 = vadd.f32 %v1542, %v1626
        %v1628 = vpop.f32.mrb[0].mxu0
        %v1629 = vpop.f32.mrb[0].mxu0
        %v1630 = vadd.f32 %v1542, %v1629
        %v1631 = vpop.f32.mrb[0].mxu0
        %1632 = vmatprep.mubr.bf16.mxu0 0
        %1633 = vmatmul.mubr.bf16.gmra.mrb[0].mxu0 %v1516
        %v1634 = vpop.f32.mrb[0].mxu0
        %v1635 = vadd.f32 %v1542, %v1634
        %v1636 = vpop.f32.mrb[0].mxu0
        %v1637 = vpop.f32.mrb[0].mxu0
        %v1638 = vadd.f32 %v1542, %v1637
        %v1639 = vpop.f32.mrb[0].mxu0
        %1640 = vmatprep.mubr.bf16.mxu0 0
        %1641 = vmatmul.mubr.bf16.gmra.mrb[0].mxu0 %v1517
        %v1642 = vpop.f32.mrb[0].mxu0
        %v1643 = vadd.f32 %v1542, %v1642
        %v1644 = vpop.f32.mrb[0].mxu0
        %v1645 = vpop.f32.mrb[0].mxu0
        %v1646 = vadd.f32 %v1542, %v1645
        %v1647 = vpop.f32.mrb[0].mxu0
        %1648 = vmatprep.mubr.bf16.mxu0 0
        %1649 = vmatmul.mubr.bf16.gmra.mrb[0].mxu0 %v1518
        %v1650 = vpop.f32.mrb[0].mxu0
        %v1651 = vadd.f32 %v1542, %v1650
        %v1652 = vpop.f32.mrb[0].mxu0
        %v1653 = vpop.f32.mrb[0].mxu0
        %v1654 = vadd.f32 %v1542, %v1653
        %v1655 = vpop.f32.mrb[0].mxu0
        %1656 = vdwg.mxu0
        %s1657 = scalar_lea.vmem [#allocation10], 64
        %v1658 = vld [vmem:[%s1657] sm:$0xf]
        %v1659 = vld [vmem:[%s1657 + $0x4] sm:$0xf]
        %v1660 = vld [vmem:[%s1657 + $0x8] sm:$0xf]
        %v1661 = vld [vmem:[%s1657 + $0xc] sm:$0xf]
        %v1662 = vld [vmem:[%s1657 + $0x10] sm:$0xf]
        %v1663 = vld [vmem:[%s1657 + $0x14] sm:$0xf]
        %v1664 = vld [vmem:[%s1657 + $0x18] sm:$0xf]
        %v1665 = vld [vmem:[%s1657 + $0x1c] sm:$0xf]
        %v1666 = vld [vmem:[%s1657 + $0x20] sm:$0xf]
        %v1667 = vld [vmem:[%s1657 + $0x24] sm:$0xf]
        %v1668 = vld [vmem:[%s1657 + $0x28] sm:$0xf]
        %v1669 = vld [vmem:[%s1657 + $0x2c] sm:$0xf]
        %v1670 = vld [vmem:[%s1657 + $0x30] sm:$0xf]
        %v1671 = vld [vmem:[%s1657 + $0x34] sm:$0xf]
        %v1672 = vld [vmem:[%s1657 + $0x38] sm:$0xf]
        %v1673 = vld [vmem:[%s1657 + $0x3c] sm:$0xf]
        %s1674 = scalar_lea.vmem %s8, 1
        %v1675 = vld [vmem:[%s1674] sm:$0x1]
        %v1677 = vlaneseq
        %v1678 = vshrl.u32 %v1677, 7
        %v1679 = vsub.s32 0, %v1678
        %v1680 = vrot.slane %v1675, %v1679
        %v1698 = vunpack.c.l.b16 %v1658
        %v1699 = vunpack.c.l.b16 %v1659
        %v1700 = vunpack.c.l.b16 %v1660
        %v1701 = vunpack.c.l.b16 %v1661
        %v1702 = vunpack.c.l.b16 %v1662
        %v1703 = vunpack.c.l.b16 %v1663
        %v1704 = vunpack.c.l.b16 %v1664
        %v1705 = vunpack.c.l.b16 %v1665
        %v1706 = vunpack.c.l.b16 %v1666
        %v1707 = vunpack.c.l.b16 %v1667
        %v1708 = vunpack.c.l.b16 %v1668
        %v1709 = vunpack.c.l.b16 %v1669
        %v1710 = vunpack.c.l.b16 %v1670
        %v1711 = vunpack.c.l.b16 %v1671
        %v1712 = vunpack.c.l.b16 %v1672
        %v1713 = vunpack.c.l.b16 %v1673
        %v1714 = vpack.c.b16 %v1699, %v1698
        %v1715 = vpack.c.b16 %v1701, %v1700
        %v1716 = vpack.c.b16 %v1703, %v1702
        %v1717 = vpack.c.b16 %v1705, %v1704
        %v1718 = vpack.c.b16 %v1707, %v1706
        %v1719 = vpack.c.b16 %v1709, %v1708
        %v1720 = vpack.c.b16 %v1711, %v1710
        %v1721 = vpack.c.b16 %v1713, %v1712
        %1730 = vmatprep.subr.bf16.mxu0 0
        %1731 = vmatpush1.bf16.msra.mxu0 %v1714
        %1732 = vmatprep.subr.bf16.mxu0 0
        %1733 = vmatpush1.bf16.msra.mxu0 %v1715
        %1734 = vmatprep.subr.bf16.mxu0 0
        %1735 = vmatpush1.bf16.msra.mxu0 %v1716
        %1736 = vmatprep.subr.bf16.mxu0 0
        %1737 = vmatpush1.bf16.msra.mxu0 %v1717
        %1738 = vmatprep.subr.bf16.mxu0 0
        %1739 = vmatpush1.bf16.msra.mxu0 %v1718
        %1740 = vmatprep.subr.bf16.mxu0 0
        %1741 = vmatpush1.bf16.msra.mxu0 %v1719
        %1742 = vmatprep.subr.bf16.mxu0 0
        %1743 = vmatpush1.bf16.msra.mxu0 %v1720
        %1744 = vmatprep.subr.bf16.mxu0 0
        %1745 = vmatpush1.bf16.msra.mxu0 %v1721
        %1746 = vmatprep.subr.bf16.mxu0 0
        %1747 = vmatpush1.bf16.msra.mxu0 0
        %1748 = vmatprep.subr.bf16.mxu0 0
        %1749 = vmatpush1.bf16.msra.mxu0 0
        %1750 = vmatprep.subr.bf16.mxu0 0
        %1751 = vmatpush1.bf16.msra.mxu0 0
        %1752 = vmatprep.subr.bf16.mxu0 0
        %1753 = vmatpush1.bf16.msra.mxu0 0
        %1754 = vmatprep.subr.bf16.mxu0 0
        %1755 = vmatpush1.bf16.msra.mxu0 0
        %1756 = vmatprep.subr.bf16.mxu0 0
        %1757 = vmatpush1.bf16.msra.mxu0 0
        %1758 = vmatprep.subr.bf16.mxu0 0
        %1759 = vmatpush1.bf16.msra.mxu0 0
        %1760 = vmatprep.subr.bf16.mxu0 0
        %1761 = vmatpush1.bf16.msra.mxu0 0
        %1762 = vmatprep.mubr.bf16.mxu0 0
        %1763 = vmatmul.mubr.bf16.gmra.mrb[0].mxu0 %v1515
        %v1764 = vpop.f32.mrb[0].mxu0
        %v1765 = vadd.f32 %v1680, %v1764
        %v1766 = vpop.f32.mrb[0].mxu0
        %v1767 = vpop.f32.mrb[0].mxu0
        %v1768 = vadd.f32 %v1680, %v1767
        %v1769 = vpop.f32.mrb[0].mxu0
        %1770 = vmatprep.mubr.bf16.mxu0 0
        %1771 = vmatmul.mubr.bf16.gmra.mrb[0].mxu0 %v1516
        %v1772 = vpop.f32.mrb[0].mxu0
        %v1773 = vadd.f32 %v1680, %v1772
        %v1774 = vpop.f32.mrb[0].mxu0
        %v1775 = vpop.f32.mrb[0].mxu0
        %v1776 = vadd.f32 %v1680, %v1775
        %v1777 = vpop.f32.mrb[0].mxu0
        %1778 = vmatprep.mubr.bf16.mxu0 0
        %1779 = vmatmul.mubr.bf16.gmra.mrb[0].mxu0 %v1517
        %v1780 = vpop.f32.mrb[0].mxu0
        %v1781 = vadd.f32 %v1680, %v1780
        %v1782 = vpop.f32.mrb[0].mxu0
        %v1783 = vpop.f32.mrb[0].mxu0
        %v1784 = vadd.f32 %v1680, %v1783
        %v1785 = vpop.f32.mrb[0].mxu0
        %1786 = vmatprep.mubr.bf16.mxu0 0
        %1787 = vmatmul.mubr.bf16.gmra.mrb[0].mxu0 %v1518
        %v1788 = vpop.f32.mrb[0].mxu0
        %v1789 = vadd.f32 %v1680, %v1788
        %v1790 = vpop.f32.mrb[0].mxu0
        %v1791 = vpop.f32.mrb[0].mxu0
        %v1792 = vadd.f32 %v1680, %v1791
        %v1793 = vpop.f32.mrb[0].mxu0
        %1794 = vdwg.mxu0
        %v1795 = vtanh.pop %v1627
        %v1796 = vtanh.pop %v1630
        %v1797 = vtanh.pop %v1635
        %v1798 = vtanh.pop %v1638
        %v1799 = vtanh.pop %v1643
        %v1800 = vtanh.pop %v1646
        %v1801 = vtanh.pop %v1651
        %v1802 = vtanh.pop %v1654
        %v1803 = vmul.f32 %v1795, 0.1
        %v1804 = vmul.f32 %v1796, 0.1
        %v1805 = vmul.f32 %v1797, 0.1
        %v1806 = vmul.f32 %v1798, 0.1
        %v1807 = vmul.f32 %v1799, 0.1
        %v1808 = vmul.f32 %v1800, 0.1
        %v1809 = vmul.f32 %v1801, 0.1
        %v1810 = vmul.f32 %v1802, 0.1
        %v1811 = vmul.f32 %v1803, 1.442695
        %v1812 = vpow.pop %v1811
        %v1813 = vmul.f32 %v1804, 1.442695
        %v1814 = vpow.pop %v1813
        %v1815 = vmul.f32 %v1805, 1.442695
        %v1816 = vpow.pop %v1815
        %v1817 = vmul.f32 %v1806, 1.442695
        %v1818 = vpow.pop %v1817
        %v1819 = vmul.f32 %v1807, 1.442695
        %v1820 = vpow.pop %v1819
        %v1821 = vmul.f32 %v1808, 1.442695
        %v1822 = vpow.pop %v1821
        %v1823 = vmul.f32 %v1809, 1.442695
        %v1824 = vpow.pop %v1823
        %v1825 = vmul.f32 %v1810, 1.442695
        %v1826 = vpow.pop %v1825
        %v1827 = vmul.f32 %v579, %v1812
        %v1828 = vmul.f32 %v581, %v1814
        %v1829 = vmul.f32 %v583, %v1816
        %v1830 = vmul.f32 %v585, %v1818
        %v1831 = vmul.f32 %v587, %v1820
        %v1832 = vmul.f32 %v589, %v1822
        %v1833 = vmul.f32 %v591, %v1824
        %v1834 = vmul.f32 %v593, %v1826
        %v1835 = vadd.f32 %v1827, %v1765
        %v1836 = vadd.f32 %v1828, %v1768
        %v1837 = vadd.f32 %v1829, %v1773
        %v1838 = vadd.f32 %v1830, %v1776
        %v1839 = vadd.f32 %v1831, %v1781
        %v1840 = vadd.f32 %v1832, %v1784
        %v1841 = vadd.f32 %v1833, %v1789
        %v1842 = vadd.f32 %v1834, %v1792
        %v1843 = vld [vmem:[#allocation11] sm:$0xff]
        %v1844 = vld [vmem:[#allocation11 + $0x8] sm:$0xff]
        %v1845 = vld [vmem:[#allocation11 + $0x10] sm:$0xff]
        %v1846 = vld [vmem:[#allocation11 + $0x18] sm:$0xff]
        %v1847 = vld [vmem:[#allocation11 + $0x20] sm:$0xff]
        %v1848 = vld [vmem:[#allocation11 + $0x28] sm:$0xff]
        %v1849 = vld [vmem:[#allocation11 + $0x30] sm:$0xff]
        %v1850 = vld [vmem:[#allocation11 + $0x38] sm:$0xff]
        %v1851 = vld [vmem:[#allocation11 + $0x40] sm:$0xff]
        %v1852 = vld [vmem:[#allocation11 + $0x48] sm:$0xff]
        %v1853 = vld [vmem:[#allocation11 + $0x50] sm:$0xff]
        %v1854 = vld [vmem:[#allocation11 + $0x58] sm:$0xff]
        %v1855 = vld [vmem:[#allocation11 + $0x60] sm:$0xff]
        %v1856 = vld [vmem:[#allocation11 + $0x68] sm:$0xff]
        %v1857 = vld [vmem:[#allocation11 + $0x70] sm:$0xff]
        %v1858 = vld [vmem:[#allocation11 + $0x78] sm:$0xff]
        %v1859 = vld [vmem:[#allocation14] sm:$0xff]
        %v1860 = vld [vmem:[#allocation14 + $0x8] sm:$0xff]
        %v1861 = vld [vmem:[#allocation14 + $0x10] sm:$0xff]
        %v1862 = vld [vmem:[#allocation14 + $0x18] sm:$0xff]
        %v1863 = vld [vmem:[#allocation14 + $0x20] sm:$0xff]
        %v1864 = vld [vmem:[#allocation14 + $0x28] sm:$0xff]
        %v1865 = vld [vmem:[#allocation14 + $0x30] sm:$0xff]
        %v1866 = vld [vmem:[#allocation14 + $0x38] sm:$0xff]
        %v1867 = vld [vmem:[#allocation14 + $0x40] sm:$0xff]
        %v1868 = vld [vmem:[#allocation14 + $0x48] sm:$0xff]
        %v1869 = vld [vmem:[#allocation14 + $0x50] sm:$0xff]
        %v1870 = vld [vmem:[#allocation14 + $0x58] sm:$0xff]
        %v1871 = vld [vmem:[#allocation14 + $0x60] sm:$0xff]
        %v1872 = vld [vmem:[#allocation14 + $0x68] sm:$0xff]
        %v1873 = vld [vmem:[#allocation14 + $0x70] sm:$0xff]
        %v1874 = vld [vmem:[#allocation14 + $0x78] sm:$0xff]
        %1875 = vmatprep.subr.mxu0 0.0
        %1876 = vmatpush1.msra.mxu0 %v1859
        %1877 = vmatprep.subr.mxu0 0.0
        %1878 = vmatpush1.msra.mxu0 %v1860
        %1879 = vmatprep.subr.mxu0 0.0
        %1880 = vmatpush1.msra.mxu0 %v1861
        %1881 = vmatprep.subr.mxu0 0.0
        %1882 = vmatpush1.msra.mxu0 %v1862
        %1883 = vmatprep.subr.mxu0 0.0
        %1884 = vmatpush1.msra.mxu0 %v1863
        %1885 = vmatprep.subr.mxu0 0.0
        %1886 = vmatpush1.msra.mxu0 %v1864
        %1887 = vmatprep.subr.mxu0 0.0
        %1888 = vmatpush1.msra.mxu0 %v1865
        %1889 = vmatprep.subr.mxu0 0.0
        %1890 = vmatpush1.msra.mxu0 %v1866
        %1891 = vmatprep.subr.mxu0 0.0
        %1892 = vmatpush1.msra.mxu0 %v1867
        %1893 = vmatprep.subr.mxu0 0.0
        %1894 = vmatpush1.msra.mxu0 %v1868
        %1895 = vmatprep.subr.mxu0 0.0
        %1896 = vmatpush1.msra.mxu0 %v1869
        %1897 = vmatprep.subr.mxu0 0.0
        %1898 = vmatpush1.msra.mxu0 %v1870
        %1899 = vmatprep.subr.mxu0 0.0
        %1900 = vmatpush1.msra.mxu0 %v1871
        %1901 = vmatprep.subr.mxu0 0.0
        %1902 = vmatpush1.msra.mxu0 %v1872
        %1903 = vmatprep.subr.mxu0 0.0
        %1904 = vmatpush1.msra.mxu0 %v1873
        %1905 = vmatprep.subr.mxu0 0.0
        %1906 = vmatpush1.msra.mxu0 %v1874
        %1907 = vmatprep.subr.mxu0 0.0
        %1908 = vmatpush1.msra.mxu0 0.0
        %1909 = vmatprep.subr.mxu0 0.0
        %1910 = vmatpush1.msra.mxu0 0.0
        %1911 = vmatprep.subr.mxu0 0.0
        %1912 = vmatpush1.msra.mxu0 0.0
        %1913 = vmatprep.subr.mxu0 0.0
        %1914 = vmatpush1.msra.mxu0 0.0
        %1915 = vmatprep.subr.mxu0 0.0
        %1916 = vmatpush1.msra.mxu0 0.0
        %1917 = vmatprep.subr.mxu0 0.0
        %1918 = vmatpush1.msra.mxu0 0.0
        %1919 = vmatprep.subr.mxu0 0.0
        %1920 = vmatpush1.msra.mxu0 0.0
        %1921 = vmatprep.subr.mxu0 0.0
        %1922 = vmatpush1.msra.mxu0 0.0
        %1923 = vmatprep.subr.mxu0 0.0
        %1924 = vmatpush1.msra.mxu0 0.0
        %1925 = vmatprep.subr.mxu0 0.0
        %1926 = vmatpush1.msra.mxu0 0.0
        %1927 = vmatprep.subr.mxu0 0.0
        %1928 = vmatpush1.msra.mxu0 0.0
        %1929 = vmatprep.subr.mxu0 0.0
        %1930 = vmatpush1.msra.mxu0 0.0
        %1931 = vmatprep.subr.mxu0 0.0
        %1932 = vmatpush1.msra.mxu0 0.0
        %1933 = vmatprep.subr.mxu0 0.0
        %1934 = vmatpush1.msra.mxu0 0.0
        %1935 = vmatprep.subr.mxu0 0.0
        %1936 = vmatpush1.msra.mxu0 0.0
        %1937 = vmatprep.subr.mxu0 0.0
        %1938 = vmatpush1.msra.mxu0 0.0
        %1939 = vmatprep.mubr.f32.mxu0 0.0
        %1940 = vmatmul.mubr.f32.gmra.mrb[0].mxu0 %v1207
        %v1941 = vpop.f32.mrb[0].mxu0
        %v1942 = vadd.f32 0.0, %v1941
        %v1943 = vpop.f32.mrb[0].mxu0
        %1944 = vmatprep.mubr.f32.mxu0 0.0
        %1945 = vmatmul.mubr.f32.gmra.mrb[0].mxu0 %v1208
        %v1946 = vpop.f32.mrb[0].mxu0
        %v1947 = vadd.f32 0.0, %v1946
        %v1948 = vpop.f32.mrb[0].mxu0
        %1949 = vmatprep.mubr.f32.mxu0 0.0
        %1950 = vmatmul.mubr.f32.gmra.mrb[0].mxu0 %v1209
        %v1951 = vpop.f32.mrb[0].mxu0
        %v1952 = vadd.f32 0.0, %v1951
        %v1953 = vpop.f32.mrb[0].mxu0
        %1954 = vmatprep.mubr.f32.mxu0 0.0
        %1955 = vmatmul.mubr.f32.gmra.mrb[0].mxu0 %v1210
        %v1956 = vpop.f32.mrb[0].mxu0
        %v1957 = vadd.f32 0.0, %v1956
        %v1958 = vpop.f32.mrb[0].mxu0
        %1959 = vmatprep.mubr.f32.mxu0 0.0
        %1960 = vmatmul.mubr.f32.gmra.mrb[0].mxu0 %v1211
        %v1961 = vpop.f32.mrb[0].mxu0
        %v1962 = vadd.f32 0.0, %v1961
        %v1963 = vpop.f32.mrb[0].mxu0
        %1964 = vmatprep.mubr.f32.mxu0 0.0
        %1965 = vmatmul.mubr.f32.gmra.mrb[0].mxu0 %v1212
        %v1966 = vpop.f32.mrb[0].mxu0
        %v1967 = vadd.f32 0.0, %v1966
        %v1968 = vpop.f32.mrb[0].mxu0
        %1969 = vmatprep.mubr.f32.mxu0 0.0
        %1970 = vmatmul.mubr.f32.gmra.mrb[0].mxu0 %v1213
        %v1971 = vpop.f32.mrb[0].mxu0
        %v1972 = vadd.f32 0.0, %v1971
        %v1973 = vpop.f32.mrb[0].mxu0
        %1974 = vmatprep.mubr.f32.mxu0 0.0
        %1975 = vmatmul.mubr.f32.gmra.mrb[0].mxu0 %v1214
        %v1976 = vpop.f32.mrb[0].mxu0
        %v1977 = vadd.f32 0.0, %v1976
        %v1978 = vpop.f32.mrb[0].mxu0
        %1979 = vdwg.mxu0
        %1980 = vmatprep.subr.mxu0 0.0
        %1981 = vmatpush1.msra.mxu0 %v1843
        %1982 = vmatprep.subr.mxu0 0.0
        %1983 = vmatpush1.msra.mxu0 %v1844
        %1984 = vmatprep.subr.mxu0 0.0
        %1985 = vmatpush1.msra.mxu0 %v1845
        %1986 = vmatprep.subr.mxu0 0.0
        %1987 = vmatpush1.msra.mxu0 %v1846
        %1988 = vmatprep.subr.mxu0 0.0
        %1989 = vmatpush1.msra.mxu0 %v1847
        %1990 = vmatprep.subr.mxu0 0.0
        %1991 = vmatpush1.msra.mxu0 %v1848
        %1992 = vmatprep.subr.mxu0 0.0
        %1993 = vmatpush1.msra.mxu0 %v1849
        %1994 = vmatprep.subr.mxu0 0.0
        %1995 = vmatpush1.msra.mxu0 %v1850
        %1996 = vmatprep.subr.mxu0 0.0
        %1997 = vmatpush1.msra.mxu0 %v1851
        %1998 = vmatprep.subr.mxu0 0.0
        %1999 = vmatpush1.msra.mxu0 %v1852
        %2000 = vmatprep.subr.mxu0 0.0
        %2001 = vmatpush1.msra.mxu0 %v1853
        %2002 = vmatprep.subr.mxu0 0.0
        %2003 = vmatpush1.msra.mxu0 %v1854
        %2004 = vmatprep.subr.mxu0 0.0
        %2005 = vmatpush1.msra.mxu0 %v1855
        %2006 = vmatprep.subr.mxu0 0.0
        %2007 = vmatpush1.msra.mxu0 %v1856
        %2008 = vmatprep.subr.mxu0 0.0
        %2009 = vmatpush1.msra.mxu0 %v1857
        %2010 = vmatprep.subr.mxu0 0.0
        %2011 = vmatpush1.msra.mxu0 %v1858
        %2012 = vmatprep.subr.mxu0 0.0
        %2013 = vmatpush1.msra.mxu0 0.0
        %2014 = vmatprep.subr.mxu0 0.0
        %2015 = vmatpush1.msra.mxu0 0.0
        %2016 = vmatprep.subr.mxu0 0.0
        %2017 = vmatpush1.msra.mxu0 0.0
        %2018 = vmatprep.subr.mxu0 0.0
        %2019 = vmatpush1.msra.mxu0 0.0
        %2020 = vmatprep.subr.mxu0 0.0
        %2021 = vmatpush1.msra.mxu0 0.0
        %2022 = vmatprep.subr.mxu0 0.0
        %2023 = vmatpush1.msra.mxu0 0.0
        %2024 = vmatprep.subr.mxu0 0.0
        %2025 = vmatpush1.msra.mxu0 0.0
        %2026 = vmatprep.subr.mxu0 0.0
        %2027 = vmatpush1.msra.mxu0 0.0
        %2028 = vmatprep.subr.mxu0 0.0
        %2029 = vmatpush1.msra.mxu0 0.0
        %2030 = vmatprep.subr.mxu0 0.0
        %2031 = vmatpush1.msra.mxu0 0.0
        %2032 = vmatprep.subr.mxu0 0.0
        %2033 = vmatpush1.msra.mxu0 0.0
        %2034 = vmatprep.subr.mxu0 0.0
        %2035 = vmatpush1.msra.mxu0 0.0
        %2036 = vmatprep.subr.mxu0 0.0
        %2037 = vmatpush1.msra.mxu0 0.0
        %2038 = vmatprep.subr.mxu0 0.0
        %2039 = vmatpush1.msra.mxu0 0.0
        %2040 = vmatprep.subr.mxu0 0.0
        %2041 = vmatpush1.msra.mxu0 0.0
        %2042 = vmatprep.subr.mxu0 0.0
        %2043 = vmatpush1.msra.mxu0 0.0
        %2044 = vmatprep.mubr.f32.mxu0 0.0
        %2045 = vmatmul.mubr.f32.gmra.mrb[0].mxu0 %v1835
        %v2046 = vpop.f32.mrb[0].mxu0
        %v2047 = vadd.f32 %v1942, %v2046
        %v2048 = vpop.f32.mrb[0].mxu0
        %2049 = vmatprep.mubr.f32.mxu0 0.0
        %2050 = vmatmul.mubr.f32.gmra.mrb[0].mxu0 %v1836
        %v2051 = vpop.f32.mrb[0].mxu0
        %v2052 = vadd.f32 %v1947, %v2051
        %v2053 = vpop.f32.mrb[0].mxu0
        %2054 = vmatprep.mubr.f32.mxu0 0.0
        %2055 = vmatmul.mubr.f32.gmra.mrb[0].mxu0 %v1837
        %v2056 = vpop.f32.mrb[0].mxu0
        %v2057 = vadd.f32 %v1952, %v2056
        %v2058 = vpop.f32.mrb[0].mxu0
        %2059 = vmatprep.mubr.f32.mxu0 0.0
        %2060 = vmatmul.mubr.f32.gmra.mrb[0].mxu0 %v1838
        %v2061 = vpop.f32.mrb[0].mxu0
        %v2062 = vadd.f32 %v1957, %v2061
        %v2063 = vpop.f32.mrb[0].mxu0
        %2064 = vmatprep.mubr.f32.mxu0 0.0
        %2065 = vmatmul.mubr.f32.gmra.mrb[0].mxu0 %v1839
        %v2066 = vpop.f32.mrb[0].mxu0
        %v2067 = vadd.f32 %v1962, %v2066
        %v2068 = vpop.f32.mrb[0].mxu0
        %2069 = vmatprep.mubr.f32.mxu0 0.0
        %2070 = vmatmul.mubr.f32.gmra.mrb[0].mxu0 %v1840
        %v2071 = vpop.f32.mrb[0].mxu0
        %v2072 = vadd.f32 %v1967, %v2071
        %v2073 = vpop.f32.mrb[0].mxu0
        %2074 = vmatprep.mubr.f32.mxu0 0.0
        %2075 = vmatmul.mubr.f32.gmra.mrb[0].mxu0 %v1841
        %v2076 = vpop.f32.mrb[0].mxu0
        %v2077 = vadd.f32 %v1972, %v2076
        %v2078 = vpop.f32.mrb[0].mxu0
        %2079 = vmatprep.mubr.f32.mxu0 0.0
        %2080 = vmatmul.mubr.f32.gmra.mrb[0].mxu0 %v1842
        %v2081 = vpop.f32.mrb[0].mxu0
        %v2082 = vadd.f32 %v1977, %v2081
        %v2083 = vpop.f32.mrb[0].mxu0
        %2084 = vdwg.mxu0
        %v2085 = vld [vmem:[#allocation13] sm:$0xff]
        %v2086 = vld [vmem:[#allocation13 + $0x8] sm:$0xff]
        %v2087 = vld [vmem:[#allocation13 + $0x10] sm:$0xff]
        %v2088 = vld [vmem:[#allocation13 + $0x18] sm:$0xff]
        %v2089 = vld [vmem:[#allocation13 + $0x20] sm:$0xff]
        %v2090 = vld [vmem:[#allocation13 + $0x28] sm:$0xff]
        %v2091 = vld [vmem:[#allocation13 + $0x30] sm:$0xff]
        %v2092 = vld [vmem:[#allocation13 + $0x38] sm:$0xff]
        %v2093 = vld [vmem:[#allocation13 + $0x40] sm:$0xff]
        %v2094 = vld [vmem:[#allocation13 + $0x48] sm:$0xff]
        %v2095 = vld [vmem:[#allocation13 + $0x50] sm:$0xff]
        %v2096 = vld [vmem:[#allocation13 + $0x58] sm:$0xff]
        %v2097 = vld [vmem:[#allocation13 + $0x60] sm:$0xff]
        %v2098 = vld [vmem:[#allocation13 + $0x68] sm:$0xff]
        %v2099 = vld [vmem:[#allocation13 + $0x70] sm:$0xff]
        %v2100 = vld [vmem:[#allocation13 + $0x78] sm:$0xff]
        %v2101 = vld [vmem:[#allocation16] sm:$0xff]
        %v2102 = vld [vmem:[#allocation16 + $0x8] sm:$0xff]
        %v2103 = vld [vmem:[#allocation16 + $0x10] sm:$0xff]
        %v2104 = vld [vmem:[#allocation16 + $0x18] sm:$0xff]
        %v2105 = vld [vmem:[#allocation16 + $0x20] sm:$0xff]
        %v2106 = vld [vmem:[#allocation16 + $0x28] sm:$0xff]
        %v2107 = vld [vmem:[#allocation16 + $0x30] sm:$0xff]
        %v2108 = vld [vmem:[#allocation16 + $0x38] sm:$0xff]
        %v2109 = vld [vmem:[#allocation16 + $0x40] sm:$0xff]
        %v2110 = vld [vmem:[#allocation16 + $0x48] sm:$0xff]
        %v2111 = vld [vmem:[#allocation16 + $0x50] sm:$0xff]
        %v2112 = vld [vmem:[#allocation16 + $0x58] sm:$0xff]
        %v2113 = vld [vmem:[#allocation16 + $0x60] sm:$0xff]
        %v2114 = vld [vmem:[#allocation16 + $0x68] sm:$0xff]
        %v2115 = vld [vmem:[#allocation16 + $0x70] sm:$0xff]
        %v2116 = vld [vmem:[#allocation16 + $0x78] sm:$0xff]
        %2117 = vmatprep.subr.mxu0 0.0
        %2118 = vmatpush1.msra.mxu0 %v2101
        %2119 = vmatprep.subr.mxu0 0.0
        %2120 = vmatpush1.msra.mxu0 %v2102
        %2121 = vmatprep.subr.mxu0 0.0
        %2122 = vmatpush1.msra.mxu0 %v2103
        %2123 = vmatprep.subr.mxu0 0.0
        %2124 = vmatpush1.msra.mxu0 %v2104
        %2125 = vmatprep.subr.mxu0 0.0
        %2126 = vmatpush1.msra.mxu0 %v2105
        %2127 = vmatprep.subr.mxu0 0.0
        %2128 = vmatpush1.msra.mxu0 %v2106
        %2129 = vmatprep.subr.mxu0 0.0
        %2130 = vmatpush1.msra.mxu0 %v2107
        %2131 = vmatprep.subr.mxu0 0.0
        %2132 = vmatpush1.msra.mxu0 %v2108
        %2133 = vmatprep.subr.mxu0 0.0
        %2134 = vmatpush1.msra.mxu0 %v2109
        %2135 = vmatprep.subr.mxu0 0.0
        %2136 = vmatpush1.msra.mxu0 %v2110
        %2137 = vmatprep.subr.mxu0 0.0
        %2138 = vmatpush1.msra.mxu0 %v2111
        %2139 = vmatprep.subr.mxu0 0.0
        %2140 = vmatpush1.msra.mxu0 %v2112
        %2141 = vmatprep.subr.mxu0 0.0
        %2142 = vmatpush1.msra.mxu0 %v2113
        %2143 = vmatprep.subr.mxu0 0.0
        %2144 = vmatpush1.msra.mxu0 %v2114
        %2145 = vmatprep.subr.mxu0 0.0
        %2146 = vmatpush1.msra.mxu0 %v2115
        %2147 = vmatprep.subr.mxu0 0.0
        %2148 = vmatpush1.msra.mxu0 %v2116
        %2149 = vmatprep.subr.mxu0 0.0
        %2150 = vmatpush1.msra.mxu0 0.0
        %2151 = vmatprep.subr.mxu0 0.0
        %2152 = vmatpush1.msra.mxu0 0.0
        %2153 = vmatprep.subr.mxu0 0.0
        %2154 = vmatpush1.msra.mxu0 0.0
        %2155 = vmatprep.subr.mxu0 0.0
        %2156 = vmatpush1.msra.mxu0 0.0
        %2157 = vmatprep.subr.mxu0 0.0
        %2158 = vmatpush1.msra.mxu0 0.0
        %2159 = vmatprep.subr.mxu0 0.0
        %2160 = vmatpush1.msra.mxu0 0.0
        %2161 = vmatprep.subr.mxu0 0.0
        %2162 = vmatpush1.msra.mxu0 0.0
        %2163 = vmatprep.subr.mxu0 0.0
        %2164 = vmatpush1.msra.mxu0 0.0
        %2165 = vmatprep.subr.mxu0 0.0
        %2166 = vmatpush1.msra.mxu0 0.0
        %2167 = vmatprep.subr.mxu0 0.0
        %2168 = vmatpush1.msra.mxu0 0.0
        %2169 = vmatprep.subr.mxu0 0.0
        %2170 = vmatpush1.msra.mxu0 0.0
        %2171 = vmatprep.subr.mxu0 0.0
        %2172 = vmatpush1.msra.mxu0 0.0
        %2173 = vmatprep.subr.mxu0 0.0
        %2174 = vmatpush1.msra.mxu0 0.0
        %2175 = vmatprep.subr.mxu0 0.0
        %2176 = vmatpush1.msra.mxu0 0.0
        %2177 = vmatprep.subr.mxu0 0.0
        %2178 = vmatpush1.msra.mxu0 0.0
        %2179 = vmatprep.subr.mxu0 0.0
        %2180 = vmatpush1.msra.mxu0 0.0
        %2181 = vmatprep.mubr.f32.mxu0 0.0
        %2182 = vmatmul.mubr.f32.gmra.mrb[0].mxu0 %v1207
        %v2183 = vpop.f32.mrb[0].mxu0
        %v2184 = vadd.f32 0.0, %v2183
        %v2185 = vpop.f32.mrb[0].mxu0
        %2186 = vmatprep.mubr.f32.mxu0 0.0
        %2187 = vmatmul.mubr.f32.gmra.mrb[0].mxu0 %v1208
        %v2188 = vpop.f32.mrb[0].mxu0
        %v2189 = vadd.f32 0.0, %v2188
        %v2190 = vpop.f32.mrb[0].mxu0
        %2191 = vmatprep.mubr.f32.mxu0 0.0
        %2192 = vmatmul.mubr.f32.gmra.mrb[0].mxu0 %v1209
        %v2193 = vpop.f32.mrb[0].mxu0
        %v2194 = vadd.f32 0.0, %v2193
        %v2195 = vpop.f32.mrb[0].mxu0
        %2196 = vmatprep.mubr.f32.mxu0 0.0
        %2197 = vmatmul.mubr.f32.gmra.mrb[0].mxu0 %v1210
        %v2198 = vpop.f32.mrb[0].mxu0
        %v2199 = vadd.f32 0.0, %v2198
        %v2200 = vpop.f32.mrb[0].mxu0
        %2201 = vmatprep.mubr.f32.mxu0 0.0
        %2202 = vmatmul.mubr.f32.gmra.mrb[0].mxu0 %v1211
        %v2203 = vpop.f32.mrb[0].mxu0
        %v2204 = vadd.f32 0.0, %v2203
        %v2205 = vpop.f32.mrb[0].mxu0
        %2206 = vmatprep.mubr.f32.mxu0 0.0
        %2207 = vmatmul.mubr.f32.gmra.mrb[0].mxu0 %v1212
        %v2208 = vpop.f32.mrb[0].mxu0
        %v2209 = vadd.f32 0.0, %v2208
        %v2210 = vpop.f32.mrb[0].mxu0
        %2211 = vmatprep.mubr.f32.mxu0 0.0
        %2212 = vmatmul.mubr.f32.gmra.mrb[0].mxu0 %v1213
        %v2213 = vpop.f32.mrb[0].mxu0
        %v2214 = vadd.f32 0.0, %v2213
        %v2215 = vpop.f32.mrb[0].mxu0
        %2216 = vmatprep.mubr.f32.mxu0 0.0
        %2217 = vmatmul.mubr.f32.gmra.mrb[0].mxu0 %v1214
        %v2218 = vpop.f32.mrb[0].mxu0
        %v2219 = vadd.f32 0.0, %v2218
        %v2220 = vpop.f32.mrb[0].mxu0
        %2221 = vdwg.mxu0
        %2222 = vmatprep.subr.mxu0 0.0
        %2223 = vmatpush1.msra.mxu0 %v2085
        %2224 = vmatprep.subr.mxu0 0.0
        %2225 = vmatpush1.msra.mxu0 %v2086
        %2226 = vmatprep.subr.mxu0 0.0
        %2227 = vmatpush1.msra.mxu0 %v2087
        %2228 = vmatprep.subr.mxu0 0.0
        %2229 = vmatpush1.msra.mxu0 %v2088
        %2230 = vmatprep.subr.mxu0 0.0
        %2231 = vmatpush1.msra.mxu0 %v2089
        %2232 = vmatprep.subr.mxu0 0.0
        %2233 = vmatpush1.msra.mxu0 %v2090
        %2234 = vmatprep.subr.mxu0 0.0
        %2235 = vmatpush1.msra.mxu0 %v2091
        %2236 = vmatprep.subr.mxu0 0.0
        %2237 = vmatpush1.msra.mxu0 %v2092
        %2238 = vmatprep.subr.mxu0 0.0
        %2239 = vmatpush1.msra.mxu0 %v2093
        %2240 = vmatprep.subr.mxu0 0.0
        %2241 = vmatpush1.msra.mxu0 %v2094
        %2242 = vmatprep.subr.mxu0 0.0
        %2243 = vmatpush1.msra.mxu0 %v2095
        %2244 = vmatprep.subr.mxu0 0.0
        %2245 = vmatpush1.msra.mxu0 %v2096
        %2246 = vmatprep.subr.mxu0 0.0
        %2247 = vmatpush1.msra.mxu0 %v2097
        %2248 = vmatprep.subr.mxu0 0.0
        %2249 = vmatpush1.msra.mxu0 %v2098
        %2250 = vmatprep.subr.mxu0 0.0
        %2251 = vmatpush1.msra.mxu0 %v2099
        %2252 = vmatprep.subr.mxu0 0.0
        %2253 = vmatpush1.msra.mxu0 %v2100
        %2254 = vmatprep.subr.mxu0 0.0
        %2255 = vmatpush1.msra.mxu0 0.0
        %2256 = vmatprep.subr.mxu0 0.0
        %2257 = vmatpush1.msra.mxu0 0.0
        %2258 = vmatprep.subr.mxu0 0.0
        %2259 = vmatpush1.msra.mxu0 0.0
        %2260 = vmatprep.subr.mxu0 0.0
        %2261 = vmatpush1.msra.mxu0 0.0
        %2262 = vmatprep.subr.mxu0 0.0
        %2263 = vmatpush1.msra.mxu0 0.0
        %2264 = vmatprep.subr.mxu0 0.0
        %2265 = vmatpush1.msra.mxu0 0.0
        %2266 = vmatprep.subr.mxu0 0.0
        %2267 = vmatpush1.msra.mxu0 0.0
        %2268 = vmatprep.subr.mxu0 0.0
        %2269 = vmatpush1.msra.mxu0 0.0
        %2270 = vmatprep.subr.mxu0 0.0
        %2271 = vmatpush1.msra.mxu0 0.0
        %2272 = vmatprep.subr.mxu0 0.0
        %2273 = vmatpush1.msra.mxu0 0.0
        %2274 = vmatprep.subr.mxu0 0.0
        %2275 = vmatpush1.msra.mxu0 0.0
        %2276 = vmatprep.subr.mxu0 0.0
        %2277 = vmatpush1.msra.mxu0 0.0
        %2278 = vmatprep.subr.mxu0 0.0
        %2279 = vmatpush1.msra.mxu0 0.0
        %2280 = vmatprep.subr.mxu0 0.0
        %2281 = vmatpush1.msra.mxu0 0.0
        %2282 = vmatprep.subr.mxu0 0.0
        %2283 = vmatpush1.msra.mxu0 0.0
        %2284 = vmatprep.subr.mxu0 0.0
        %2285 = vmatpush1.msra.mxu0 0.0
        %2286 = vmatprep.mubr.f32.mxu0 0.0
        %2287 = vmatmul.mubr.f32.gmra.mrb[0].mxu0 %v1835
        %v2288 = vpop.f32.mrb[0].mxu0
        %v2289 = vadd.f32 %v2184, %v2288
        %v2290 = vpop.f32.mrb[0].mxu0
        %2291 = vmatprep.mubr.f32.mxu0 0.0
        %2292 = vmatmul.mubr.f32.gmra.mrb[0].mxu0 %v1836
        %v2293 = vpop.f32.mrb[0].mxu0
        %v2294 = vadd.f32 %v2189, %v2293
        %v2295 = vpop.f32.mrb[0].mxu0
        %2296 = vmatprep.mubr.f32.mxu0 0.0
        %2297 = vmatmul.mubr.f32.gmra.mrb[0].mxu0 %v1837
        %v2298 = vpop.f32.mrb[0].mxu0
        %v2299 = vadd.f32 %v2194, %v2298
        %v2300 = vpop.f32.mrb[0].mxu0
        %2301 = vmatprep.mubr.f32.mxu0 0.0
        %2302 = vmatmul.mubr.f32.gmra.mrb[0].mxu0 %v1838
        %v2303 = vpop.f32.mrb[0].mxu0
        %v2304 = vadd.f32 %v2199, %v2303
        %v2305 = vpop.f32.mrb[0].mxu0
        %2306 = vmatprep.mubr.f32.mxu0 0.0
        %2307 = vmatmul.mubr.f32.gmra.mrb[0].mxu0 %v1839
        %v2308 = vpop.f32.mrb[0].mxu0
        %v2309 = vadd.f32 %v2204, %v2308
        %v2310 = vpop.f32.mrb[0].mxu0
        %2311 = vmatprep.mubr.f32.mxu0 0.0
        %2312 = vmatmul.mubr.f32.gmra.mrb[0].mxu0 %v1840
        %v2313 = vpop.f32.mrb[0].mxu0
        %v2314 = vadd.f32 %v2209, %v2313
        %v2315 = vpop.f32.mrb[0].mxu0
        %2316 = vmatprep.mubr.f32.mxu0 0.0
        %2317 = vmatmul.mubr.f32.gmra.mrb[0].mxu0 %v1841
        %v2318 = vpop.f32.mrb[0].mxu0
        %v2319 = vadd.f32 %v2214, %v2318
        %v2320 = vpop.f32.mrb[0].mxu0
        %2321 = vmatprep.mubr.f32.mxu0 0.0
        %2322 = vmatmul.mubr.f32.gmra.mrb[0].mxu0 %v1842
        %v2323 = vpop.f32.mrb[0].mxu0
        %v2324 = vadd.f32 %v2219, %v2323
        %v2325 = vpop.f32.mrb[0].mxu0
        %2326 = vdwg.mxu0
        %v2327 = vpack.c.bf16 %v2052, %v2047
        %v2328 = vpack.c.bf16 %v2062, %v2057
        %v2329 = vpack.c.bf16 %v2072, %v2067
        %v2330 = vpack.c.bf16 %v2082, %v2077
        %s2331 = scalar_lea.vmem [#allocation5], 128
        %v2332 = vld [vmem:[%s2331] sm:$0xf]
        %v2333 = vld [vmem:[%s2331 + $0x4] sm:$0xf]
        %v2334 = vld [vmem:[%s2331 + $0x8] sm:$0xf]
        %v2335 = vld [vmem:[%s2331 + $0xc] sm:$0xf]
        %v2336 = vld [vmem:[%s2331 + $0x10] sm:$0xf]
        %v2337 = vld [vmem:[%s2331 + $0x14] sm:$0xf]
        %v2338 = vld [vmem:[%s2331 + $0x18] sm:$0xf]
        %v2339 = vld [vmem:[%s2331 + $0x1c] sm:$0xf]
        %v2340 = vld [vmem:[%s2331 + $0x20] sm:$0xf]
        %v2341 = vld [vmem:[%s2331 + $0x24] sm:$0xf]
        %v2342 = vld [vmem:[%s2331 + $0x28] sm:$0xf]
        %v2343 = vld [vmem:[%s2331 + $0x2c] sm:$0xf]
        %v2344 = vld [vmem:[%s2331 + $0x30] sm:$0xf]
        %v2345 = vld [vmem:[%s2331 + $0x34] sm:$0xf]
        %v2346 = vld [vmem:[%s2331 + $0x38] sm:$0xf]
        %v2347 = vld [vmem:[%s2331 + $0x3c] sm:$0xf]
        %s2348 = scalar_lea.vmem %s2, 2
        %v2349 = vld [vmem:[%s2348] sm:$0x1]
        %v2351 = vlaneseq
        %v2352 = vshrl.u32 %v2351, 7
        %v2353 = vsub.s32 0, %v2352
        %v2354 = vrot.slane %v2349, %v2353
        %v2372 = vunpack.c.l.b16 %v2332
        %v2373 = vunpack.c.l.b16 %v2333
        %v2374 = vunpack.c.l.b16 %v2334
        %v2375 = vunpack.c.l.b16 %v2335
        %v2376 = vunpack.c.l.b16 %v2336
        %v2377 = vunpack.c.l.b16 %v2337
        %v2378 = vunpack.c.l.b16 %v2338
        %v2379 = vunpack.c.l.b16 %v2339
        %v2380 = vunpack.c.l.b16 %v2340
        %v2381 = vunpack.c.l.b16 %v2341
        %v2382 = vunpack.c.l.b16 %v2342
        %v2383 = vunpack.c.l.b16 %v2343
        %v2384 = vunpack.c.l.b16 %v2344
        %v2385 = vunpack.c.l.b16 %v2345
        %v2386 = vunpack.c.l.b16 %v2346
        %v2387 = vunpack.c.l.b16 %v2347
        %v2388 = vpack.c.b16 %v2373, %v2372
        %v2389 = vpack.c.b16 %v2375, %v2374
        %v2390 = vpack.c.b16 %v2377, %v2376
        %v2391 = vpack.c.b16 %v2379, %v2378
        %v2392 = vpack.c.b16 %v2381, %v2380
        %v2393 = vpack.c.b16 %v2383, %v2382
        %v2394 = vpack.c.b16 %v2385, %v2384
        %v2395 = vpack.c.b16 %v2387, %v2386
        %2404 = vmatprep.subr.bf16.mxu0 0
        %2405 = vmatpush1.bf16.msra.mxu0 %v2388
        %2406 = vmatprep.subr.bf16.mxu0 0
        %2407 = vmatpush1.bf16.msra.mxu0 %v2389
        %2408 = vmatprep.subr.bf16.mxu0 0
        %2409 = vmatpush1.bf16.msra.mxu0 %v2390
        %2410 = vmatprep.subr.bf16.mxu0 0
        %2411 = vmatpush1.bf16.msra.mxu0 %v2391
        %2412 = vmatprep.subr.bf16.mxu0 0
        %2413 = vmatpush1.bf16.msra.mxu0 %v2392
        %2414 = vmatprep.subr.bf16.mxu0 0
        %2415 = vmatpush1.bf16.msra.mxu0 %v2393
        %2416 = vmatprep.subr.bf16.mxu0 0
        %2417 = vmatpush1.bf16.msra.mxu0 %v2394
        %2418 = vmatprep.subr.bf16.mxu0 0
        %2419 = vmatpush1.bf16.msra.mxu0 %v2395
        %2420 = vmatprep.subr.bf16.mxu0 0
        %2421 = vmatpush1.bf16.msra.mxu0 0
        %2422 = vmatprep.subr.bf16.mxu0 0
        %2423 = vmatpush1.bf16.msra.mxu0 0
        %2424 = vmatprep.subr.bf16.mxu0 0
        %2425 = vmatpush1.bf16.msra.mxu0 0
        %2426 = vmatprep.subr.bf16.mxu0 0
        %2427 = vmatpush1.bf16.msra.mxu0 0
        %2428 = vmatprep.subr.bf16.mxu0 0
        %2429 = vmatpush1.bf16.msra.mxu0 0
        %2430 = vmatprep.subr.bf16.mxu0 0
        %2431 = vmatpush1.bf16.msra.mxu0 0
        %2432 = vmatprep.subr.bf16.mxu0 0
        %2433 = vmatpush1.bf16.msra.mxu0 0
        %2434 = vmatprep.subr.bf16.mxu0 0
        %2435 = vmatpush1.bf16.msra.mxu0 0
        %2436 = vmatprep.mubr.bf16.mxu0 0
        %2437 = vmatmul.mubr.bf16.gmra.mrb[0].mxu0 %v2327
        %v2438 = vpop.f32.mrb[0].mxu0
        %v2439 = vadd.f32 %v2354, %v2438
        %v2440 = vpop.f32.mrb[0].mxu0
        %v2441 = vpop.f32.mrb[0].mxu0
        %v2442 = vadd.f32 %v2354, %v2441
        %v2443 = vpop.f32.mrb[0].mxu0
        %2444 = vmatprep.mubr.bf16.mxu0 0
        %2445 = vmatmul.mubr.bf16.gmra.mrb[0].mxu0 %v2328
        %v2446 = vpop.f32.mrb[0].mxu0
        %v2447 = vadd.f32 %v2354, %v2446
        %v2448 = vpop.f32.mrb[0].mxu0
        %v2449 = vpop.f32.mrb[0].mxu0
        %v2450 = vadd.f32 %v2354, %v2449
        %v2451 = vpop.f32.mrb[0].mxu0
        %2452 = vmatprep.mubr.bf16.mxu0 0
        %2453 = vmatmul.mubr.bf16.gmra.mrb[0].mxu0 %v2329
        %v2454 = vpop.f32.mrb[0].mxu0
        %v2455 = vadd.f32 %v2354, %v2454
        %v2456 = vpop.f32.mrb[0].mxu0
        %v2457 = vpop.f32.mrb[0].mxu0
        %v2458 = vadd.f32 %v2354, %v2457
        %v2459 = vpop.f32.mrb[0].mxu0
        %2460 = vmatprep.mubr.bf16.mxu0 0
        %2461 = vmatmul.mubr.bf16.gmra.mrb[0].mxu0 %v2330
        %v2462 = vpop.f32.mrb[0].mxu0
        %v2463 = vadd.f32 %v2354, %v2462
        %v2464 = vpop.f32.mrb[0].mxu0
        %v2465 = vpop.f32.mrb[0].mxu0
        %v2466 = vadd.f32 %v2354, %v2465
        %v2467 = vpop.f32.mrb[0].mxu0
        %2468 = vdwg.mxu0
        %v2469 = vmax.f32 %v2439, 0.0
        %v2470 = vmax.f32 %v2442, 0.0
        %v2471 = vmax.f32 %v2447, 0.0
        %v2472 = vmax.f32 %v2450, 0.0
        %v2473 = vmax.f32 %v2455, 0.0
        %v2474 = vmax.f32 %v2458, 0.0
        %v2475 = vmax.f32 %v2463, 0.0
        %v2476 = vmax.f32 %v2466, 0.0
        %v2477 = vpack.c.bf16 %v2470, %v2469
        %v2478 = vpack.c.bf16 %v2472, %v2471
        %v2479 = vpack.c.bf16 %v2474, %v2473
        %v2480 = vpack.c.bf16 %v2476, %v2475
        %s2481 = scalar_lea.vmem [#allocation7], 128
        %v2482 = vld [vmem:[%s2481] sm:$0xf]
        %v2483 = vld [vmem:[%s2481 + $0x4] sm:$0xf]
        %v2484 = vld [vmem:[%s2481 + $0x8] sm:$0xf]
        %v2485 = vld [vmem:[%s2481 + $0xc] sm:$0xf]
        %v2486 = vld [vmem:[%s2481 + $0x10] sm:$0xf]
        %v2487 = vld [vmem:[%s2481 + $0x14] sm:$0xf]
        %v2488 = vld [vmem:[%s2481 + $0x18] sm:$0xf]
        %v2489 = vld [vmem:[%s2481 + $0x1c] sm:$0xf]
        %v2490 = vld [vmem:[%s2481 + $0x20] sm:$0xf]
        %v2491 = vld [vmem:[%s2481 + $0x24] sm:$0xf]
        %v2492 = vld [vmem:[%s2481 + $0x28] sm:$0xf]
        %v2493 = vld [vmem:[%s2481 + $0x2c] sm:$0xf]
        %v2494 = vld [vmem:[%s2481 + $0x30] sm:$0xf]
        %v2495 = vld [vmem:[%s2481 + $0x34] sm:$0xf]
        %v2496 = vld [vmem:[%s2481 + $0x38] sm:$0xf]
        %v2497 = vld [vmem:[%s2481 + $0x3c] sm:$0xf]
        %s2498 = scalar_lea.vmem %s4, 2
        %v2499 = vld [vmem:[%s2498] sm:$0x1]
        %v2501 = vlaneseq
        %v2502 = vshrl.u32 %v2501, 7
        %v2503 = vsub.s32 0, %v2502
        %v2504 = vrot.slane %v2499, %v2503
        %v2522 = vunpack.c.l.b16 %v2482
        %v2523 = vunpack.c.l.b16 %v2483
        %v2524 = vunpack.c.l.b16 %v2484
        %v2525 = vunpack.c.l.b16 %v2485
        %v2526 = vunpack.c.l.b16 %v2486
        %v2527 = vunpack.c.l.b16 %v2487
        %v2528 = vunpack.c.l.b16 %v2488
        %v2529 = vunpack.c.l.b16 %v2489
        %v2530 = vunpack.c.l.b16 %v2490
        %v2531 = vunpack.c.l.b16 %v2491
        %v2532 = vunpack.c.l.b16 %v2492
        %v2533 = vunpack.c.l.b16 %v2493
        %v2534 = vunpack.c.l.b16 %v2494
        %v2535 = vunpack.c.l.b16 %v2495
        %v2536 = vunpack.c.l.b16 %v2496
        %v2537 = vunpack.c.l.b16 %v2497
        %v2538 = vpack.c.b16 %v2523, %v2522
        %v2539 = vpack.c.b16 %v2525, %v2524
        %v2540 = vpack.c.b16 %v2527, %v2526
        %v2541 = vpack.c.b16 %v2529, %v2528
        %v2542 = vpack.c.b16 %v2531, %v2530
        %v2543 = vpack.c.b16 %v2533, %v2532
        %v2544 = vpack.c.b16 %v2535, %v2534
        %v2545 = vpack.c.b16 %v2537, %v2536
        %2554 = vmatprep.subr.bf16.mxu0 0
        %2555 = vmatpush1.bf16.msra.mxu0 %v2538
        %2556 = vmatprep.subr.bf16.mxu0 0
        %2557 = vmatpush1.bf16.msra.mxu0 %v2539
        %2558 = vmatprep.subr.bf16.mxu0 0
        %2559 = vmatpush1.bf16.msra.mxu0 %v2540
        %2560 = vmatprep.subr.bf16.mxu0 0
        %2561 = vmatpush1.bf16.msra.mxu0 %v2541
        %2562 = vmatprep.subr.bf16.mxu0 0
        %2563 = vmatpush1.bf16.msra.mxu0 %v2542
        %2564 = vmatprep.subr.bf16.mxu0 0
        %2565 = vmatpush1.bf16.msra.mxu0 %v2543
        %2566 = vmatprep.subr.bf16.mxu0 0
        %2567 = vmatpush1.bf16.msra.mxu0 %v2544
        %2568 = vmatprep.subr.bf16.mxu0 0
        %2569 = vmatpush1.bf16.msra.mxu0 %v2545
        %2570 = vmatprep.subr.bf16.mxu0 0
        %2571 = vmatpush1.bf16.msra.mxu0 0
        %2572 = vmatprep.subr.bf16.mxu0 0
        %2573 = vmatpush1.bf16.msra.mxu0 0
        %2574 = vmatprep.subr.bf16.mxu0 0
        %2575 = vmatpush1.bf16.msra.mxu0 0
        %2576 = vmatprep.subr.bf16.mxu0 0
        %2577 = vmatpush1.bf16.msra.mxu0 0
        %2578 = vmatprep.subr.bf16.mxu0 0
        %2579 = vmatpush1.bf16.msra.mxu0 0
        %2580 = vmatprep.subr.bf16.mxu0 0
        %2581 = vmatpush1.bf16.msra.mxu0 0
        %2582 = vmatprep.subr.bf16.mxu0 0
        %2583 = vmatpush1.bf16.msra.mxu0 0
        %2584 = vmatprep.subr.bf16.mxu0 0
        %2585 = vmatpush1.bf16.msra.mxu0 0
        %2586 = vmatprep.mubr.bf16.mxu0 0
        %2587 = vmatmul.mubr.bf16.gmra.mrb[0].mxu0 %v2477
        %v2588 = vpop.f32.mrb[0].mxu0
        %v2589 = vadd.f32 %v2504, %v2588
        %v2590 = vpop.f32.mrb[0].mxu0
        %v2591 = vpop.f32.mrb[0].mxu0
        %v2592 = vadd.f32 %v2504, %v2591
        %v2593 = vpop.f32.mrb[0].mxu0
        %2594 = vmatprep.mubr.bf16.mxu0 0
        %2595 = vmatmul.mubr.bf16.gmra.mrb[0].mxu0 %v2478
        %v2596 = vpop.f32.mrb[0].mxu0
        %v2597 = vadd.f32 %v2504, %v2596
        %v2598 = vpop.f32.mrb[0].mxu0
        %v2599 = vpop.f32.mrb[0].mxu0
        %v2600 = vadd.f32 %v2504, %v2599
        %v2601 = vpop.f32.mrb[0].mxu0
        %2602 = vmatprep.mubr.bf16.mxu0 0
        %2603 = vmatmul.mubr.bf16.gmra.mrb[0].mxu0 %v2479
        %v2604 = vpop.f32.mrb[0].mxu0
        %v2605 = vadd.f32 %v2504, %v2604
        %v2606 = vpop.f32.mrb[0].mxu0
        %v2607 = vpop.f32.mrb[0].mxu0
        %v2608 = vadd.f32 %v2504, %v2607
        %v2609 = vpop.f32.mrb[0].mxu0
        %2610 = vmatprep.mubr.bf16.mxu0 0
        %2611 = vmatmul.mubr.bf16.gmra.mrb[0].mxu0 %v2480
        %v2612 = vpop.f32.mrb[0].mxu0
        %v2613 = vadd.f32 %v2504, %v2612
        %v2614 = vpop.f32.mrb[0].mxu0
        %v2615 = vpop.f32.mrb[0].mxu0
        %v2616 = vadd.f32 %v2504, %v2615
        %v2617 = vpop.f32.mrb[0].mxu0
        %2618 = vdwg.mxu0
        %v2619 = vmax.f32 %v2589, 0.0
        %v2620 = vmax.f32 %v2592, 0.0
        %v2621 = vmax.f32 %v2597, 0.0
        %v2622 = vmax.f32 %v2600, 0.0
        %v2623 = vmax.f32 %v2605, 0.0
        %v2624 = vmax.f32 %v2608, 0.0
        %v2625 = vmax.f32 %v2613, 0.0
        %v2626 = vmax.f32 %v2616, 0.0
        %v2627 = vpack.c.bf16 %v2620, %v2619
        %v2628 = vpack.c.bf16 %v2622, %v2621
        %v2629 = vpack.c.bf16 %v2624, %v2623
        %v2630 = vpack.c.bf16 %v2626, %v2625
        %s2631 = scalar_lea.vmem [#allocation8], 128
        %v2632 = vld [vmem:[%s2631] sm:$0xf]
        %v2633 = vld [vmem:[%s2631 + $0x4] sm:$0xf]
        %v2634 = vld [vmem:[%s2631 + $0x8] sm:$0xf]
        %v2635 = vld [vmem:[%s2631 + $0xc] sm:$0xf]
        %v2636 = vld [vmem:[%s2631 + $0x10] sm:$0xf]
        %v2637 = vld [vmem:[%s2631 + $0x14] sm:$0xf]
        %v2638 = vld [vmem:[%s2631 + $0x18] sm:$0xf]
        %v2639 = vld [vmem:[%s2631 + $0x1c] sm:$0xf]
        %v2640 = vld [vmem:[%s2631 + $0x20] sm:$0xf]
        %v2641 = vld [vmem:[%s2631 + $0x24] sm:$0xf]
        %v2642 = vld [vmem:[%s2631 + $0x28] sm:$0xf]
        %v2643 = vld [vmem:[%s2631 + $0x2c] sm:$0xf]
        %v2644 = vld [vmem:[%s2631 + $0x30] sm:$0xf]
        %v2645 = vld [vmem:[%s2631 + $0x34] sm:$0xf]
        %v2646 = vld [vmem:[%s2631 + $0x38] sm:$0xf]
        %v2647 = vld [vmem:[%s2631 + $0x3c] sm:$0xf]
        %s2648 = scalar_lea.vmem %s6, 2
        %v2649 = vld [vmem:[%s2648] sm:$0x1]
        %v2651 = vlaneseq
        %v2652 = vshrl.u32 %v2651, 7
        %v2653 = vsub.s32 0, %v2652
        %v2654 = vrot.slane %v2649, %v2653
        %v2672 = vunpack.c.l.b16 %v2632
        %v2673 = vunpack.c.l.b16 %v2633
        %v2674 = vunpack.c.l.b16 %v2634
        %v2675 = vunpack.c.l.b16 %v2635
        %v2676 = vunpack.c.l.b16 %v2636
        %v2677 = vunpack.c.l.b16 %v2637
        %v2678 = vunpack.c.l.b16 %v2638
        %v2679 = vunpack.c.l.b16 %v2639
        %v2680 = vunpack.c.l.b16 %v2640
        %v2681 = vunpack.c.l.b16 %v2641
        %v2682 = vunpack.c.l.b16 %v2642
        %v2683 = vunpack.c.l.b16 %v2643
        %v2684 = vunpack.c.l.b16 %v2644
        %v2685 = vunpack.c.l.b16 %v2645
        %v2686 = vunpack.c.l.b16 %v2646
        %v2687 = vunpack.c.l.b16 %v2647
        %v2688 = vpack.c.b16 %v2673, %v2672
        %v2689 = vpack.c.b16 %v2675, %v2674
        %v2690 = vpack.c.b16 %v2677, %v2676
        %v2691 = vpack.c.b16 %v2679, %v2678
        %v2692 = vpack.c.b16 %v2681, %v2680
        %v2693 = vpack.c.b16 %v2683, %v2682
        %v2694 = vpack.c.b16 %v2685, %v2684
        %v2695 = vpack.c.b16 %v2687, %v2686
        %2704 = vmatprep.subr.bf16.mxu0 0
        %2705 = vmatpush1.bf16.msra.mxu0 %v2688
        %2706 = vmatprep.subr.bf16.mxu0 0
        %2707 = vmatpush1.bf16.msra.mxu0 %v2689
        %2708 = vmatprep.subr.bf16.mxu0 0
        %2709 = vmatpush1.bf16.msra.mxu0 %v2690
        %2710 = vmatprep.subr.bf16.mxu0 0
        %2711 = vmatpush1.bf16.msra.mxu0 %v2691
        %2712 = vmatprep.subr.bf16.mxu0 0
        %2713 = vmatpush1.bf16.msra.mxu0 %v2692
        %2714 = vmatprep.subr.bf16.mxu0 0
        %2715 = vmatpush1.bf16.msra.mxu0 %v2693
        %2716 = vmatprep.subr.bf16.mxu0 0
        %2717 = vmatpush1.bf16.msra.mxu0 %v2694
        %2718 = vmatprep.subr.bf16.mxu0 0
        %2719 = vmatpush1.bf16.msra.mxu0 %v2695
        %2720 = vmatprep.subr.bf16.mxu0 0
        %2721 = vmatpush1.bf16.msra.mxu0 0
        %2722 = vmatprep.subr.bf16.mxu0 0
        %2723 = vmatpush1.bf16.msra.mxu0 0
        %2724 = vmatprep.subr.bf16.mxu0 0
        %2725 = vmatpush1.bf16.msra.mxu0 0
        %2726 = vmatprep.subr.bf16.mxu0 0
        %2727 = vmatpush1.bf16.msra.mxu0 0
        %2728 = vmatprep.subr.bf16.mxu0 0
        %2729 = vmatpush1.bf16.msra.mxu0 0
        %2730 = vmatprep.subr.bf16.mxu0 0
        %2731 = vmatpush1.bf16.msra.mxu0 0
        %2732 = vmatprep.subr.bf16.mxu0 0
        %2733 = vmatpush1.bf16.msra.mxu0 0
        %2734 = vmatprep.subr.bf16.mxu0 0
        %2735 = vmatpush1.bf16.msra.mxu0 0
        %2736 = vmatprep.mubr.bf16.mxu0 0
        %2737 = vmatmul.mubr.bf16.gmra.mrb[0].mxu0 %v2627
        %v2738 = vpop.f32.mrb[0].mxu0
        %v2739 = vadd.f32 %v2654, %v2738
        %v2740 = vpop.f32.mrb[0].mxu0
        %v2741 = vpop.f32.mrb[0].mxu0
        %v2742 = vadd.f32 %v2654, %v2741
        %v2743 = vpop.f32.mrb[0].mxu0
        %2744 = vmatprep.mubr.bf16.mxu0 0
        %2745 = vmatmul.mubr.bf16.gmra.mrb[0].mxu0 %v2628
        %v2746 = vpop.f32.mrb[0].mxu0
        %v2747 = vadd.f32 %v2654, %v2746
        %v2748 = vpop.f32.mrb[0].mxu0
        %v2749 = vpop.f32.mrb[0].mxu0
        %v2750 = vadd.f32 %v2654, %v2749
        %v2751 = vpop.f32.mrb[0].mxu0
        %2752 = vmatprep.mubr.bf16.mxu0 0
        %2753 = vmatmul.mubr.bf16.gmra.mrb[0].mxu0 %v2629
        %v2754 = vpop.f32.mrb[0].mxu0
        %v2755 = vadd.f32 %v2654, %v2754
        %v2756 = vpop.f32.mrb[0].mxu0
        %v2757 = vpop.f32.mrb[0].mxu0
        %v2758 = vadd.f32 %v2654, %v2757
        %v2759 = vpop.f32.mrb[0].mxu0
        %2760 = vmatprep.mubr.bf16.mxu0 0
        %2761 = vmatmul.mubr.bf16.gmra.mrb[0].mxu0 %v2630
        %v2762 = vpop.f32.mrb[0].mxu0
        %v2763 = vadd.f32 %v2654, %v2762
        %v2764 = vpop.f32.mrb[0].mxu0
        %v2765 = vpop.f32.mrb[0].mxu0
        %v2766 = vadd.f32 %v2654, %v2765
        %v2767 = vpop.f32.mrb[0].mxu0
        %2768 = vdwg.mxu0
        %s2769 = scalar_lea.vmem [#allocation10], 128
        %v2770 = vld [vmem:[%s2769] sm:$0xf]
        %v2771 = vld [vmem:[%s2769 + $0x4] sm:$0xf]
        %v2772 = vld [vmem:[%s2769 + $0x8] sm:$0xf]
        %v2773 = vld [vmem:[%s2769 + $0xc] sm:$0xf]
        %v2774 = vld [vmem:[%s2769 + $0x10] sm:$0xf]
        %v2775 = vld [vmem:[%s2769 + $0x14] sm:$0xf]
        %v2776 = vld [vmem:[%s2769 + $0x18] sm:$0xf]
        %v2777 = vld [vmem:[%s2769 + $0x1c] sm:$0xf]
        %v2778 = vld [vmem:[%s2769 + $0x20] sm:$0xf]
        %v2779 = vld [vmem:[%s2769 + $0x24] sm:$0xf]
        %v2780 = vld [vmem:[%s2769 + $0x28] sm:$0xf]
        %v2781 = vld [vmem:[%s2769 + $0x2c] sm:$0xf]
        %v2782 = vld [vmem:[%s2769 + $0x30] sm:$0xf]
        %v2783 = vld [vmem:[%s2769 + $0x34] sm:$0xf]
        %v2784 = vld [vmem:[%s2769 + $0x38] sm:$0xf]
        %v2785 = vld [vmem:[%s2769 + $0x3c] sm:$0xf]
        %s2786 = scalar_lea.vmem %s8, 2
        %v2787 = vld [vmem:[%s2786] sm:$0x1]
        %v2789 = vlaneseq
        %v2790 = vshrl.u32 %v2789, 7
        %v2791 = vsub.s32 0, %v2790
        %v2792 = vrot.slane %v2787, %v2791
        %v2810 = vunpack.c.l.b16 %v2770
        %v2811 = vunpack.c.l.b16 %v2771
        %v2812 = vunpack.c.l.b16 %v2772
        %v2813 = vunpack.c.l.b16 %v2773
        %v2814 = vunpack.c.l.b16 %v2774
        %v2815 = vunpack.c.l.b16 %v2775
        %v2816 = vunpack.c.l.b16 %v2776
        %v2817 = vunpack.c.l.b16 %v2777
        %v2818 = vunpack.c.l.b16 %v2778
        %v2819 = vunpack.c.l.b16 %v2779
        %v2820 = vunpack.c.l.b16 %v2780
        %v2821 = vunpack.c.l.b16 %v2781
        %v2822 = vunpack.c.l.b16 %v2782
        %v2823 = vunpack.c.l.b16 %v2783
        %v2824 = vunpack.c.l.b16 %v2784
        %v2825 = vunpack.c.l.b16 %v2785
        %v2826 = vpack.c.b16 %v2811, %v2810
        %v2827 = vpack.c.b16 %v2813, %v2812
        %v2828 = vpack.c.b16 %v2815, %v2814
        %v2829 = vpack.c.b16 %v2817, %v2816
        %v2830 = vpack.c.b16 %v2819, %v2818
        %v2831 = vpack.c.b16 %v2821, %v2820
        %v2832 = vpack.c.b16 %v2823, %v2822
        %v2833 = vpack.c.b16 %v2825, %v2824
        %2842 = vmatprep.subr.bf16.mxu0 0
        %2843 = vmatpush1.bf16.msra.mxu0 %v2826
        %2844 = vmatprep.subr.bf16.mxu0 0
        %2845 = vmatpush1.bf16.msra.mxu0 %v2827
        %2846 = vmatprep.subr.bf16.mxu0 0
        %2847 = vmatpush1.bf16.msra.mxu0 %v2828
        %2848 = vmatprep.subr.bf16.mxu0 0
        %2849 = vmatpush1.bf16.msra.mxu0 %v2829
        %2850 = vmatprep.subr.bf16.mxu0 0
        %2851 = vmatpush1.bf16.msra.mxu0 %v2830
        %2852 = vmatprep.subr.bf16.mxu0 0
        %2853 = vmatpush1.bf16.msra.mxu0 %v2831
        %2854 = vmatprep.subr.bf16.mxu0 0
        %2855 = vmatpush1.bf16.msra.mxu0 %v2832
        %2856 = vmatprep.subr.bf16.mxu0 0
        %2857 = vmatpush1.bf16.msra.mxu0 %v2833
        %2858 = vmatprep.subr.bf16.mxu0 0
        %2859 = vmatpush1.bf16.msra.mxu0 0
        %2860 = vmatprep.subr.bf16.mxu0 0
        %2861 = vmatpush1.bf16.msra.mxu0 0
        %2862 = vmatprep.subr.bf16.mxu0 0
        %2863 = vmatpush1.bf16.msra.mxu0 0
        %2864 = vmatprep.subr.bf16.mxu0 0
        %2865 = vmatpush1.bf16.msra.mxu0 0
        %2866 = vmatprep.subr.bf16.mxu0 0
        %2867 = vmatpush1.bf16.msra.mxu0 0
        %2868 = vmatprep.subr.bf16.mxu0 0
        %2869 = vmatpush1.bf16.msra.mxu0 0
        %2870 = vmatprep.subr.bf16.mxu0 0
        %2871 = vmatpush1.bf16.msra.mxu0 0
        %2872 = vmatprep.subr.bf16.mxu0 0
        %2873 = vmatpush1.bf16.msra.mxu0 0
        %2874 = vmatprep.mubr.bf16.mxu0 0
        %2875 = vmatmul.mubr.bf16.gmra.mrb[0].mxu0 %v2627
        %v2876 = vpop.f32.mrb[0].mxu0
        %v2877 = vadd.f32 %v2792, %v2876
        %v2878 = vpop.f32.mrb[0].mxu0
        %v2879 = vpop.f32.mrb[0].mxu0
        %v2880 = vadd.f32 %v2792, %v2879
        %v2881 = vpop.f32.mrb[0].mxu0
        %2882 = vmatprep.mubr.bf16.mxu0 0
        %2883 = vmatmul.mubr.bf16.gmra.mrb[0].mxu0 %v2628
        %v2884 = vpop.f32.mrb[0].mxu0
        %v2885 = vadd.f32 %v2792, %v2884
        %v2886 = vpop.f32.mrb[0].mxu0
        %v2887 = vpop.f32.mrb[0].mxu0
        %v2888 = vadd.f32 %v2792, %v2887
        %v2889 = vpop.f32.mrb[0].mxu0
        %2890 = vmatprep.mubr.bf16.mxu0 0
        %2891 = vmatmul.mubr.bf16.gmra.mrb[0].mxu0 %v2629
        %v2892 = vpop.f32.mrb[0].mxu0
        %v2893 = vadd.f32 %v2792, %v2892
        %v2894 = vpop.f32.mrb[0].mxu0
        %v2895 = vpop.f32.mrb[0].mxu0
        %v2896 = vadd.f32 %v2792, %v2895
        %v2897 = vpop.f32.mrb[0].mxu0
        %2898 = vmatprep.mubr.bf16.mxu0 0
        %2899 = vmatmul.mubr.bf16.gmra.mrb[0].mxu0 %v2630
        %v2900 = vpop.f32.mrb[0].mxu0
        %v2901 = vadd.f32 %v2792, %v2900
        %v2902 = vpop.f32.mrb[0].mxu0
        %v2903 = vpop.f32.mrb[0].mxu0
        %v2904 = vadd.f32 %v2792, %v2903
        %v2905 = vpop.f32.mrb[0].mxu0
        %2906 = vdwg.mxu0
        %v2907 = vtanh.pop %v2739
        %v2908 = vtanh.pop %v2742
        %v2909 = vtanh.pop %v2747
        %v2910 = vtanh.pop %v2750
        %v2911 = vtanh.pop %v2755
        %v2912 = vtanh.pop %v2758
        %v2913 = vtanh.pop %v2763
        %v2914 = vtanh.pop %v2766
        %v2915 = vmul.f32 %v2907, 0.1
        %v2916 = vmul.f32 %v2908, 0.1
        %v2917 = vmul.f32 %v2909, 0.1
        %v2918 = vmul.f32 %v2910, 0.1
        %v2919 = vmul.f32 %v2911, 0.1
        %v2920 = vmul.f32 %v2912, 0.1
        %v2921 = vmul.f32 %v2913, 0.1
        %v2922 = vmul.f32 %v2914, 0.1
        %v2923 = vmul.f32 %v2915, 1.442695
        %v2924 = vpow.pop %v2923
        %v2925 = vmul.f32 %v2916, 1.442695
        %v2926 = vpow.pop %v2925
        %v2927 = vmul.f32 %v2917, 1.442695
        %v2928 = vpow.pop %v2927
        %v2929 = vmul.f32 %v2918, 1.442695
        %v2930 = vpow.pop %v2929
        %v2931 = vmul.f32 %v2919, 1.442695
        %v2932 = vpow.pop %v2931
        %v2933 = vmul.f32 %v2920, 1.442695
        %v2934 = vpow.pop %v2933
        %v2935 = vmul.f32 %v2921, 1.442695
        %v2936 = vpow.pop %v2935
        %v2937 = vmul.f32 %v2922, 1.442695
        %v2938 = vpow.pop %v2937
        %v2939 = vmul.f32 %v2289, %v2924
        %v2940 = vmul.f32 %v2294, %v2926
        %v2941 = vmul.f32 %v2299, %v2928
        %v2942 = vmul.f32 %v2304, %v2930
        %v2943 = vmul.f32 %v2309, %v2932
        %v2944 = vmul.f32 %v2314, %v2934
        %v2945 = vmul.f32 %v2319, %v2936
        %v2946 = vmul.f32 %v2324, %v2938
        %v2947 = vadd.f32 %v2939, %v2877
        %v2948 = vadd.f32 %v2940, %v2880
        %v2949 = vadd.f32 %v2941, %v2885
        %v2950 = vadd.f32 %v2942, %v2888
        %v2951 = vadd.f32 %v2943, %v2893
        %v2952 = vadd.f32 %v2944, %v2896
        %v2953 = vadd.f32 %v2945, %v2901
        %v2954 = vadd.f32 %v2946, %v2904
        %v2955 = vpack.c.bf16 %v2948, %v2947
        %v2956 = vpack.c.bf16 %v2950, %v2949
        %v2957 = vpack.c.bf16 %v2952, %v2951
        %v2958 = vpack.c.bf16 %v2954, %v2953
        %s2959 = scalar_lea.vmem [#allocation5], 192
        %v2960 = vld [vmem:[%s2959] sm:$0xf]
        %v2961 = vld [vmem:[%s2959 + $0x4] sm:$0xf]
        %v2962 = vld [vmem:[%s2959 + $0x8] sm:$0xf]
        %v2963 = vld [vmem:[%s2959 + $0xc] sm:$0xf]
        %v2964 = vld [vmem:[%s2959 + $0x10] sm:$0xf]
        %v2965 = vld [vmem:[%s2959 + $0x14] sm:$0xf]
        %v2966 = vld [vmem:[%s2959 + $0x18] sm:$0xf]
        %v2967 = vld [vmem:[%s2959 + $0x1c] sm:$0xf]
        %v2968 = vld [vmem:[%s2959 + $0x20] sm:$0xf]
        %v2969 = vld [vmem:[%s2959 + $0x24] sm:$0xf]
        %v2970 = vld [vmem:[%s2959 + $0x28] sm:$0xf]
        %v2971 = vld [vmem:[%s2959 + $0x2c] sm:$0xf]
        %v2972 = vld [vmem:[%s2959 + $0x30] sm:$0xf]
        %v2973 = vld [vmem:[%s2959 + $0x34] sm:$0xf]
        %v2974 = vld [vmem:[%s2959 + $0x38] sm:$0xf]
        %v2975 = vld [vmem:[%s2959 + $0x3c] sm:$0xf]
        %s2976 = scalar_lea.vmem %s2, 3
        %v2977 = vld [vmem:[%s2976] sm:$0x1]
        %v2979 = vlaneseq
        %v2980 = vshrl.u32 %v2979, 7
        %v2981 = vsub.s32 0, %v2980
        %v2982 = vrot.slane %v2977, %v2981
        %v3000 = vunpack.c.l.b16 %v2960
        %v3001 = vunpack.c.l.b16 %v2961
        %v3002 = vunpack.c.l.b16 %v2962
        %v3003 = vunpack.c.l.b16 %v2963
        %v3004 = vunpack.c.l.b16 %v2964
        %v3005 = vunpack.c.l.b16 %v2965
        %v3006 = vunpack.c.l.b16 %v2966
        %v3007 = vunpack.c.l.b16 %v2967
        %v3008 = vunpack.c.l.b16 %v2968
        %v3009 = vunpack.c.l.b16 %v2969
        %v3010 = vunpack.c.l.b16 %v2970
        %v3011 = vunpack.c.l.b16 %v2971
        %v3012 = vunpack.c.l.b16 %v2972
        %v3013 = vunpack.c.l.b16 %v2973
        %v3014 = vunpack.c.l.b16 %v2974
        %v3015 = vunpack.c.l.b16 %v2975
        %v3016 = vpack.c.b16 %v3001, %v3000
        %v3017 = vpack.c.b16 %v3003, %v3002
        %v3018 = vpack.c.b16 %v3005, %v3004
        %v3019 = vpack.c.b16 %v3007, %v3006
        %v3020 = vpack.c.b16 %v3009, %v3008
        %v3021 = vpack.c.b16 %v3011, %v3010
        %v3022 = vpack.c.b16 %v3013, %v3012
        %v3023 = vpack.c.b16 %v3015, %v3014
        %3032 = vmatprep.subr.bf16.mxu0 0
        %3033 = vmatpush1.bf16.msra.mxu0 %v3016
        %3034 = vmatprep.subr.bf16.mxu0 0
        %3035 = vmatpush1.bf16.msra.mxu0 %v3017
        %3036 = vmatprep.subr.bf16.mxu0 0
        %3037 = vmatpush1.bf16.msra.mxu0 %v3018
        %3038 = vmatprep.subr.bf16.mxu0 0
        %3039 = vmatpush1.bf16.msra.mxu0 %v3019
        %3040 = vmatprep.subr.bf16.mxu0 0
        %3041 = vmatpush1.bf16.msra.mxu0 %v3020
        %3042 = vmatprep.subr.bf16.mxu0 0
        %3043 = vmatpush1.bf16.msra.mxu0 %v3021
        %3044 = vmatprep.subr.bf16.mxu0 0
        %3045 = vmatpush1.bf16.msra.mxu0 %v3022
        %3046 = vmatprep.subr.bf16.mxu0 0
        %3047 = vmatpush1.bf16.msra.mxu0 %v3023
        %3048 = vmatprep.subr.bf16.mxu0 0
        %3049 = vmatpush1.bf16.msra.mxu0 0
        %3050 = vmatprep.subr.bf16.mxu0 0
        %3051 = vmatpush1.bf16.msra.mxu0 0
        %3052 = vmatprep.subr.bf16.mxu0 0
        %3053 = vmatpush1.bf16.msra.mxu0 0
        %3054 = vmatprep.subr.bf16.mxu0 0
        %3055 = vmatpush1.bf16.msra.mxu0 0
        %3056 = vmatprep.subr.bf16.mxu0 0
        %3057 = vmatpush1.bf16.msra.mxu0 0
        %3058 = vmatprep.subr.bf16.mxu0 0
        %3059 = vmatpush1.bf16.msra.mxu0 0
        %3060 = vmatprep.subr.bf16.mxu0 0
        %3061 = vmatpush1.bf16.msra.mxu0 0
        %3062 = vmatprep.subr.bf16.mxu0 0
        %3063 = vmatpush1.bf16.msra.mxu0 0
        %3064 = vmatprep.mubr.bf16.mxu0 0
        %3065 = vmatmul.mubr.bf16.gmra.mrb[0].mxu0 %v2955
        %v3066 = vpop.f32.mrb[0].mxu0
        %v3067 = vadd.f32 %v2982, %v3066
        %v3068 = vpop.f32.mrb[0].mxu0
        %v3069 = vpop.f32.mrb[0].mxu0
        %v3070 = vadd.f32 %v2982, %v3069
        %v3071 = vpop.f32.mrb[0].mxu0
        %3072 = vmatprep.mubr.bf16.mxu0 0
        %3073 = vmatmul.mubr.bf16.gmra.mrb[0].mxu0 %v2956
        %v3074 = vpop.f32.mrb[0].mxu0
        %v3075 = vadd.f32 %v2982, %v3074
        %v3076 = vpop.f32.mrb[0].mxu0
        %v3077 = vpop.f32.mrb[0].mxu0
        %v3078 = vadd.f32 %v2982, %v3077
        %v3079 = vpop.f32.mrb[0].mxu0
        %3080 = vmatprep.mubr.bf16.mxu0 0
        %3081 = vmatmul.mubr.bf16.gmra.mrb[0].mxu0 %v2957
        %v3082 = vpop.f32.mrb[0].mxu0
        %v3083 = vadd.f32 %v2982, %v3082
        %v3084 = vpop.f32.mrb[0].mxu0
        %v3085 = vpop.f32.mrb[0].mxu0
        %v3086 = vadd.f32 %v2982, %v3085
        %v3087 = vpop.f32.mrb[0].mxu0
        %3088 = vmatprep.mubr.bf16.mxu0 0
        %3089 = vmatmul.mubr.bf16.gmra.mrb[0].mxu0 %v2958
        %v3090 = vpop.f32.mrb[0].mxu0
        %v3091 = vadd.f32 %v2982, %v3090
        %v3092 = vpop.f32.mrb[0].mxu0
        %v3093 = vpop.f32.mrb[0].mxu0
        %v3094 = vadd.f32 %v2982, %v3093
        %v3095 = vpop.f32.mrb[0].mxu0
        %3096 = vdwg.mxu0
        %v3097 = vmax.f32 %v3067, 0.0
        %v3098 = vmax.f32 %v3070, 0.0
        %v3099 = vmax.f32 %v3075, 0.0
        %v3100 = vmax.f32 %v3078, 0.0
        %v3101 = vmax.f32 %v3083, 0.0
        %v3102 = vmax.f32 %v3086, 0.0
        %v3103 = vmax.f32 %v3091, 0.0
        %v3104 = vmax.f32 %v3094, 0.0
        %v3105 = vpack.c.bf16 %v3098, %v3097
        %v3106 = vpack.c.bf16 %v3100, %v3099
        %v3107 = vpack.c.bf16 %v3102, %v3101
        %v3108 = vpack.c.bf16 %v3104, %v3103
        %s3109 = scalar_lea.vmem [#allocation7], 192
        %v3110 = vld [vmem:[%s3109] sm:$0xf]
        %v3111 = vld [vmem:[%s3109 + $0x4] sm:$0xf]
        %v3112 = vld [vmem:[%s3109 + $0x8] sm:$0xf]
        %v3113 = vld [vmem:[%s3109 + $0xc] sm:$0xf]
        %v3114 = vld [vmem:[%s3109 + $0x10] sm:$0xf]
        %v3115 = vld [vmem:[%s3109 + $0x14] sm:$0xf]
        %v3116 = vld [vmem:[%s3109 + $0x18] sm:$0xf]
        %v3117 = vld [vmem:[%s3109 + $0x1c] sm:$0xf]
        %v3118 = vld [vmem:[%s3109 + $0x20] sm:$0xf]
        %v3119 = vld [vmem:[%s3109 + $0x24] sm:$0xf]
        %v3120 = vld [vmem:[%s3109 + $0x28] sm:$0xf]
        %v3121 = vld [vmem:[%s3109 + $0x2c] sm:$0xf]
        %v3122 = vld [vmem:[%s3109 + $0x30] sm:$0xf]
        %v3123 = vld [vmem:[%s3109 + $0x34] sm:$0xf]
        %v3124 = vld [vmem:[%s3109 + $0x38] sm:$0xf]
        %v3125 = vld [vmem:[%s3109 + $0x3c] sm:$0xf]
        %s3126 = scalar_lea.vmem %s4, 3
        %v3127 = vld [vmem:[%s3126] sm:$0x1]
        %v3129 = vlaneseq
        %v3130 = vshrl.u32 %v3129, 7
        %v3131 = vsub.s32 0, %v3130
        %v3132 = vrot.slane %v3127, %v3131
        %v3150 = vunpack.c.l.b16 %v3110
        %v3151 = vunpack.c.l.b16 %v3111
        %v3152 = vunpack.c.l.b16 %v3112
        %v3153 = vunpack.c.l.b16 %v3113
        %v3154 = vunpack.c.l.b16 %v3114
        %v3155 = vunpack.c.l.b16 %v3115
        %v3156 = vunpack.c.l.b16 %v3116
        %v3157 = vunpack.c.l.b16 %v3117
        %v3158 = vunpack.c.l.b16 %v3118
        %v3159 = vunpack.c.l.b16 %v3119
        %v3160 = vunpack.c.l.b16 %v3120
        %v3161 = vunpack.c.l.b16 %v3121
        %v3162 = vunpack.c.l.b16 %v3122
        %v3163 = vunpack.c.l.b16 %v3123
        %v3164 = vunpack.c.l.b16 %v3124
        %v3165 = vunpack.c.l.b16 %v3125
        %v3166 = vpack.c.b16 %v3151, %v3150
        %v3167 = vpack.c.b16 %v3153, %v3152
        %v3168 = vpack.c.b16 %v3155, %v3154
        %v3169 = vpack.c.b16 %v3157, %v3156
        %v3170 = vpack.c.b16 %v3159, %v3158
        %v3171 = vpack.c.b16 %v3161, %v3160
        %v3172 = vpack.c.b16 %v3163, %v3162
        %v3173 = vpack.c.b16 %v3165, %v3164
        %3182 = vmatprep.subr.bf16.mxu0 0
        %3183 = vmatpush1.bf16.msra.mxu0 %v3166
        %3184 = vmatprep.subr.bf16.mxu0 0
        %3185 = vmatpush1.bf16.msra.mxu0 %v3167
        %3186 = vmatprep.subr.bf16.mxu0 0
        %3187 = vmatpush1.bf16.msra.mxu0 %v3168
        %3188 = vmatprep.subr.bf16.mxu0 0
        %3189 = vmatpush1.bf16.msra.mxu0 %v3169
        %3190 = vmatprep.subr.bf16.mxu0 0
        %3191 = vmatpush1.bf16.msra.mxu0 %v3170
        %3192 = vmatprep.subr.bf16.mxu0 0
        %3193 = vmatpush1.bf16.msra.mxu0 %v3171
        %3194 = vmatprep.subr.bf16.mxu0 0
        %3195 = vmatpush1.bf16.msra.mxu0 %v3172
        %3196 = vmatprep.subr.bf16.mxu0 0
        %3197 = vmatpush1.bf16.msra.mxu0 %v3173
        %3198 = vmatprep.subr.bf16.mxu0 0
        %3199 = vmatpush1.bf16.msra.mxu0 0
        %3200 = vmatprep.subr.bf16.mxu0 0
        %3201 = vmatpush1.bf16.msra.mxu0 0
        %3202 = vmatprep.subr.bf16.mxu0 0
        %3203 = vmatpush1.bf16.msra.mxu0 0
        %3204 = vmatprep.subr.bf16.mxu0 0
        %3205 = vmatpush1.bf16.msra.mxu0 0
        %3206 = vmatprep.subr.bf16.mxu0 0
        %3207 = vmatpush1.bf16.msra.mxu0 0
        %3208 = vmatprep.subr.bf16.mxu0 0
        %3209 = vmatpush1.bf16.msra.mxu0 0
        %3210 = vmatprep.subr.bf16.mxu0 0
        %3211 = vmatpush1.bf16.msra.mxu0 0
        %3212 = vmatprep.subr.bf16.mxu0 0
        %3213 = vmatpush1.bf16.msra.mxu0 0
        %3214 = vmatprep.mubr.bf16.mxu0 0
        %3215 = vmatmul.mubr.bf16.gmra.mrb[0].mxu0 %v3105
        %v3216 = vpop.f32.mrb[0].mxu0
        %v3217 = vadd.f32 %v3132, %v3216
        %v3218 = vpop.f32.mrb[0].mxu0
        %v3219 = vpop.f32.mrb[0].mxu0
        %v3220 = vadd.f32 %v3132, %v3219
        %v3221 = vpop.f32.mrb[0].mxu0
        %3222 = vmatprep.mubr.bf16.mxu0 0
        %3223 = vmatmul.mubr.bf16.gmra.mrb[0].mxu0 %v3106
        %v3224 = vpop.f32.mrb[0].mxu0
        %v3225 = vadd.f32 %v3132, %v3224
        %v3226 = vpop.f32.mrb[0].mxu0
        %v3227 = vpop.f32.mrb[0].mxu0
        %v3228 = vadd.f32 %v3132, %v3227
        %v3229 = vpop.f32.mrb[0].mxu0
        %3230 = vmatprep.mubr.bf16.mxu0 0
        %3231 = vmatmul.mubr.bf16.gmra.mrb[0].mxu0 %v3107
        %v3232 = vpop.f32.mrb[0].mxu0
        %v3233 = vadd.f32 %v3132, %v3232
        %v3234 = vpop.f32.mrb[0].mxu0
        %v3235 = vpop.f32.mrb[0].mxu0
        %v3236 = vadd.f32 %v3132, %v3235
        %v3237 = vpop.f32.mrb[0].mxu0
        %3238 = vmatprep.mubr.bf16.mxu0 0
        %3239 = vmatmul.mubr.bf16.gmra.mrb[0].mxu0 %v3108
        %v3240 = vpop.f32.mrb[0].mxu0
        %v3241 = vadd.f32 %v3132, %v3240
        %v3242 = vpop.f32.mrb[0].mxu0
        %v3243 = vpop.f32.mrb[0].mxu0
        %v3244 = vadd.f32 %v3132, %v3243
        %v3245 = vpop.f32.mrb[0].mxu0
        %3246 = vdwg.mxu0
        %v3247 = vmax.f32 %v3217, 0.0
        %v3248 = vmax.f32 %v3220, 0.0
        %v3249 = vmax.f32 %v3225, 0.0
        %v3250 = vmax.f32 %v3228, 0.0
        %v3251 = vmax.f32 %v3233, 0.0
        %v3252 = vmax.f32 %v3236, 0.0
        %v3253 = vmax.f32 %v3241, 0.0
        %v3254 = vmax.f32 %v3244, 0.0
        %v3255 = vpack.c.bf16 %v3248, %v3247
        %v3256 = vpack.c.bf16 %v3250, %v3249
        %v3257 = vpack.c.bf16 %v3252, %v3251
        %v3258 = vpack.c.bf16 %v3254, %v3253
        %s3259 = scalar_lea.vmem [#allocation8], 192
        %v3260 = vld [vmem:[%s3259] sm:$0xf]
        %v3261 = vld [vmem:[%s3259 + $0x4] sm:$0xf]
        %v3262 = vld [vmem:[%s3259 + $0x8] sm:$0xf]
        %v3263 = vld [vmem:[%s3259 + $0xc] sm:$0xf]
        %v3264 = vld [vmem:[%s3259 + $0x10] sm:$0xf]
        %v3265 = vld [vmem:[%s3259 + $0x14] sm:$0xf]
        %v3266 = vld [vmem:[%s3259 + $0x18] sm:$0xf]
        %v3267 = vld [vmem:[%s3259 + $0x1c] sm:$0xf]
        %v3268 = vld [vmem:[%s3259 + $0x20] sm:$0xf]
        %v3269 = vld [vmem:[%s3259 + $0x24] sm:$0xf]
        %v3270 = vld [vmem:[%s3259 + $0x28] sm:$0xf]
        %v3271 = vld [vmem:[%s3259 + $0x2c] sm:$0xf]
        %v3272 = vld [vmem:[%s3259 + $0x30] sm:$0xf]
        %v3273 = vld [vmem:[%s3259 + $0x34] sm:$0xf]
        %v3274 = vld [vmem:[%s3259 + $0x38] sm:$0xf]
        %v3275 = vld [vmem:[%s3259 + $0x3c] sm:$0xf]
        %s3276 = scalar_lea.vmem %s6, 3
        %v3277 = vld [vmem:[%s3276] sm:$0x1]
        %v3279 = vlaneseq
        %v3280 = vshrl.u32 %v3279, 7
        %v3281 = vsub.s32 0, %v3280
        %v3282 = vrot.slane %v3277, %v3281
        %v3300 = vunpack.c.l.b16 %v3260
        %v3301 = vunpack.c.l.b16 %v3261
        %v3302 = vunpack.c.l.b16 %v3262
        %v3303 = vunpack.c.l.b16 %v3263
        %v3304 = vunpack.c.l.b16 %v3264
        %v3305 = vunpack.c.l.b16 %v3265
        %v3306 = vunpack.c.l.b16 %v3266
        %v3307 = vunpack.c.l.b16 %v3267
        %v3308 = vunpack.c.l.b16 %v3268
        %v3309 = vunpack.c.l.b16 %v3269
        %v3310 = vunpack.c.l.b16 %v3270
        %v3311 = vunpack.c.l.b16 %v3271
        %v3312 = vunpack.c.l.b16 %v3272
        %v3313 = vunpack.c.l.b16 %v3273
        %v3314 = vunpack.c.l.b16 %v3274
        %v3315 = vunpack.c.l.b16 %v3275
        %v3316 = vpack.c.b16 %v3301, %v3300
        %v3317 = vpack.c.b16 %v3303, %v3302
        %v3318 = vpack.c.b16 %v3305, %v3304
        %v3319 = vpack.c.b16 %v3307, %v3306
        %v3320 = vpack.c.b16 %v3309, %v3308
        %v3321 = vpack.c.b16 %v3311, %v3310
        %v3322 = vpack.c.b16 %v3313, %v3312
        %v3323 = vpack.c.b16 %v3315, %v3314
        %3332 = vmatprep.subr.bf16.mxu0 0
        %3333 = vmatpush1.bf16.msra.mxu0 %v3316
        %3334 = vmatprep.subr.bf16.mxu0 0
        %3335 = vmatpush1.bf16.msra.mxu0 %v3317
        %3336 = vmatprep.subr.bf16.mxu0 0
        %3337 = vmatpush1.bf16.msra.mxu0 %v3318
        %3338 = vmatprep.subr.bf16.mxu0 0
        %3339 = vmatpush1.bf16.msra.mxu0 %v3319
        %3340 = vmatprep.subr.bf16.mxu0 0
        %3341 = vmatpush1.bf16.msra.mxu0 %v3320
        %3342 = vmatprep.subr.bf16.mxu0 0
        %3343 = vmatpush1.bf16.msra.mxu0 %v3321
        %3344 = vmatprep.subr.bf16.mxu0 0
        %3345 = vmatpush1.bf16.msra.mxu0 %v3322
        %3346 = vmatprep.subr.bf16.mxu0 0
        %3347 = vmatpush1.bf16.msra.mxu0 %v3323
        %3348 = vmatprep.subr.bf16.mxu0 0
        %3349 = vmatpush1.bf16.msra.mxu0 0
        %3350 = vmatprep.subr.bf16.mxu0 0
        %3351 = vmatpush1.bf16.msra.mxu0 0
        %3352 = vmatprep.subr.bf16.mxu0 0
        %3353 = vmatpush1.bf16.msra.mxu0 0
        %3354 = vmatprep.subr.bf16.mxu0 0
        %3355 = vmatpush1.bf16.msra.mxu0 0
        %3356 = vmatprep.subr.bf16.mxu0 0
        %3357 = vmatpush1.bf16.msra.mxu0 0
        %3358 = vmatprep.subr.bf16.mxu0 0
        %3359 = vmatpush1.bf16.msra.mxu0 0
        %3360 = vmatprep.subr.bf16.mxu0 0
        %3361 = vmatpush1.bf16.msra.mxu0 0
        %3362 = vmatprep.subr.bf16.mxu0 0
        %3363 = vmatpush1.bf16.msra.mxu0 0
        %3364 = vmatprep.mubr.bf16.mxu0 0
        %3365 = vmatmul.mubr.bf16.gmra.mrb[0].mxu0 %v3255
        %v3366 = vpop.f32.mrb[0].mxu0
        %v3367 = vadd.f32 %v3282, %v3366
        %v3368 = vpop.f32.mrb[0].mxu0
        %v3369 = vpop.f32.mrb[0].mxu0
        %v3370 = vadd.f32 %v3282, %v3369
        %v3371 = vpop.f32.mrb[0].mxu0
        %3372 = vmatprep.mubr.bf16.mxu0 0
        %3373 = vmatmul.mubr.bf16.gmra.mrb[0].mxu0 %v3256
        %v3374 = vpop.f32.mrb[0].mxu0
        %v3375 = vadd.f32 %v3282, %v3374
        %v3376 = vpop.f32.mrb[0].mxu0
        %v3377 = vpop.f32.mrb[0].mxu0
        %v3378 = vadd.f32 %v3282, %v3377
        %v3379 = vpop.f32.mrb[0].mxu0
        %3380 = vmatprep.mubr.bf16.mxu0 0
        %3381 = vmatmul.mubr.bf16.gmra.mrb[0].mxu0 %v3257
        %v3382 = vpop.f32.mrb[0].mxu0
        %v3383 = vadd.f32 %v3282, %v3382
        %v3384 = vpop.f32.mrb[0].mxu0
        %v3385 = vpop.f32.mrb[0].mxu0
        %v3386 = vadd.f32 %v3282, %v3385
        %v3387 = vpop.f32.mrb[0].mxu0
        %3388 = vmatprep.mubr.bf16.mxu0 0
        %3389 = vmatmul.mubr.bf16.gmra.mrb[0].mxu0 %v3258
        %v3390 = vpop.f32.mrb[0].mxu0
        %v3391 = vadd.f32 %v3282, %v3390
        %v3392 = vpop.f32.mrb[0].mxu0
        %v3393 = vpop.f32.mrb[0].mxu0
        %v3394 = vadd.f32 %v3282, %v3393
        %v3395 = vpop.f32.mrb[0].mxu0
        %3396 = vdwg.mxu0
        %s3397 = scalar_lea.vmem [#allocation10], 192
        %v3398 = vld [vmem:[%s3397] sm:$0xf]
        %v3399 = vld [vmem:[%s3397 + $0x4] sm:$0xf]
        %v3400 = vld [vmem:[%s3397 + $0x8] sm:$0xf]
        %v3401 = vld [vmem:[%s3397 + $0xc] sm:$0xf]
        %v3402 = vld [vmem:[%s3397 + $0x10] sm:$0xf]
        %v3403 = vld [vmem:[%s3397 + $0x14] sm:$0xf]
        %v3404 = vld [vmem:[%s3397 + $0x18] sm:$0xf]
        %v3405 = vld [vmem:[%s3397 + $0x1c] sm:$0xf]
        %v3406 = vld [vmem:[%s3397 + $0x20] sm:$0xf]
        %v3407 = vld [vmem:[%s3397 + $0x24] sm:$0xf]
        %v3408 = vld [vmem:[%s3397 + $0x28] sm:$0xf]
        %v3409 = vld [vmem:[%s3397 + $0x2c] sm:$0xf]
        %v3410 = vld [vmem:[%s3397 + $0x30] sm:$0xf]
        %v3411 = vld [vmem:[%s3397 + $0x34] sm:$0xf]
        %v3412 = vld [vmem:[%s3397 + $0x38] sm:$0xf]
        %v3413 = vld [vmem:[%s3397 + $0x3c] sm:$0xf]
        %s3414 = scalar_lea.vmem %s8, 3
        %v3415 = vld [vmem:[%s3414] sm:$0x1]
        %v3417 = vlaneseq
        %v3418 = vshrl.u32 %v3417, 7
        %v3419 = vsub.s32 0, %v3418
        %v3420 = vrot.slane %v3415, %v3419
        %v3438 = vunpack.c.l.b16 %v3398
        %v3439 = vunpack.c.l.b16 %v3399
        %v3440 = vunpack.c.l.b16 %v3400
        %v3441 = vunpack.c.l.b16 %v3401
        %v3442 = vunpack.c.l.b16 %v3402
        %v3443 = vunpack.c.l.b16 %v3403
        %v3444 = vunpack.c.l.b16 %v3404
        %v3445 = vunpack.c.l.b16 %v3405
        %v3446 = vunpack.c.l.b16 %v3406
        %v3447 = vunpack.c.l.b16 %v3407
        %v3448 = vunpack.c.l.b16 %v3408
        %v3449 = vunpack.c.l.b16 %v3409
        %v3450 = vunpack.c.l.b16 %v3410
        %v3451 = vunpack.c.l.b16 %v3411
        %v3452 = vunpack.c.l.b16 %v3412
        %v3453 = vunpack.c.l.b16 %v3413
        %v3454 = vpack.c.b16 %v3439, %v3438
        %v3455 = vpack.c.b16 %v3441, %v3440
        %v3456 = vpack.c.b16 %v3443, %v3442
        %v3457 = vpack.c.b16 %v3445, %v3444
        %v3458 = vpack.c.b16 %v3447, %v3446
        %v3459 = vpack.c.b16 %v3449, %v3448
        %v3460 = vpack.c.b16 %v3451, %v3450
        %v3461 = vpack.c.b16 %v3453, %v3452
        %3470 = vmatprep.subr.bf16.mxu0 0
        %3471 = vmatpush1.bf16.msra.mxu0 %v3454
        %3472 = vmatprep.subr.bf16.mxu0 0
        %3473 = vmatpush1.bf16.msra.mxu0 %v3455
        %3474 = vmatprep.subr.bf16.mxu0 0
        %3475 = vmatpush1.bf16.msra.mxu0 %v3456
        %3476 = vmatprep.subr.bf16.mxu0 0
        %3477 = vmatpush1.bf16.msra.mxu0 %v3457
        %3478 = vmatprep.subr.bf16.mxu0 0
        %3479 = vmatpush1.bf16.msra.mxu0 %v3458
        %3480 = vmatprep.subr.bf16.mxu0 0
        %3481 = vmatpush1.bf16.msra.mxu0 %v3459
        %3482 = vmatprep.subr.bf16.mxu0 0
        %3483 = vmatpush1.bf16.msra.mxu0 %v3460
        %3484 = vmatprep.subr.bf16.mxu0 0
        %3485 = vmatpush1.bf16.msra.mxu0 %v3461
        %3486 = vmatprep.subr.bf16.mxu0 0
        %3487 = vmatpush1.bf16.msra.mxu0 0
        %3488 = vmatprep.subr.bf16.mxu0 0
        %3489 = vmatpush1.bf16.msra.mxu0 0
        %3490 = vmatprep.subr.bf16.mxu0 0
        %3491 = vmatpush1.bf16.msra.mxu0 0
        %3492 = vmatprep.subr.bf16.mxu0 0
        %3493 = vmatpush1.bf16.msra.mxu0 0
        %3494 = vmatprep.subr.bf16.mxu0 0
        %3495 = vmatpush1.bf16.msra.mxu0 0
        %3496 = vmatprep.subr.bf16.mxu0 0
        %3497 = vmatpush1.bf16.msra.mxu0 0
        %3498 = vmatprep.subr.bf16.mxu0 0
        %3499 = vmatpush1.bf16.msra.mxu0 0
        %3500 = vmatprep.subr.bf16.mxu0 0
        %3501 = vmatpush1.bf16.msra.mxu0 0
        %3502 = vmatprep.mubr.bf16.mxu0 0
        %3503 = vmatmul.mubr.bf16.gmra.mrb[0].mxu0 %v3255
        %v3504 = vpop.f32.mrb[0].mxu0
        %v3505 = vadd.f32 %v3420, %v3504
        %v3506 = vpop.f32.mrb[0].mxu0
        %v3507 = vpop.f32.mrb[0].mxu0
        %v3508 = vadd.f32 %v3420, %v3507
        %v3509 = vpop.f32.mrb[0].mxu0
        %3510 = vmatprep.mubr.bf16.mxu0 0
        %3511 = vmatmul.mubr.bf16.gmra.mrb[0].mxu0 %v3256
        %v3512 = vpop.f32.mrb[0].mxu0
        %v3513 = vadd.f32 %v3420, %v3512
        %v3514 = vpop.f32.mrb[0].mxu0
        %v3515 = vpop.f32.mrb[0].mxu0
        %v3516 = vadd.f32 %v3420, %v3515
        %v3517 = vpop.f32.mrb[0].mxu0
        %3518 = vmatprep.mubr.bf16.mxu0 0
        %3519 = vmatmul.mubr.bf16.gmra.mrb[0].mxu0 %v3257
        %v3520 = vpop.f32.mrb[0].mxu0
        %v3521 = vadd.f32 %v3420, %v3520
        %v3522 = vpop.f32.mrb[0].mxu0
        %v3523 = vpop.f32.mrb[0].mxu0
        %v3524 = vadd.f32 %v3420, %v3523
        %v3525 = vpop.f32.mrb[0].mxu0
        %3526 = vmatprep.mubr.bf16.mxu0 0
        %3527 = vmatmul.mubr.bf16.gmra.mrb[0].mxu0 %v3258
        %v3528 = vpop.f32.mrb[0].mxu0
        %v3529 = vadd.f32 %v3420, %v3528
        %v3530 = vpop.f32.mrb[0].mxu0
        %v3531 = vpop.f32.mrb[0].mxu0
        %v3532 = vadd.f32 %v3420, %v3531
        %v3533 = vpop.f32.mrb[0].mxu0
        %3534 = vdwg.mxu0
        %v3535 = vtanh.pop %v3367
        %v3536 = vtanh.pop %v3370
        %v3537 = vtanh.pop %v3375
        %v3538 = vtanh.pop %v3378
        %v3539 = vtanh.pop %v3383
        %v3540 = vtanh.pop %v3386
        %v3541 = vtanh.pop %v3391
        %v3542 = vtanh.pop %v3394
        %v3543 = vmul.f32 %v3535, 0.1
        %v3544 = vmul.f32 %v3536, 0.1
        %v3545 = vmul.f32 %v3537, 0.1
        %v3546 = vmul.f32 %v3538, 0.1
        %v3547 = vmul.f32 %v3539, 0.1
        %v3548 = vmul.f32 %v3540, 0.1
        %v3549 = vmul.f32 %v3541, 0.1
        %v3550 = vmul.f32 %v3542, 0.1
        %v3551 = vmul.f32 %v3543, 1.442695
        %v3552 = vpow.pop %v3551
        %v3553 = vmul.f32 %v3544, 1.442695
        %v3554 = vpow.pop %v3553
        %v3555 = vmul.f32 %v3545, 1.442695
        %v3556 = vpow.pop %v3555
        %v3557 = vmul.f32 %v3546, 1.442695
        %v3558 = vpow.pop %v3557
        %v3559 = vmul.f32 %v3547, 1.442695
        %v3560 = vpow.pop %v3559
        %v3561 = vmul.f32 %v3548, 1.442695
        %v3562 = vpow.pop %v3561
        %v3563 = vmul.f32 %v3549, 1.442695
        %v3564 = vpow.pop %v3563
        %v3565 = vmul.f32 %v3550, 1.442695
        %v3566 = vpow.pop %v3565
        %v3567 = vmul.f32 %v2047, %v3552
        %v3568 = vmul.f32 %v2052, %v3554
        %v3569 = vmul.f32 %v2057, %v3556
        %v3570 = vmul.f32 %v2062, %v3558
        %v3571 = vmul.f32 %v2067, %v3560
        %v3572 = vmul.f32 %v2072, %v3562
        %v3573 = vmul.f32 %v2077, %v3564
        %v3574 = vmul.f32 %v2082, %v3566
        %v3575 = vadd.f32 %v3567, %v3505
        %v3576 = vadd.f32 %v3568, %v3508
        %v3577 = vadd.f32 %v3569, %v3513
        %v3578 = vadd.f32 %v3570, %v3516
        %v3579 = vadd.f32 %v3571, %v3521
        %v3580 = vadd.f32 %v3572, %v3524
        %v3581 = vadd.f32 %v3573, %v3529
        %v3582 = vadd.f32 %v3574, %v3532
        %3583 = vst [vmem:[%s575] sm:$0xff] %v3575
        %3584 = vst [vmem:[%s575 + $0x10] sm:$0xff] %v3576
        %3585 = vst [vmem:[%s575 + $0x20] sm:$0xff] %v3577
        %3586 = vst [vmem:[%s575 + $0x30] sm:$0xff] %v3578
        %3587 = vst [vmem:[%s575 + $0x40] sm:$0xff] %v3579
        %3588 = vst [vmem:[%s575 + $0x50] sm:$0xff] %v3580
        %3589 = vst [vmem:[%s575 + $0x60] sm:$0xff] %v3581
        %3590 = vst [vmem:[%s575 + $0x70] sm:$0xff] %v3582
        %3591 = vst [vmem:[%s575 + $0x8] sm:$0xff] %v2947
        %3592 = vst [vmem:[%s575 + $0x18] sm:$0xff] %v2948
        %3593 = vst [vmem:[%s575 + $0x28] sm:$0xff] %v2949
        %3594 = vst [vmem:[%s575 + $0x38] sm:$0xff] %v2950
        %3595 = vst [vmem:[%s575 + $0x48] sm:$0xff] %v2951
        %3596 = vst [vmem:[%s575 + $0x58] sm:$0xff] %v2952
        %3597 = vst [vmem:[%s575 + $0x68] sm:$0xff] %v2953
        %3598 = vst [vmem:[%s575 + $0x78] sm:$0xff] %v2954
        %s3599 = sand.u32 %s320, 1
        %s3600 = scalar_lea.sflag [#allocation4], %s3599
        %s3601 = sand.u32 %s320, 1
        %s3602 = smul.addr %s3601, 128
        %s3603 = scalar_lea.vmem [#allocation17], %s3602
        // Predicated region
        $region109: #{tpu_custom_call.1} parent=71 // pred_check
          %p3604 = pneg %p330
        $region110: #{tpu_custom_call.1} parent=71 // pred_check_branch
          %3606 = sbr.rel (%p3604) target = $region112
        $region111: #{tpu_custom_call.1} parent=71 // pred_region
          %s3607 = smul.u32 8, %s34
          %s3609 = ssub.s32 2048, 2048
          %3610 = vsyncadd %s3600, %s3609
          %s3611 = smul.addr %s3607, 2
          %s3612 = smul.addr %s3611, 128
          %s3613 = scalar_lea.hbm %s13, %s3612
          %s3614 = sshll.u32 %s3603, 4
          %s3615 = int_to_ptr.vmem [resolvable:$true] %s3614
          %3620 = dma.vmem_to_hbm [thread:$0]  %s3615, 2048, %s3613, %s3600, 256, 256, 16
        $region112: #{tpu_custom_call.1} parent=71 // pred_fallthru
          _
      $region72: #{tpu_custom_call.1} parent=5 // pred_fallthru
        _
      %p3621 = scmp.le.s32.totalorder 2, %s29
      // Predicated region
      $region113: #{tpu_custom_call.1} parent=5 // pred_check
        %p3622 = pneg %p3621
      $region114: #{tpu_custom_call.1} parent=5 // pred_check_branch
        %3624 = sbr.rel (%p3622) target = $region116
      $region115: #{tpu_custom_call.1} parent=5 // pred_region
        %s3625 = ssub.s32 %s29, 2
        // Predicated region
        $region117: #{tpu_custom_call.1} parent=115 // pred_check
          %p3626 = pneg %p336
        $region118: #{tpu_custom_call.1} parent=115 // pred_check_branch
          %3628 = sbr.rel (%p3626) target = $region120
        $region119: #{tpu_custom_call.1} parent=115 // pred_region
          %s3629 = sand.u32 %s321, 1
          %s3630 = scalar_lea.sflag [#allocation4], %s3629
          %s3631 = sand.u32 %s321, 1
          %s3632 = smul.addr %s3631, 128
          %s3633 = scalar_lea.vmem [#allocation17], %s3632
          %3634 = dma.done %s3630, 2048
        $region120: #{tpu_custom_call.1} parent=115 // pred_fallthru
          _
      $region116: #{tpu_custom_call.1} parent=5 // pred_fallthru
        _
    $region6: #{tpu_custom_call.1} parent=1 // loop_footer
      %s33 = sadd.s32 1, %s29
    $region7: #{tpu_custom_call.1} parent=1 // loop_footer_branch
      %28 = sbr.rel target = $region3
    $region8: #{tpu_custom_call.1} parent=1 // loop_exit
      _
    %3635 = vsyncpa [#allocation3], 1
    %s3636 = scalar_lea.sflag [#allocation3], 1
    %3637 = vsyncpa %s3636, 1
    %3638 = vsyncpa [#allocation6], 1
    %3639 = vsyncpa [#allocation9], 1
    %3640 = vsyncpa [#allocation12], 1
    %3641 = vsyncpa [#allocation15], 1
    %3642 = vsyncpa [#allocation4], 1
    %s3643 = scalar_lea.sflag [#allocation4], 1
    %3644 = vsyncpa %s3643, 1

</llo_original>
